<compile_context>
chip_gen: v7x
topology: tpu7x:2x2x1
jax: 0.10.0
libtpu: 0.0.40
codegen_flags: <defaults>
</compile_context>

<pallas_src>
import functools

import jax
import jax.numpy as jnp
import numpy as np
from jax import lax
from jax.experimental import pallas as pl
from jax.experimental.pallas import tpu as pltpu

_BIG_SQ = 1e30          # sentinel in *squared*-distance space (assumes coords << 1e14)
_BIG_CODE = 0x3FFFFFFF  # > max packed (lane, parent) code = 511*512 + 511


def _pick_group_chunk(P: int, G: int, B: int) -> int:
    """Groups per grid step: largest multiple of 8 in [8,32] with Gc*P <= 4096."""
    gc = max(8, min(32, (4096 // P) // 8 * 8))
    # Keep at least 2 grid steps when possible so both v7x TensorCores get work.
    while gc > 8 and B * (-(-G // gc)) < 2:
        gc = max(8, (gc // 2) // 8 * 8)
    return gc


def _expansion_penalty_kernel(x_ref, dist_ref, assign_ref, mean_ref, *,
                              primitive_size: int, alpha: float, unroll: int):
    """One grid step = one batch element x one chunk of Gc groups."""
    P = primitive_size
    xyz_c = x_ref[0]                                    # [3, Gc, P] f32 (stacked coords)
    Gc = xyz_c.shape[1]

    shift = max(1, (P - 1).bit_length())                # next-pow2 exponent of P
    par_mask = (1 << shift) - 1

    lane = lax.broadcasted_iota(jnp.int32, (Gc, P), 1)  # [Gc, P] point index
    lane_code = lane << shift                           # packed-code base (parent bits = 0)

    carry0 = (
        xyz_c[:, :, 0:1],                               # lxyz: coords of last-added node [3,Gc,1]
        jnp.zeros((Gc, 1), jnp.int32),                  # u: index of last-added node
        jnp.full((Gc, P), _BIG_SQ, jnp.float32),        # cur_dis (squared; BIG = visited/unrelaxed)
        lane_code,                                      # cur_code = lane*Pp2 + candidate parent
        (lane == 0).astype(jnp.int32),                  # vis (root pre-visited)
        jnp.zeros((Gc, P), jnp.float32),                # committed edge dist^2
        jnp.zeros((Gc, P), jnp.int32),                  # committed edge code
    )

    def round_body(_, carry):
        lxyz, u, cur_dis, cur_code, vis, edge_dsq, edge_code = carry
        # squared distance from every point to the last-added node (per group)
        d = xyz_c - lxyz                                # lane-broadcast of lxyz
        dsq = d[0] * d[0] + d[1] * d[1] + d[2] * d[2]   # [Gc, P]
        # relax unvisited nodes (visited slots sit at _BIG_SQ and are skipped)
        relax = jnp.logical_and(vis == 0, dsq < cur_dis)
        cur_dis = jnp.where(relax, dsq, cur_dis)
        cur_code = jnp.where(relax, lane_code + u, cur_code)
        # per-group argmin (smallest lane on ties) + parent, via one packed min
        best_d = jnp.min(cur_dis, axis=1, keepdims=True)               # [Gc,1]
        tie = cur_dis == best_d
        code_min = jnp.min(jnp.where(tie, cur_code, _BIG_CODE),
                           axis=1, keepdims=True)                      # [Gc,1]
        onehot = cur_code == code_min                                  # unique per row
        # commit the new MST edge
        vis = jnp.where(onehot, 1, vis)
        edge_dsq = jnp.where(onehot, cur_dis, edge_dsq)
        edge_code = jnp.where(onehot, cur_code, edge_code)
        cur_dis = jnp.where(onehot, _BIG_SQ, cur_dis)                  # mark visited
        # coords of the newly added node (single fused masked reduce over [3,Gc,P])
        lxyz = jnp.sum(jnp.where(onehot[None, :, :], xyz_c, 0.0),
                       axis=2, keepdims=True)                          # [3,Gc,1]
        u = code_min >> shift
        return (lxyz, u, cur_dis, cur_code, vis, edge_dsq, edge_code)

    carry = lax.fori_loop(0, P - 1, round_body, carry0, unroll=unroll)
    edge_dsq, edge_code = carry[5], carry[6]

    # one vectorized sqrt per chunk (deferred out of the serial loop)
    edge_len = jnp.sqrt(edge_dsq)                                       # [Gc,P]
    mean_edge = jnp.sum(edge_len, axis=1, keepdims=True) * (1.0 / (P - 1))
    penal = edge_len > (alpha * mean_edge)
    dist_ref[0] = jnp.where(penal, edge_len, 0.0)
    assign_ref[0] = jnp.where(penal, edge_code & par_mask, -1)
    mean_ref[0] = mean_edge


def expansion_penalty(xyz, primitive_size: int, alpha: float):
    """Forward pass of expansionPenaltyModule.

    Args:
      xyz: [B, n, 3] float point clouds, n % primitive_size == 0.
    Returns:
      dist:            [B, n]  float32
      assignment:      [B, n]  int32   (parent index in [0, n) or -1)
      mean_mst_length: [B]     float32 (per-group mean MST edge length)
    """
    assert 2 <= primitive_size <= 512
    B, n, c = xyz.shape
    assert c == 3 and n % primitive_size == 0
    P = primitive_size
    G = n // P

    Gc = _pick_group_chunk(P, G, B)
    G_pad = ((G + Gc - 1) // Gc) * Gc
    num_chunks = G_pad // Gc

    # [B, n, 3] -> [B, 3, G_pad, P]: coords stacked on a leading axis, groups on
    # the sublane axis, points on the lane (fast) axis.  Padded groups are all
    # zeros and sliced off afterwards.
    x = jnp.transpose(xyz.astype(jnp.float32), (0, 2, 1)).reshape(B, 3, G, P)
    if G_pad != G:
        x = jnp.pad(x, ((0, 0), (0, 0), (0, G_pad - G), (0, 0)))

    unroll = (P - 1) if P <= 32 else (4 if P <= 128 else 2)
    kernel = functools.partial(_expansion_penalty_kernel,
                               primitive_size=P, alpha=float(alpha), unroll=unroll)

    dist_g, assign_g, mean_g = pl.pallas_call(
        kernel,
        out_shape=(
            jax.ShapeDtypeStruct((B, G_pad, P), jnp.float32),
            jax.ShapeDtypeStruct((B, G_pad, P), jnp.int32),
            jax.ShapeDtypeStruct((B, G_pad, 1), jnp.float32),
        ),
        grid=(B, num_chunks),
        in_specs=[pl.BlockSpec((1, 3, Gc, P), lambda b, g: (b, 0, g, 0))],
        out_specs=(
            pl.BlockSpec((1, Gc, P), lambda b, g: (b, g, 0)),
            pl.BlockSpec((1, Gc, P), lambda b, g: (b, g, 0)),
            pl.BlockSpec((1, Gc, 1), lambda b, g: (b, g, 0)),
        ),
        compiler_params=pltpu.CompilerParams(
            dimension_semantics=("parallel", "parallel")),
    )(x)

    dist = dist_g[:, :G, :].reshape(B, n)
    assign_local = assign_g[:, :G, :].reshape(B, n)
    group_off = (jnp.arange(n, dtype=jnp.int32) // P) * P
    assignment = jnp.where(assign_local >= 0, assign_local + group_off[None, :], -1)
    mean_mst_length = jnp.sum(mean_g[:, :G, 0], axis=1)
    return dist, assignment, mean_mst_length / G


def _reference_numpy(xyz, P, alpha):
    """Pure-numpy reference (Prim's MST per group, squared-distance relax)."""
    xyz = np.asarray(xyz, np.float32)
    B, n, _ = xyz.shape
    G = n // P
    dist = np.zeros((B, n), np.float32)
    assign = -np.ones((B, n), np.int32)
    mean_mst = np.zeros((B,), np.float32)
    for b in range(B):
        for g in range(G):
            pts = xyz[b, g * P:(g + 1) * P]
            vis = np.zeros(P, bool); vis[0] = True
            cur_dis = np.full(P, _BIG_SQ, np.float32)
            cur_ind = np.zeros(P, np.int32)
            edge_len = np.zeros(P, np.float32)
            edge_par = np.zeros(P, np.int32)
            last = 0
            for _ in range(P - 1):
                diff = pts - pts[last]
                dsq = (diff * diff).sum(-1).astype(np.float32)
                relax = (~vis) & (dsq < cur_dis)
                cur_dis = np.where(relax, dsq, cur_dis)
                cur_ind = np.where(relax, last, cur_ind)
                sel = np.where(vis, _BIG_SQ, cur_dis)
                u = int(np.argmin(sel))
                edge_len[u] = np.sqrt(sel[u])
                edge_par[u] = cur_ind[u]
                vis[u] = True
                last = u
            mean_edge = edge_len.sum() / (P - 1)
            mean_mst[b] += mean_edge
            pen = edge_len > alpha * mean_edge
            dist[b, g * P:(g + 1) * P] = np.where(pen, edge_len, 0.0)
            assign[b, g * P:(g + 1) * P] = np.where(pen, edge_par + g * P, -1)
    return dist, assign, mean_mst / G


def _check(B, n, primitive_size, alpha, seed):
    key = jax.random.PRNGKey(seed)
    xyz = jax.random.normal(key, (B, n, 3), dtype=jnp.float32)

    dist, assignment, mean_mst = expansion_penalty(xyz, primitive_size, alpha)
    dist, assignment, mean_mst = jax.block_until_ready((dist, assignment, mean_mst))

    assert dist.shape == (B, n) and dist.dtype == jnp.float32
    assert assignment.shape == (B, n) and assignment.dtype == jnp.int32
    assert mean_mst.shape == (B,) and mean_mst.dtype == jnp.float32

    ref_dist, ref_assign, ref_mean = _reference_numpy(np.asarray(xyz),
                                                      primitive_size, alpha)
    np.testing.assert_allclose(np.asarray(dist), ref_dist, rtol=1e-4, atol=1e-5)
    np.testing.assert_allclose(np.asarray(mean_mst), ref_mean, rtol=1e-4, atol=1e-6)
    assert np.array_equal(np.asarray(assignment), ref_assign)


if __name__ == "__main__":
    # Small case (G=4): full-unroll path + padded chunk.
    _check(B=2, n=64, primitive_size=16, alpha=1.5, seed=0)
    # B=1, G=16: chunk is split so the grid keeps >= 2 steps (TC occupancy).
    _check(B=1, n=512, primitive_size=32, alpha=1.5, seed=0)
    # P=64: fori_loop path with unroll=4.
    _check(B=1, n=256, primitive_size=64, alpha=1.5, seed=0)
    # Large-primitive path (P=512, Gc=8, unroll=2) — the realistic MSN config.
    _check(B=1, n=1024, primitive_size=512, alpha=1.5, seed=0)
    print("KERNEL_OK")
</pallas_src>

<mosaic_0001>
module attributes {stable_mosaic.version = 11 : i64} {
  func.func @_expansion_penalty_kernel(%arg0: i32, %arg1: i32, %arg2: memref<1x3x32x16xf32, #tpu.memory_space<vmem>>, %arg3: memref<1x32x16xf32, #tpu.memory_space<vmem>>, %arg4: memref<1x32x16xi32, #tpu.memory_space<vmem>>, %arg5: memref<1x32x1xf32, #tpu.memory_space<vmem>>) attributes {dimension_semantics = [#tpu.dimension_semantics<parallel>, #tpu.dimension_semantics<parallel>], iteration_bounds = array<i64: 2, 1>, scalar_prefetch = 0 : i64, scratch_operands = 0 : i64, tpu.core_type = #tpu.core_type<tc>, window_params = [{transform_indices = @transform_0, window_bounds = array<i64: 1, 3, 32, 16>}, {transform_indices = @transform_1, window_bounds = array<i64: 1, 32, 16>}, {transform_indices = @transform_2, window_bounds = array<i64: 1, 32, 16>}, {transform_indices = @transform_3, window_bounds = array<i64: 1, 32, 1>}]} {
    %c0 = arith.constant 0 : index
    %c0_0 = arith.constant 0 : index
    %c0_1 = arith.constant 0 : index
    %c0_2 = arith.constant 0 : index
    %0 = vector.load %arg2[%c0, %c0_0, %c0_1, %c0_2] : memref<1x3x32x16xf32, #tpu.memory_space<vmem>>, vector<1x3x32x16xf32>
    %1 = vector.shape_cast %0 : vector<1x3x32x16xf32> to vector<3x32x16xf32>
    %2 = tpu.iota {dimensions = array<i32: 1>} : vector<32x16xi32>
    %c4_i32 = arith.constant 4 : i32
    %3 = vector.broadcast %c4_i32 : i32 to vector<32x16xi32>
    %4 = arith.shli %2, %3 : vector<32x16xi32>
    %5 = vector.extract_strided_slice %1 {offsets = [0, 0, 0], sizes = [3, 32, 1], strides = [1, 1, 1]} : vector<3x32x16xf32> to vector<3x32x1xf32>
    %c0_i32 = arith.constant 0 : i32
    %6 = vector.broadcast %c0_i32 : i32 to vector<32x1xi32>
    %cst = arith.constant 1.000000e+30 : f32
    %7 = vector.broadcast %cst : f32 to vector<32x16xf32>
    %c0_i32_3 = arith.constant 0 : i32
    %8 = vector.broadcast %c0_i32_3 : i32 to vector<32x16xi32>
    %9 = arith.cmpi eq, %2, %8 : vector<32x16xi32>
    %10 = arith.extui %9 : vector<32x16xi1> to vector<32x16xi32>
    %cst_4 = arith.constant 0.000000e+00 : f32
    %11 = vector.broadcast %cst_4 : f32 to vector<32x16xf32>
    %c0_i32_5 = arith.constant 0 : i32
    %12 = vector.broadcast %c0_i32_5 : i32 to vector<32x16xi32>
    %c0_i32_6 = arith.constant 0 : i32
    %13 = vector.broadcast %5 : vector<3x32x1xf32> to vector<3x32x16xf32>
    %14 = arith.subf %1, %13 : vector<3x32x16xf32>
    %15 = vector.extract_strided_slice %14 {offsets = [0, 0, 0], sizes = [1, 32, 16], strides = [1, 1, 1]} : vector<3x32x16xf32> to vector<1x32x16xf32>
    %16 = vector.shape_cast %15 : vector<1x32x16xf32> to vector<32x16xf32>
    %17 = vector.extract_strided_slice %14 {offsets = [0, 0, 0], sizes = [1, 32, 16], strides = [1, 1, 1]} : vector<3x32x16xf32> to vector<1x32x16xf32>
    %18 = vector.shape_cast %17 : vector<1x32x16xf32> to vector<32x16xf32>
    %19 = arith.mulf %16, %18 : vector<32x16xf32>
    %20 = vector.extract_strided_slice %14 {offsets = [1, 0, 0], sizes = [1, 32, 16], strides = [1, 1, 1]} : vector<3x32x16xf32> to vector<1x32x16xf32>
    %21 = vector.shape_cast %20 : vector<1x32x16xf32> to vector<32x16xf32>
    %22 = vector.extract_strided_slice %14 {offsets = [1, 0, 0], sizes = [1, 32, 16], strides = [1, 1, 1]} : vector<3x32x16xf32> to vector<1x32x16xf32>
    %23 = vector.shape_cast %22 : vector<1x32x16xf32> to vector<32x16xf32>
    %24 = arith.mulf %21, %23 : vector<32x16xf32>
    %25 = arith.addf %19, %24 : vector<32x16xf32>
    %26 = vector.extract_strided_slice %14 {offsets = [2, 0, 0], sizes = [1, 32, 16], strides = [1, 1, 1]} : vector<3x32x16xf32> to vector<1x32x16xf32>
    %27 = vector.shape_cast %26 : vector<1x32x16xf32> to vector<32x16xf32>
    %28 = vector.extract_strided_slice %14 {offsets = [2, 0, 0], sizes = [1, 32, 16], strides = [1, 1, 1]} : vector<3x32x16xf32> to vector<1x32x16xf32>
    %29 = vector.shape_cast %28 : vector<1x32x16xf32> to vector<32x16xf32>
    %30 = arith.mulf %27, %29 : vector<32x16xf32>
    %31 = arith.addf %25, %30 : vector<32x16xf32>
    %c0_i32_7 = arith.constant 0 : i32
    %32 = vector.broadcast %c0_i32_7 : i32 to vector<32x16xi32>
    %33 = arith.cmpi eq, %10, %32 : vector<32x16xi32>
    %34 = arith.cmpf olt, %31, %7 : vector<32x16xf32>
    %35 = arith.andi %33, %34 : vector<32x16xi1>
    %36 = arith.select %35, %31, %7 : vector<32x16xi1>, vector<32x16xf32>
    %37 = vector.broadcast %6 : vector<32x1xi32> to vector<32x16xi32>
    %38 = arith.addi %4, %37 : vector<32x16xi32>
    %39 = arith.select %35, %38, %4 : vector<32x16xi1>, vector<32x16xi32>
    %cst_8 = arith.constant dense<0x7F800000> : vector<32xf32>
    %40 = vector.multi_reduction <minimumf>, %36, %cst_8 [1] : vector<32x16xf32> to vector<32xf32>
    %41 = vector.shape_cast %40 : vector<32xf32> to vector<32x1xf32>
    %42 = vector.broadcast %41 : vector<32x1xf32> to vector<32x16xf32>
    %43 = arith.cmpf oeq, %36, %42 : vector<32x16xf32>
    %c1073741823_i32 = arith.constant 1073741823 : i32
    %44 = vector.broadcast %c1073741823_i32 : i32 to vector<32x16xi32>
    %45 = arith.select %43, %39, %44 : vector<32x16xi1>, vector<32x16xi32>
    %cst_9 = arith.constant dense<2147483647> : vector<32xi32>
    %46 = vector.multi_reduction <minsi>, %45, %cst_9 [1] : vector<32x16xi32> to vector<32xi32>
    %47 = vector.shape_cast %46 : vector<32xi32> to vector<32x1xi32>
    %48 = vector.broadcast %47 : vector<32x1xi32> to vector<32x16xi32>
    %49 = arith.cmpi eq, %39, %48 : vector<32x16xi32>
    %c1_i32 = arith.constant 1 : i32
    %50 = vector.broadcast %c1_i32 : i32 to vector<32x16xi32>
    %51 = arith.select %49, %50, %10 : vector<32x16xi1>, vector<32x16xi32>
    %52 = arith.select %49, %36, %11 : vector<32x16xi1>, vector<32x16xf32>
    %53 = arith.select %49, %39, %12 : vector<32x16xi1>, vector<32x16xi32>
    %cst_10 = arith.constant 1.000000e+30 : f32
    %54 = vector.broadcast %cst_10 : f32 to vector<32x16xf32>
    %55 = arith.select %49, %54, %36 : vector<32x16xi1>, vector<32x16xf32>
    %56 = vector.shape_cast %49 : vector<32x16xi1> to vector<1x32x16xi1>
    %cst_11 = arith.constant 0.000000e+00 : f32
    %57 = vector.shape_cast %56 : vector<1x32x16xi1> to vector<1x32x16xi1>
    %58 = vector.broadcast %57 : vector<1x32x16xi1> to vector<3x32x16xi1>
    %59 = vector.broadcast %cst_11 : f32 to vector<3x32x16xf32>
    %60 = arith.select %58, %1, %59 : vector<3x32x16xi1>, vector<3x32x16xf32>
    %cst_12 = arith.constant dense<0.000000e+00> : vector<3x32xf32>
    %61 = vector.multi_reduction <add>, %60, %cst_12 [2] : vector<3x32x16xf32> to vector<3x32xf32>
    %62 = vector.shape_cast %61 : vector<3x32xf32> to vector<3x32x1xf32>
    %c4_i32_13 = arith.constant 4 : i32
    %63 = vector.broadcast %c4_i32_13 : i32 to vector<32x1xi32>
    %64 = arith.shrsi %47, %63 : vector<32x1xi32>
    %c1_i32_14 = arith.constant 1 : i32
    %65 = vector.broadcast %62 : vector<3x32x1xf32> to vector<3x32x16xf32>
    %66 = arith.subf %1, %65 : vector<3x32x16xf32>
    %67 = vector.extract_strided_slice %66 {offsets = [0, 0, 0], sizes = [1, 32, 16], strides = [1, 1, 1]} : vector<3x32x16xf32> to vector<1x32x16xf32>
    %68 = vector.shape_cast %67 : vector<1x32x16xf32> to vector<32x16xf32>
    %69 = vector.extract_strided_slice %66 {offsets = [0, 0, 0], sizes = [1, 32, 16], strides = [1, 1, 1]} : vector<3x32x16xf32> to vector<1x32x16xf32>
    %70 = vector.shape_cast %69 : vector<1x32x16xf32> to vector<32x16xf32>
    %71 = arith.mulf %68, %70 : vector<32x16xf32>
    %72 = vector.extract_strided_slice %66 {offsets = [1, 0, 0], sizes = [1, 32, 16], strides = [1, 1, 1]} : vector<3x32x16xf32> to vector<1x32x16xf32>
    %73 = vector.shape_cast %72 : vector<1x32x16xf32> to vector<32x16xf32>
    %74 = vector.extract_strided_slice %66 {offsets = [1, 0, 0], sizes = [1, 32, 16], strides = [1, 1, 1]} : vector<3x32x16xf32> to vector<1x32x16xf32>
    %75 = vector.shape_cast %74 : vector<1x32x16xf32> to vector<32x16xf32>
    %76 = arith.mulf %73, %75 : vector<32x16xf32>
    %77 = arith.addf %71, %76 : vector<32x16xf32>
    %78 = vector.extract_strided_slice %66 {offsets = [2, 0, 0], sizes = [1, 32, 16], strides = [1, 1, 1]} : vector<3x32x16xf32> to vector<1x32x16xf32>
    %79 = vector.shape_cast %78 : vector<1x32x16xf32> to vector<32x16xf32>
    %80 = vector.extract_strided_slice %66 {offsets = [2, 0, 0], sizes = [1, 32, 16], strides = [1, 1, 1]} : vector<3x32x16xf32> to vector<1x32x16xf32>
    %81 = vector.shape_cast %80 : vector<1x32x16xf32> to vector<32x16xf32>
    %82 = arith.mulf %79, %81 : vector<32x16xf32>
    %83 = arith.addf %77, %82 : vector<32x16xf32>
    %c0_i32_15 = arith.constant 0 : i32
    %84 = vector.broadcast %c0_i32_15 : i32 to vector<32x16xi32>
    %85 = arith.cmpi eq, %51, %84 : vector<32x16xi32>
    %86 = arith.cmpf olt, %83, %55 : vector<32x16xf32>
    %87 = arith.andi %85, %86 : vector<32x16xi1>
    %88 = arith.select %87, %83, %55 : vector<32x16xi1>, vector<32x16xf32>
    %89 = vector.broadcast %64 : vector<32x1xi32> to vector<32x16xi32>
    %90 = arith.addi %4, %89 : vector<32x16xi32>
    %91 = arith.select %87, %90, %39 : vector<32x16xi1>, vector<32x16xi32>
    %cst_16 = arith.constant dense<0x7F800000> : vector<32xf32>
    %92 = vector.multi_reduction <minimumf>, %88, %cst_16 [1] : vector<32x16xf32> to vector<32xf32>
    %93 = vector.shape_cast %92 : vector<32xf32> to vector<32x1xf32>
    %94 = vector.broadcast %93 : vector<32x1xf32> to vector<32x16xf32>
    %95 = arith.cmpf oeq, %88, %94 : vector<32x16xf32>
    %c1073741823_i32_17 = arith.constant 1073741823 : i32
    %96 = vector.broadcast %c1073741823_i32_17 : i32 to vector<32x16xi32>
    %97 = arith.select %95, %91, %96 : vector<32x16xi1>, vector<32x16xi32>
    %cst_18 = arith.constant dense<2147483647> : vector<32xi32>
    %98 = vector.multi_reduction <minsi>, %97, %cst_18 [1] : vector<32x16xi32> to vector<32xi32>
    %99 = vector.shape_cast %98 : vector<32xi32> to vector<32x1xi32>
    %100 = vector.broadcast %99 : vector<32x1xi32> to vector<32x16xi32>
    %101 = arith.cmpi eq, %91, %100 : vector<32x16xi32>
    %c1_i32_19 = arith.constant 1 : i32
    %102 = vector.broadcast %c1_i32_19 : i32 to vector<32x16xi32>
    %103 = arith.select %101, %102, %51 : vector<32x16xi1>, vector<32x16xi32>
    %104 = arith.select %101, %88, %52 : vector<32x16xi1>, vector<32x16xf32>
    %105 = arith.select %101, %91, %53 : vector<32x16xi1>, vector<32x16xi32>
    %cst_20 = arith.constant 1.000000e+30 : f32
    %106 = vector.broadcast %cst_20 : f32 to vector<32x16xf32>
    %107 = arith.select %101, %106, %88 : vector<32x16xi1>, vector<32x16xf32>
    %108 = vector.shape_cast %101 : vector<32x16xi1> to vector<1x32x16xi1>
    %cst_21 = arith.constant 0.000000e+00 : f32
    %109 = vector.shape_cast %108 : vector<1x32x16xi1> to vector<1x32x16xi1>
    %110 = vector.broadcast %109 : vector<1x32x16xi1> to vector<3x32x16xi1>
    %111 = vector.broadcast %cst_21 : f32 to vector<3x32x16xf32>
    %112 = arith.select %110, %1, %111 : vector<3x32x16xi1>, vector<3x32x16xf32>
    %cst_22 = arith.constant dense<0.000000e+00> : vector<3x32xf32>
    %113 = vector.multi_reduction <add>, %112, %cst_22 [2] : vector<3x32x16xf32> to vector<3x32xf32>
    %114 = vector.shape_cast %113 : vector<3x32xf32> to vector<3x32x1xf32>
    %c4_i32_23 = arith.constant 4 : i32
    %115 = vector.broadcast %c4_i32_23 : i32 to vector<32x1xi32>
    %116 = arith.shrsi %99, %115 : vector<32x1xi32>
    %c2_i32 = arith.constant 2 : i32
    %117 = vector.broadcast %114 : vector<3x32x1xf32> to vector<3x32x16xf32>
    %118 = arith.subf %1, %117 : vector<3x32x16xf32>
    %119 = vector.extract_strided_slice %118 {offsets = [0, 0, 0], sizes = [1, 32, 16], strides = [1, 1, 1]} : vector<3x32x16xf32> to vector<1x32x16xf32>
    %120 = vector.shape_cast %119 : vector<1x32x16xf32> to vector<32x16xf32>
    %121 = vector.extract_strided_slice %118 {offsets = [0, 0, 0], sizes = [1, 32, 16], strides = [1, 1, 1]} : vector<3x32x16xf32> to vector<1x32x16xf32>
    %122 = vector.shape_cast %121 : vector<1x32x16xf32> to vector<32x16xf32>
    %123 = arith.mulf %120, %122 : vector<32x16xf32>
    %124 = vector.extract_strided_slice %118 {offsets = [1, 0, 0], sizes = [1, 32, 16], strides = [1, 1, 1]} : vector<3x32x16xf32> to vector<1x32x16xf32>
    %125 = vector.shape_cast %124 : vector<1x32x16xf32> to vector<32x16xf32>
    %126 = vector.extract_strided_slice %118 {offsets = [1, 0, 0], sizes = [1, 32, 16], strides = [1, 1, 1]} : vector<3x32x16xf32> to vector<1x32x16xf32>
    %127 = vector.shape_cast %126 : vector<1x32x16xf32> to vector<32x16xf32>
    %128 = arith.mulf %125, %127 : vector<32x16xf32>
    %129 = arith.addf %123, %128 : vector<32x16xf32>
    %130 = vector.extract_strided_slice %118 {offsets = [2, 0, 0], sizes = [1, 32, 16], strides = [1, 1, 1]} : vector<3x32x16xf32> to vector<1x32x16xf32>
    %131 = vector.shape_cast %130 : vector<1x32x16xf32> to vector<32x16xf32>
    %132 = vector.extract_strided_slice %118 {offsets = [2, 0, 0], sizes = [1, 32, 16], strides = [1, 1, 1]} : vector<3x32x16xf32> to vector<1x32x16xf32>
    %133 = vector.shape_cast %132 : vector<1x32x16xf32> to vector<32x16xf32>
    %134 = arith.mulf %131, %133 : vector<32x16xf32>
    %135 = arith.addf %129, %134 : vector<32x16xf32>
    %c0_i32_24 = arith.constant 0 : i32
    %136 = vector.broadcast %c0_i32_24 : i32 to vector<32x16xi32>
    %137 = arith.cmpi eq, %103, %136 : vector<32x16xi32>
    %138 = arith.cmpf olt, %135, %107 : vector<32x16xf32>
    %139 = arith.andi %137, %138 : vector<32x16xi1>
    %140 = arith.select %139, %135, %107 : vector<32x16xi1>, vector<32x16xf32>
    %141 = vector.broadcast %116 : vector<32x1xi32> to vector<32x16xi32>
    %142 = arith.addi %4, %141 : vector<32x16xi32>
    %143 = arith.select %139, %142, %91 : vector<32x16xi1>, vector<32x16xi32>
    %cst_25 = arith.constant dense<0x7F800000> : vector<32xf32>
    %144 = vector.multi_reduction <minimumf>, %140, %cst_25 [1] : vector<32x16xf32> to vector<32xf32>
    %145 = vector.shape_cast %144 : vector<32xf32> to vector<32x1xf32>
    %146 = vector.broadcast %145 : vector<32x1xf32> to vector<32x16xf32>
    %147 = arith.cmpf oeq, %140, %146 : vector<32x16xf32>
    %c1073741823_i32_26 = arith.constant 1073741823 : i32
    %148 = vector.broadcast %c1073741823_i32_26 : i32 to vector<32x16xi32>
    %149 = arith.select %147, %143, %148 : vector<32x16xi1>, vector<32x16xi32>
    %cst_27 = arith.constant dense<2147483647> : vector<32xi32>
    %150 = vector.multi_reduction <minsi>, %149, %cst_27 [1] : vector<32x16xi32> to vector<32xi32>
    %151 = vector.shape_cast %150 : vector<32xi32> to vector<32x1xi32>
    %152 = vector.broadcast %151 : vector<32x1xi32> to vector<32x16xi32>
    %153 = arith.cmpi eq, %143, %152 : vector<32x16xi32>
    %c1_i32_28 = arith.constant 1 : i32
    %154 = vector.broadcast %c1_i32_28 : i32 to vector<32x16xi32>
    %155 = arith.select %153, %154, %103 : vector<32x16xi1>, vector<32x16xi32>
    %156 = arith.select %153, %140, %104 : vector<32x16xi1>, vector<32x16xf32>
    %157 = arith.select %153, %143, %105 : vector<32x16xi1>, vector<32x16xi32>
    %cst_29 = arith.constant 1.000000e+30 : f32
    %158 = vector.broadcast %cst_29 : f32 to vector<32x16xf32>
    %159 = arith.select %153, %158, %140 : vector<32x16xi1>, vector<32x16xf32>
    %160 = vector.shape_cast %153 : vector<32x16xi1> to vector<1x32x16xi1>
    %cst_30 = arith.constant 0.000000e+00 : f32
    %161 = vector.shape_cast %160 : vector<1x32x16xi1> to vector<1x32x16xi1>
    %162 = vector.broadcast %161 : vector<1x32x16xi1> to vector<3x32x16xi1>
    %163 = vector.broadcast %cst_30 : f32 to vector<3x32x16xf32>
    %164 = arith.select %162, %1, %163 : vector<3x32x16xi1>, vector<3x32x16xf32>
    %cst_31 = arith.constant dense<0.000000e+00> : vector<3x32xf32>
    %165 = vector.multi_reduction <add>, %164, %cst_31 [2] : vector<3x32x16xf32> to vector<3x32xf32>
    %166 = vector.shape_cast %165 : vector<3x32xf32> to vector<3x32x1xf32>
    %c4_i32_32 = arith.constant 4 : i32
    %167 = vector.broadcast %c4_i32_32 : i32 to vector<32x1xi32>
    %168 = arith.shrsi %151, %167 : vector<32x1xi32>
    %c3_i32 = arith.constant 3 : i32
    %169 = vector.broadcast %166 : vector<3x32x1xf32> to vector<3x32x16xf32>
    %170 = arith.subf %1, %169 : vector<3x32x16xf32>
    %171 = vector.extract_strided_slice %170 {offsets = [0, 0, 0], sizes = [1, 32, 16], strides = [1, 1, 1]} : vector<3x32x16xf32> to vector<1x32x16xf32>
    %172 = vector.shape_cast %171 : vector<1x32x16xf32> to vector<32x16xf32>
    %173 = vector.extract_strided_slice %170 {offsets = [0, 0, 0], sizes = [1, 32, 16], strides = [1, 1, 1]} : vector<3x32x16xf32> to vector<1x32x16xf32>
    %174 = vector.shape_cast %173 : vector<1x32x16xf32> to vector<32x16xf32>
    %175 = arith.mulf %172, %174 : vector<32x16xf32>
    %176 = vector.extract_strided_slice %170 {offsets = [1, 0, 0], sizes = [1, 32, 16], strides = [1, 1, 1]} : vector<3x32x16xf32> to vector<1x32x16xf32>
    %177 = vector.shape_cast %176 : vector<1x32x16xf32> to vector<32x16xf32>
    %178 = vector.extract_strided_slice %170 {offsets = [1, 0, 0], sizes = [1, 32, 16], strides = [1, 1, 1]} : vector<3x32x16xf32> to vector<1x32x16xf32>
    %179 = vector.shape_cast %178 : vector<1x32x16xf32> to vector<32x16xf32>
    %180 = arith.mulf %177, %179 : vector<32x16xf32>
    %181 = arith.addf %175, %180 : vector<32x16xf32>
    %182 = vector.extract_strided_slice %170 {offsets = [2, 0, 0], sizes = [1, 32, 16], strides = [1, 1, 1]} : vector<3x32x16xf32> to vector<1x32x16xf32>
    %183 = vector.shape_cast %182 : vector<1x32x16xf32> to vector<32x16xf32>
    %184 = vector.extract_strided_slice %170 {offsets = [2, 0, 0], sizes = [1, 32, 16], strides = [1, 1, 1]} : vector<3x32x16xf32> to vector<1x32x16xf32>
    %185 = vector.shape_cast %184 : vector<1x32x16xf32> to vector<32x16xf32>
    %186 = arith.mulf %183, %185 : vector<32x16xf32>
    %187 = arith.addf %181, %186 : vector<32x16xf32>
    %c0_i32_33 = arith.constant 0 : i32
    %188 = vector.broadcast %c0_i32_33 : i32 to vector<32x16xi32>
    %189 = arith.cmpi eq, %155, %188 : vector<32x16xi32>
    %190 = arith.cmpf olt, %187, %159 : vector<32x16xf32>
    %191 = arith.andi %189, %190 : vector<32x16xi1>
    %192 = arith.select %191, %187, %159 : vector<32x16xi1>, vector<32x16xf32>
    %193 = vector.broadcast %168 : vector<32x1xi32> to vector<32x16xi32>
    %194 = arith.addi %4, %193 : vector<32x16xi32>
    %195 = arith.select %191, %194, %143 : vector<32x16xi1>, vector<32x16xi32>
    %cst_34 = arith.constant dense<0x7F800000> : vector<32xf32>
    %196 = vector.multi_reduction <minimumf>, %192, %cst_34 [1] : vector<32x16xf32> to vector<32xf32>
    %197 = vector.shape_cast %196 : vector<32xf32> to vector<32x1xf32>
    %198 = vector.broadcast %197 : vector<32x1xf32> to vector<32x16xf32>
    %199 = arith.cmpf oeq, %192, %198 : vector<32x16xf32>
    %c1073741823_i32_35 = arith.constant 1073741823 : i32
    %200 = vector.broadcast %c1073741823_i32_35 : i32 to vector<32x16xi32>
    %201 = arith.select %199, %195, %200 : vector<32x16xi1>, vector<32x16xi32>
    %cst_36 = arith.constant dense<2147483647> : vector<32xi32>
    %202 = vector.multi_reduction <minsi>, %201, %cst_36 [1] : vector<32x16xi32> to vector<32xi32>
    %203 = vector.shape_cast %202 : vector<32xi32> to vector<32x1xi32>
    %204 = vector.broadcast %203 : vector<32x1xi32> to vector<32x16xi32>
    %205 = arith.cmpi eq, %195, %204 : vector<32x16xi32>
    %c1_i32_37 = arith.constant 1 : i32
    %206 = vector.broadcast %c1_i32_37 : i32 to vector<32x16xi32>
    %207 = arith.select %205, %206, %155 : vector<32x16xi1>, vector<32x16xi32>
    %208 = arith.select %205, %192, %156 : vector<32x16xi1>, vector<32x16xf32>
    %209 = arith.select %205, %195, %157 : vector<32x16xi1>, vector<32x16xi32>
    %cst_38 = arith.constant 1.000000e+30 : f32
    %210 = vector.broadcast %cst_38 : f32 to vector<32x16xf32>
    %211 = arith.select %205, %210, %192 : vector<32x16xi1>, vector<32x16xf32>
    %212 = vector.shape_cast %205 : vector<32x16xi1> to vector<1x32x16xi1>
    %cst_39 = arith.constant 0.000000e+00 : f32
    %213 = vector.shape_cast %212 : vector<1x32x16xi1> to vector<1x32x16xi1>
    %214 = vector.broadcast %213 : vector<1x32x16xi1> to vector<3x32x16xi1>
    %215 = vector.broadcast %cst_39 : f32 to vector<3x32x16xf32>
    %216 = arith.select %214, %1, %215 : vector<3x32x16xi1>, vector<3x32x16xf32>
    %cst_40 = arith.constant dense<0.000000e+00> : vector<3x32xf32>
    %217 = vector.multi_reduction <add>, %216, %cst_40 [2] : vector<3x32x16xf32> to vector<3x32xf32>
    %218 = vector.shape_cast %217 : vector<3x32xf32> to vector<3x32x1xf32>
    %c4_i32_41 = arith.constant 4 : i32
    %219 = vector.broadcast %c4_i32_41 : i32 to vector<32x1xi32>
    %220 = arith.shrsi %203, %219 : vector<32x1xi32>
    %c4_i32_42 = arith.constant 4 : i32
    %221 = vector.broadcast %218 : vector<3x32x1xf32> to vector<3x32x16xf32>
    %222 = arith.subf %1, %221 : vector<3x32x16xf32>
    %223 = vector.extract_strided_slice %222 {offsets = [0, 0, 0], sizes = [1, 32, 16], strides = [1, 1, 1]} : vector<3x32x16xf32> to vector<1x32x16xf32>
    %224 = vector.shape_cast %223 : vector<1x32x16xf32> to vector<32x16xf32>
    %225 = vector.extract_strided_slice %222 {offsets = [0, 0, 0], sizes = [1, 32, 16], strides = [1, 1, 1]} : vector<3x32x16xf32> to vector<1x32x16xf32>
    %226 = vector.shape_cast %225 : vector<1x32x16xf32> to vector<32x16xf32>
    %227 = arith.mulf %224, %226 : vector<32x16xf32>
    %228 = vector.extract_strided_slice %222 {offsets = [1, 0, 0], sizes = [1, 32, 16], strides = [1, 1, 1]} : vector<3x32x16xf32> to vector<1x32x16xf32>
    %229 = vector.shape_cast %228 : vector<1x32x16xf32> to vector<32x16xf32>
    %230 = vector.extract_strided_slice %222 {offsets = [1, 0, 0], sizes = [1, 32, 16], strides = [1, 1, 1]} : vector<3x32x16xf32> to vector<1x32x16xf32>
    %231 = vector.shape_cast %230 : vector<1x32x16xf32> to vector<32x16xf32>
    %232 = arith.mulf %229, %231 : vector<32x16xf32>
    %233 = arith.addf %227, %232 : vector<32x16xf32>
    %234 = vector.extract_strided_slice %222 {offsets = [2, 0, 0], sizes = [1, 32, 16], strides = [1, 1, 1]} : vector<3x32x16xf32> to vector<1x32x16xf32>
    %235 = vector.shape_cast %234 : vector<1x32x16xf32> to vector<32x16xf32>
    %236 = vector.extract_strided_slice %222 {offsets = [2, 0, 0], sizes = [1, 32, 16], strides = [1, 1, 1]} : vector<3x32x16xf32> to vector<1x32x16xf32>
    %237 = vector.shape_cast %236 : vector<1x32x16xf32> to vector<32x16xf32>
    %238 = arith.mulf %235, %237 : vector<32x16xf32>
    %239 = arith.addf %233, %238 : vector<32x16xf32>
    %c0_i32_43 = arith.constant 0 : i32
    %240 = vector.broadcast %c0_i32_43 : i32 to vector<32x16xi32>
    %241 = arith.cmpi eq, %207, %240 : vector<32x16xi32>
    %242 = arith.cmpf olt, %239, %211 : vector<32x16xf32>
    %243 = arith.andi %241, %242 : vector<32x16xi1>
    %244 = arith.select %243, %239, %211 : vector<32x16xi1>, vector<32x16xf32>
    %245 = vector.broadcast %220 : vector<32x1xi32> to vector<32x16xi32>
    %246 = arith.addi %4, %245 : vector<32x16xi32>
    %247 = arith.select %243, %246, %195 : vector<32x16xi1>, vector<32x16xi32>
    %cst_44 = arith.constant dense<0x7F800000> : vector<32xf32>
    %248 = vector.multi_reduction <minimumf>, %244, %cst_44 [1] : vector<32x16xf32> to vector<32xf32>
    %249 = vector.shape_cast %248 : vector<32xf32> to vector<32x1xf32>
    %250 = vector.broadcast %249 : vector<32x1xf32> to vector<32x16xf32>
    %251 = arith.cmpf oeq, %244, %250 : vector<32x16xf32>
    %c1073741823_i32_45 = arith.constant 1073741823 : i32
    %252 = vector.broadcast %c1073741823_i32_45 : i32 to vector<32x16xi32>
    %253 = arith.select %251, %247, %252 : vector<32x16xi1>, vector<32x16xi32>
    %cst_46 = arith.constant dense<2147483647> : vector<32xi32>
    %254 = vector.multi_reduction <minsi>, %253, %cst_46 [1] : vector<32x16xi32> to vector<32xi32>
    %255 = vector.shape_cast %254 : vector<32xi32> to vector<32x1xi32>
    %256 = vector.broadcast %255 : vector<32x1xi32> to vector<32x16xi32>
    %257 = arith.cmpi eq, %247, %256 : vector<32x16xi32>
    %c1_i32_47 = arith.constant 1 : i32
    %258 = vector.broadcast %c1_i32_47 : i32 to vector<32x16xi32>
    %259 = arith.select %257, %258, %207 : vector<32x16xi1>, vector<32x16xi32>
    %260 = arith.select %257, %244, %208 : vector<32x16xi1>, vector<32x16xf32>
    %261 = arith.select %257, %247, %209 : vector<32x16xi1>, vector<32x16xi32>
    %cst_48 = arith.constant 1.000000e+30 : f32
    %262 = vector.broadcast %cst_48 : f32 to vector<32x16xf32>
    %263 = arith.select %257, %262, %244 : vector<32x16xi1>, vector<32x16xf32>
    %264 = vector.shape_cast %257 : vector<32x16xi1> to vector<1x32x16xi1>
    %cst_49 = arith.constant 0.000000e+00 : f32
    %265 = vector.shape_cast %264 : vector<1x32x16xi1> to vector<1x32x16xi1>
    %266 = vector.broadcast %265 : vector<1x32x16xi1> to vector<3x32x16xi1>
    %267 = vector.broadcast %cst_49 : f32 to vector<3x32x16xf32>
    %268 = arith.select %266, %1, %267 : vector<3x32x16xi1>, vector<3x32x16xf32>
    %cst_50 = arith.constant dense<0.000000e+00> : vector<3x32xf32>
    %269 = vector.multi_reduction <add>, %268, %cst_50 [2] : vector<3x32x16xf32> to vector<3x32xf32>
    %270 = vector.shape_cast %269 : vector<3x32xf32> to vector<3x32x1xf32>
    %c4_i32_51 = arith.constant 4 : i32
    %271 = vector.broadcast %c4_i32_51 : i32 to vector<32x1xi32>
    %272 = arith.shrsi %255, %271 : vector<32x1xi32>
    %c5_i32 = arith.constant 5 : i32
    %273 = vector.broadcast %270 : vector<3x32x1xf32> to vector<3x32x16xf32>
    %274 = arith.subf %1, %273 : vector<3x32x16xf32>
    %275 = vector.extract_strided_slice %274 {offsets = [0, 0, 0], sizes = [1, 32, 16], strides = [1, 1, 1]} : vector<3x32x16xf32> to vector<1x32x16xf32>
    %276 = vector.shape_cast %275 : vector<1x32x16xf32> to vector<32x16xf32>
    %277 = vector.extract_strided_slice %274 {offsets = [0, 0, 0], sizes = [1, 32, 16], strides = [1, 1, 1]} : vector<3x32x16xf32> to vector<1x32x16xf32>
    %278 = vector.shape_cast %277 : vector<1x32x16xf32> to vector<32x16xf32>
    %279 = arith.mulf %276, %278 : vector<32x16xf32>
    %280 = vector.extract_strided_slice %274 {offsets = [1, 0, 0], sizes = [1, 32, 16], strides = [1, 1, 1]} : vector<3x32x16xf32> to vector<1x32x16xf32>
    %281 = vector.shape_cast %280 : vector<1x32x16xf32> to vector<32x16xf32>
    %282 = vector.extract_strided_slice %274 {offsets = [1, 0, 0], sizes = [1, 32, 16], strides = [1, 1, 1]} : vector<3x32x16xf32> to vector<1x32x16xf32>
    %283 = vector.shape_cast %282 : vector<1x32x16xf32> to vector<32x16xf32>
    %284 = arith.mulf %281, %283 : vector<32x16xf32>
    %285 = arith.addf %279, %284 : vector<32x16xf32>
    %286 = vector.extract_strided_slice %274 {offsets = [2, 0, 0], sizes = [1, 32, 16], strides = [1, 1, 1]} : vector<3x32x16xf32> to vector<1x32x16xf32>
    %287 = vector.shape_cast %286 : vector<1x32x16xf32> to vector<32x16xf32>
    %288 = vector.extract_strided_slice %274 {offsets = [2, 0, 0], sizes = [1, 32, 16], strides = [1, 1, 1]} : vector<3x32x16xf32> to vector<1x32x16xf32>
    %289 = vector.shape_cast %288 : vector<1x32x16xf32> to vector<32x16xf32>
    %290 = arith.mulf %287, %289 : vector<32x16xf32>
    %291 = arith.addf %285, %290 : vector<32x16xf32>
    %c0_i32_52 = arith.constant 0 : i32
    %292 = vector.broadcast %c0_i32_52 : i32 to vector<32x16xi32>
    %293 = arith.cmpi eq, %259, %292 : vector<32x16xi32>
    %294 = arith.cmpf olt, %291, %263 : vector<32x16xf32>
    %295 = arith.andi %293, %294 : vector<32x16xi1>
    %296 = arith.select %295, %291, %263 : vector<32x16xi1>, vector<32x16xf32>
    %297 = vector.broadcast %272 : vector<32x1xi32> to vector<32x16xi32>
    %298 = arith.addi %4, %297 : vector<32x16xi32>
    %299 = arith.select %295, %298, %247 : vector<32x16xi1>, vector<32x16xi32>
    %cst_53 = arith.constant dense<0x7F800000> : vector<32xf32>
    %300 = vector.multi_reduction <minimumf>, %296, %cst_53 [1] : vector<32x16xf32> to vector<32xf32>
    %301 = vector.shape_cast %300 : vector<32xf32> to vector<32x1xf32>
    %302 = vector.broadcast %301 : vector<32x1xf32> to vector<32x16xf32>
    %303 = arith.cmpf oeq, %296, %302 : vector<32x16xf32>
    %c1073741823_i32_54 = arith.constant 1073741823 : i32
    %304 = vector.broadcast %c1073741823_i32_54 : i32 to vector<32x16xi32>
    %305 = arith.select %303, %299, %304 : vector<32x16xi1>, vector<32x16xi32>
    %cst_55 = arith.constant dense<2147483647> : vector<32xi32>
    %306 = vector.multi_reduction <minsi>, %305, %cst_55 [1] : vector<32x16xi32> to vector<32xi32>
    %307 = vector.shape_cast %306 : vector<32xi32> to vector<32x1xi32>
    %308 = vector.broadcast %307 : vector<32x1xi32> to vector<32x16xi32>
    %309 = arith.cmpi eq, %299, %308 : vector<32x16xi32>
    %c1_i32_56 = arith.constant 1 : i32
    %310 = vector.broadcast %c1_i32_56 : i32 to vector<32x16xi32>
    %311 = arith.select %309, %310, %259 : vector<32x16xi1>, vector<32x16xi32>
    %312 = arith.select %309, %296, %260 : vector<32x16xi1>, vector<32x16xf32>
    %313 = arith.select %309, %299, %261 : vector<32x16xi1>, vector<32x16xi32>
    %cst_57 = arith.constant 1.000000e+30 : f32
    %314 = vector.broadcast %cst_57 : f32 to vector<32x16xf32>
    %315 = arith.select %309, %314, %296 : vector<32x16xi1>, vector<32x16xf32>
    %316 = vector.shape_cast %309 : vector<32x16xi1> to vector<1x32x16xi1>
    %cst_58 = arith.constant 0.000000e+00 : f32
    %317 = vector.shape_cast %316 : vector<1x32x16xi1> to vector<1x32x16xi1>
    %318 = vector.broadcast %317 : vector<1x32x16xi1> to vector<3x32x16xi1>
    %319 = vector.broadcast %cst_58 : f32 to vector<3x32x16xf32>
    %320 = arith.select %318, %1, %319 : vector<3x32x16xi1>, vector<3x32x16xf32>
    %cst_59 = arith.constant dense<0.000000e+00> : vector<3x32xf32>
    %321 = vector.multi_reduction <add>, %320, %cst_59 [2] : vector<3x32x16xf32> to vector<3x32xf32>
    %322 = vector.shape_cast %321 : vector<3x32xf32> to vector<3x32x1xf32>
    %c4_i32_60 = arith.constant 4 : i32
    %323 = vector.broadcast %c4_i32_60 : i32 to vector<32x1xi32>
    %324 = arith.shrsi %307, %323 : vector<32x1xi32>
    %c6_i32 = arith.constant 6 : i32
    %325 = vector.broadcast %322 : vector<3x32x1xf32> to vector<3x32x16xf32>
    %326 = arith.subf %1, %325 : vector<3x32x16xf32>
    %327 = vector.extract_strided_slice %326 {offsets = [0, 0, 0], sizes = [1, 32, 16], strides = [1, 1, 1]} : vector<3x32x16xf32> to vector<1x32x16xf32>
    %328 = vector.shape_cast %327 : vector<1x32x16xf32> to vector<32x16xf32>
    %329 = vector.extract_strided_slice %326 {offsets = [0, 0, 0], sizes = [1, 32, 16], strides = [1, 1, 1]} : vector<3x32x16xf32> to vector<1x32x16xf32>
    %330 = vector.shape_cast %329 : vector<1x32x16xf32> to vector<32x16xf32>
    %331 = arith.mulf %328, %330 : vector<32x16xf32>
    %332 = vector.extract_strided_slice %326 {offsets = [1, 0, 0], sizes = [1, 32, 16], strides = [1, 1, 1]} : vector<3x32x16xf32> to vector<1x32x16xf32>
    %333 = vector.shape_cast %332 : vector<1x32x16xf32> to vector<32x16xf32>
    %334 = vector.extract_strided_slice %326 {offsets = [1, 0, 0], sizes = [1, 32, 16], strides = [1, 1, 1]} : vector<3x32x16xf32> to vector<1x32x16xf32>
    %335 = vector.shape_cast %334 : vector<1x32x16xf32> to vector<32x16xf32>
    %336 = arith.mulf %333, %335 : vector<32x16xf32>
    %337 = arith.addf %331, %336 : vector<32x16xf32>
    %338 = vector.extract_strided_slice %326 {offsets = [2, 0, 0], sizes = [1, 32, 16], strides = [1, 1, 1]} : vector<3x32x16xf32> to vector<1x32x16xf32>
    %339 = vector.shape_cast %338 : vector<1x32x16xf32> to vector<32x16xf32>
    %340 = vector.extract_strided_slice %326 {offsets = [2, 0, 0], sizes = [1, 32, 16], strides = [1, 1, 1]} : vector<3x32x16xf32> to vector<1x32x16xf32>
    %341 = vector.shape_cast %340 : vector<1x32x16xf32> to vector<32x16xf32>
    %342 = arith.mulf %339, %341 : vector<32x16xf32>
    %343 = arith.addf %337, %342 : vector<32x16xf32>
    %c0_i32_61 = arith.constant 0 : i32
    %344 = vector.broadcast %c0_i32_61 : i32 to vector<32x16xi32>
    %345 = arith.cmpi eq, %311, %344 : vector<32x16xi32>
    %346 = arith.cmpf olt, %343, %315 : vector<32x16xf32>
    %347 = arith.andi %345, %346 : vector<32x16xi1>
    %348 = arith.select %347, %343, %315 : vector<32x16xi1>, vector<32x16xf32>
    %349 = vector.broadcast %324 : vector<32x1xi32> to vector<32x16xi32>
    %350 = arith.addi %4, %349 : vector<32x16xi32>
    %351 = arith.select %347, %350, %299 : vector<32x16xi1>, vector<32x16xi32>
    %cst_62 = arith.constant dense<0x7F800000> : vector<32xf32>
    %352 = vector.multi_reduction <minimumf>, %348, %cst_62 [1] : vector<32x16xf32> to vector<32xf32>
    %353 = vector.shape_cast %352 : vector<32xf32> to vector<32x1xf32>
    %354 = vector.broadcast %353 : vector<32x1xf32> to vector<32x16xf32>
    %355 = arith.cmpf oeq, %348, %354 : vector<32x16xf32>
    %c1073741823_i32_63 = arith.constant 1073741823 : i32
    %356 = vector.broadcast %c1073741823_i32_63 : i32 to vector<32x16xi32>
    %357 = arith.select %355, %351, %356 : vector<32x16xi1>, vector<32x16xi32>
    %cst_64 = arith.constant dense<2147483647> : vector<32xi32>
    %358 = vector.multi_reduction <minsi>, %357, %cst_64 [1] : vector<32x16xi32> to vector<32xi32>
    %359 = vector.shape_cast %358 : vector<32xi32> to vector<32x1xi32>
    %360 = vector.broadcast %359 : vector<32x1xi32> to vector<32x16xi32>
    %361 = arith.cmpi eq, %351, %360 : vector<32x16xi32>
    %c1_i32_65 = arith.constant 1 : i32
    %362 = vector.broadcast %c1_i32_65 : i32 to vector<32x16xi32>
    %363 = arith.select %361, %362, %311 : vector<32x16xi1>, vector<32x16xi32>
    %364 = arith.select %361, %348, %312 : vector<32x16xi1>, vector<32x16xf32>
    %365 = arith.select %361, %351, %313 : vector<32x16xi1>, vector<32x16xi32>
    %cst_66 = arith.constant 1.000000e+30 : f32
    %366 = vector.broadcast %cst_66 : f32 to vector<32x16xf32>
    %367 = arith.select %361, %366, %348 : vector<32x16xi1>, vector<32x16xf32>
    %368 = vector.shape_cast %361 : vector<32x16xi1> to vector<1x32x16xi1>
    %cst_67 = arith.constant 0.000000e+00 : f32
    %369 = vector.shape_cast %368 : vector<1x32x16xi1> to vector<1x32x16xi1>
    %370 = vector.broadcast %369 : vector<1x32x16xi1> to vector<3x32x16xi1>
    %371 = vector.broadcast %cst_67 : f32 to vector<3x32x16xf32>
    %372 = arith.select %370, %1, %371 : vector<3x32x16xi1>, vector<3x32x16xf32>
    %cst_68 = arith.constant dense<0.000000e+00> : vector<3x32xf32>
    %373 = vector.multi_reduction <add>, %372, %cst_68 [2] : vector<3x32x16xf32> to vector<3x32xf32>
    %374 = vector.shape_cast %373 : vector<3x32xf32> to vector<3x32x1xf32>
    %c4_i32_69 = arith.constant 4 : i32
    %375 = vector.broadcast %c4_i32_69 : i32 to vector<32x1xi32>
    %376 = arith.shrsi %359, %375 : vector<32x1xi32>
    %c7_i32 = arith.constant 7 : i32
    %377 = vector.broadcast %374 : vector<3x32x1xf32> to vector<3x32x16xf32>
    %378 = arith.subf %1, %377 : vector<3x32x16xf32>
    %379 = vector.extract_strided_slice %378 {offsets = [0, 0, 0], sizes = [1, 32, 16], strides = [1, 1, 1]} : vector<3x32x16xf32> to vector<1x32x16xf32>
    %380 = vector.shape_cast %379 : vector<1x32x16xf32> to vector<32x16xf32>
    %381 = vector.extract_strided_slice %378 {offsets = [0, 0, 0], sizes = [1, 32, 16], strides = [1, 1, 1]} : vector<3x32x16xf32> to vector<1x32x16xf32>
    %382 = vector.shape_cast %381 : vector<1x32x16xf32> to vector<32x16xf32>
    %383 = arith.mulf %380, %382 : vector<32x16xf32>
    %384 = vector.extract_strided_slice %378 {offsets = [1, 0, 0], sizes = [1, 32, 16], strides = [1, 1, 1]} : vector<3x32x16xf32> to vector<1x32x16xf32>
    %385 = vector.shape_cast %384 : vector<1x32x16xf32> to vector<32x16xf32>
    %386 = vector.extract_strided_slice %378 {offsets = [1, 0, 0], sizes = [1, 32, 16], strides = [1, 1, 1]} : vector<3x32x16xf32> to vector<1x32x16xf32>
    %387 = vector.shape_cast %386 : vector<1x32x16xf32> to vector<32x16xf32>
    %388 = arith.mulf %385, %387 : vector<32x16xf32>
    %389 = arith.addf %383, %388 : vector<32x16xf32>
    %390 = vector.extract_strided_slice %378 {offsets = [2, 0, 0], sizes = [1, 32, 16], strides = [1, 1, 1]} : vector<3x32x16xf32> to vector<1x32x16xf32>
    %391 = vector.shape_cast %390 : vector<1x32x16xf32> to vector<32x16xf32>
    %392 = vector.extract_strided_slice %378 {offsets = [2, 0, 0], sizes = [1, 32, 16], strides = [1, 1, 1]} : vector<3x32x16xf32> to vector<1x32x16xf32>
    %393 = vector.shape_cast %392 : vector<1x32x16xf32> to vector<32x16xf32>
    %394 = arith.mulf %391, %393 : vector<32x16xf32>
    %395 = arith.addf %389, %394 : vector<32x16xf32>
    %c0_i32_70 = arith.constant 0 : i32
    %396 = vector.broadcast %c0_i32_70 : i32 to vector<32x16xi32>
    %397 = arith.cmpi eq, %363, %396 : vector<32x16xi32>
    %398 = arith.cmpf olt, %395, %367 : vector<32x16xf32>
    %399 = arith.andi %397, %398 : vector<32x16xi1>
    %400 = arith.select %399, %395, %367 : vector<32x16xi1>, vector<32x16xf32>
    %401 = vector.broadcast %376 : vector<32x1xi32> to vector<32x16xi32>
    %402 = arith.addi %4, %401 : vector<32x16xi32>
    %403 = arith.select %399, %402, %351 : vector<32x16xi1>, vector<32x16xi32>
    %cst_71 = arith.constant dense<0x7F800000> : vector<32xf32>
    %404 = vector.multi_reduction <minimumf>, %400, %cst_71 [1] : vector<32x16xf32> to vector<32xf32>
    %405 = vector.shape_cast %404 : vector<32xf32> to vector<32x1xf32>
    %406 = vector.broadcast %405 : vector<32x1xf32> to vector<32x16xf32>
    %407 = arith.cmpf oeq, %400, %406 : vector<32x16xf32>
    %c1073741823_i32_72 = arith.constant 1073741823 : i32
    %408 = vector.broadcast %c1073741823_i32_72 : i32 to vector<32x16xi32>
    %409 = arith.select %407, %403, %408 : vector<32x16xi1>, vector<32x16xi32>
    %cst_73 = arith.constant dense<2147483647> : vector<32xi32>
    %410 = vector.multi_reduction <minsi>, %409, %cst_73 [1] : vector<32x16xi32> to vector<32xi32>
    %411 = vector.shape_cast %410 : vector<32xi32> to vector<32x1xi32>
    %412 = vector.broadcast %411 : vector<32x1xi32> to vector<32x16xi32>
    %413 = arith.cmpi eq, %403, %412 : vector<32x16xi32>
    %c1_i32_74 = arith.constant 1 : i32
    %414 = vector.broadcast %c1_i32_74 : i32 to vector<32x16xi32>
    %415 = arith.select %413, %414, %363 : vector<32x16xi1>, vector<32x16xi32>
    %416 = arith.select %413, %400, %364 : vector<32x16xi1>, vector<32x16xf32>
    %417 = arith.select %413, %403, %365 : vector<32x16xi1>, vector<32x16xi32>
    %cst_75 = arith.constant 1.000000e+30 : f32
    %418 = vector.broadcast %cst_75 : f32 to vector<32x16xf32>
    %419 = arith.select %413, %418, %400 : vector<32x16xi1>, vector<32x16xf32>
    %420 = vector.shape_cast %413 : vector<32x16xi1> to vector<1x32x16xi1>
    %cst_76 = arith.constant 0.000000e+00 : f32
    %421 = vector.shape_cast %420 : vector<1x32x16xi1> to vector<1x32x16xi1>
    %422 = vector.broadcast %421 : vector<1x32x16xi1> to vector<3x32x16xi1>
    %423 = vector.broadcast %cst_76 : f32 to vector<3x32x16xf32>
    %424 = arith.select %422, %1, %423 : vector<3x32x16xi1>, vector<3x32x16xf32>
    %cst_77 = arith.constant dense<0.000000e+00> : vector<3x32xf32>
    %425 = vector.multi_reduction <add>, %424, %cst_77 [2] : vector<3x32x16xf32> to vector<3x32xf32>
    %426 = vector.shape_cast %425 : vector<3x32xf32> to vector<3x32x1xf32>
    %c4_i32_78 = arith.constant 4 : i32
    %427 = vector.broadcast %c4_i32_78 : i32 to vector<32x1xi32>
    %428 = arith.shrsi %411, %427 : vector<32x1xi32>
    %c8_i32 = arith.constant 8 : i32
    %429 = vector.broadcast %426 : vector<3x32x1xf32> to vector<3x32x16xf32>
    %430 = arith.subf %1, %429 : vector<3x32x16xf32>
    %431 = vector.extract_strided_slice %430 {offsets = [0, 0, 0], sizes = [1, 32, 16], strides = [1, 1, 1]} : vector<3x32x16xf32> to vector<1x32x16xf32>
    %432 = vector.shape_cast %431 : vector<1x32x16xf32> to vector<32x16xf32>
    %433 = vector.extract_strided_slice %430 {offsets = [0, 0, 0], sizes = [1, 32, 16], strides = [1, 1, 1]} : vector<3x32x16xf32> to vector<1x32x16xf32>
    %434 = vector.shape_cast %433 : vector<1x32x16xf32> to vector<32x16xf32>
    %435 = arith.mulf %432, %434 : vector<32x16xf32>
    %436 = vector.extract_strided_slice %430 {offsets = [1, 0, 0], sizes = [1, 32, 16], strides = [1, 1, 1]} : vector<3x32x16xf32> to vector<1x32x16xf32>
    %437 = vector.shape_cast %436 : vector<1x32x16xf32> to vector<32x16xf32>
    %438 = vector.extract_strided_slice %430 {offsets = [1, 0, 0], sizes = [1, 32, 16], strides = [1, 1, 1]} : vector<3x32x16xf32> to vector<1x32x16xf32>
    %439 = vector.shape_cast %438 : vector<1x32x16xf32> to vector<32x16xf32>
    %440 = arith.mulf %437, %439 : vector<32x16xf32>
    %441 = arith.addf %435, %440 : vector<32x16xf32>
    %442 = vector.extract_strided_slice %430 {offsets = [2, 0, 0], sizes = [1, 32, 16], strides = [1, 1, 1]} : vector<3x32x16xf32> to vector<1x32x16xf32>
    %443 = vector.shape_cast %442 : vector<1x32x16xf32> to vector<32x16xf32>
    %444 = vector.extract_strided_slice %430 {offsets = [2, 0, 0], sizes = [1, 32, 16], strides = [1, 1, 1]} : vector<3x32x16xf32> to vector<1x32x16xf32>
    %445 = vector.shape_cast %444 : vector<1x32x16xf32> to vector<32x16xf32>
    %446 = arith.mulf %443, %445 : vector<32x16xf32>
    %447 = arith.addf %441, %446 : vector<32x16xf32>
    %c0_i32_79 = arith.constant 0 : i32
    %448 = vector.broadcast %c0_i32_79 : i32 to vector<32x16xi32>
    %449 = arith.cmpi eq, %415, %448 : vector<32x16xi32>
    %450 = arith.cmpf olt, %447, %419 : vector<32x16xf32>
    %451 = arith.andi %449, %450 : vector<32x16xi1>
    %452 = arith.select %451, %447, %419 : vector<32x16xi1>, vector<32x16xf32>
    %453 = vector.broadcast %428 : vector<32x1xi32> to vector<32x16xi32>
    %454 = arith.addi %4, %453 : vector<32x16xi32>
    %455 = arith.select %451, %454, %403 : vector<32x16xi1>, vector<32x16xi32>
    %cst_80 = arith.constant dense<0x7F800000> : vector<32xf32>
    %456 = vector.multi_reduction <minimumf>, %452, %cst_80 [1] : vector<32x16xf32> to vector<32xf32>
    %457 = vector.shape_cast %456 : vector<32xf32> to vector<32x1xf32>
    %458 = vector.broadcast %457 : vector<32x1xf32> to vector<32x16xf32>
    %459 = arith.cmpf oeq, %452, %458 : vector<32x16xf32>
    %c1073741823_i32_81 = arith.constant 1073741823 : i32
    %460 = vector.broadcast %c1073741823_i32_81 : i32 to vector<32x16xi32>
    %461 = arith.select %459, %455, %460 : vector<32x16xi1>, vector<32x16xi32>
    %cst_82 = arith.constant dense<2147483647> : vector<32xi32>
    %462 = vector.multi_reduction <minsi>, %461, %cst_82 [1] : vector<32x16xi32> to vector<32xi32>
    %463 = vector.shape_cast %462 : vector<32xi32> to vector<32x1xi32>
    %464 = vector.broadcast %463 : vector<32x1xi32> to vector<32x16xi32>
    %465 = arith.cmpi eq, %455, %464 : vector<32x16xi32>
    %c1_i32_83 = arith.constant 1 : i32
    %466 = vector.broadcast %c1_i32_83 : i32 to vector<32x16xi32>
    %467 = arith.select %465, %466, %415 : vector<32x16xi1>, vector<32x16xi32>
    %468 = arith.select %465, %452, %416 : vector<32x16xi1>, vector<32x16xf32>
    %469 = arith.select %465, %455, %417 : vector<32x16xi1>, vector<32x16xi32>
    %cst_84 = arith.constant 1.000000e+30 : f32
    %470 = vector.broadcast %cst_84 : f32 to vector<32x16xf32>
    %471 = arith.select %465, %470, %452 : vector<32x16xi1>, vector<32x16xf32>
    %472 = vector.shape_cast %465 : vector<32x16xi1> to vector<1x32x16xi1>
    %cst_85 = arith.constant 0.000000e+00 : f32
    %473 = vector.shape_cast %472 : vector<1x32x16xi1> to vector<1x32x16xi1>
    %474 = vector.broadcast %473 : vector<1x32x16xi1> to vector<3x32x16xi1>
    %475 = vector.broadcast %cst_85 : f32 to vector<3x32x16xf32>
    %476 = arith.select %474, %1, %475 : vector<3x32x16xi1>, vector<3x32x16xf32>
    %cst_86 = arith.constant dense<0.000000e+00> : vector<3x32xf32>
    %477 = vector.multi_reduction <add>, %476, %cst_86 [2] : vector<3x32x16xf32> to vector<3x32xf32>
    %478 = vector.shape_cast %477 : vector<3x32xf32> to vector<3x32x1xf32>
    %c4_i32_87 = arith.constant 4 : i32
    %479 = vector.broadcast %c4_i32_87 : i32 to vector<32x1xi32>
    %480 = arith.shrsi %463, %479 : vector<32x1xi32>
    %c9_i32 = arith.constant 9 : i32
    %481 = vector.broadcast %478 : vector<3x32x1xf32> to vector<3x32x16xf32>
    %482 = arith.subf %1, %481 : vector<3x32x16xf32>
    %483 = vector.extract_strided_slice %482 {offsets = [0, 0, 0], sizes = [1, 32, 16], strides = [1, 1, 1]} : vector<3x32x16xf32> to vector<1x32x16xf32>
    %484 = vector.shape_cast %483 : vector<1x32x16xf32> to vector<32x16xf32>
    %485 = vector.extract_strided_slice %482 {offsets = [0, 0, 0], sizes = [1, 32, 16], strides = [1, 1, 1]} : vector<3x32x16xf32> to vector<1x32x16xf32>
    %486 = vector.shape_cast %485 : vector<1x32x16xf32> to vector<32x16xf32>
    %487 = arith.mulf %484, %486 : vector<32x16xf32>
    %488 = vector.extract_strided_slice %482 {offsets = [1, 0, 0], sizes = [1, 32, 16], strides = [1, 1, 1]} : vector<3x32x16xf32> to vector<1x32x16xf32>
    %489 = vector.shape_cast %488 : vector<1x32x16xf32> to vector<32x16xf32>
    %490 = vector.extract_strided_slice %482 {offsets = [1, 0, 0], sizes = [1, 32, 16], strides = [1, 1, 1]} : vector<3x32x16xf32> to vector<1x32x16xf32>
    %491 = vector.shape_cast %490 : vector<1x32x16xf32> to vector<32x16xf32>
    %492 = arith.mulf %489, %491 : vector<32x16xf32>
    %493 = arith.addf %487, %492 : vector<32x16xf32>
    %494 = vector.extract_strided_slice %482 {offsets = [2, 0, 0], sizes = [1, 32, 16], strides = [1, 1, 1]} : vector<3x32x16xf32> to vector<1x32x16xf32>
    %495 = vector.shape_cast %494 : vector<1x32x16xf32> to vector<32x16xf32>
    %496 = vector.extract_strided_slice %482 {offsets = [2, 0, 0], sizes = [1, 32, 16], strides = [1, 1, 1]} : vector<3x32x16xf32> to vector<1x32x16xf32>
    %497 = vector.shape_cast %496 : vector<1x32x16xf32> to vector<32x16xf32>
    %498 = arith.mulf %495, %497 : vector<32x16xf32>
    %499 = arith.addf %493, %498 : vector<32x16xf32>
    %c0_i32_88 = arith.constant 0 : i32
    %500 = vector.broadcast %c0_i32_88 : i32 to vector<32x16xi32>
    %501 = arith.cmpi eq, %467, %500 : vector<32x16xi32>
    %502 = arith.cmpf olt, %499, %471 : vector<32x16xf32>
    %503 = arith.andi %501, %502 : vector<32x16xi1>
    %504 = arith.select %503, %499, %471 : vector<32x16xi1>, vector<32x16xf32>
    %505 = vector.broadcast %480 : vector<32x1xi32> to vector<32x16xi32>
    %506 = arith.addi %4, %505 : vector<32x16xi32>
    %507 = arith.select %503, %506, %455 : vector<32x16xi1>, vector<32x16xi32>
    %cst_89 = arith.constant dense<0x7F800000> : vector<32xf32>
    %508 = vector.multi_reduction <minimumf>, %504, %cst_89 [1] : vector<32x16xf32> to vector<32xf32>
    %509 = vector.shape_cast %508 : vector<32xf32> to vector<32x1xf32>
    %510 = vector.broadcast %509 : vector<32x1xf32> to vector<32x16xf32>
    %511 = arith.cmpf oeq, %504, %510 : vector<32x16xf32>
    %c1073741823_i32_90 = arith.constant 1073741823 : i32
    %512 = vector.broadcast %c1073741823_i32_90 : i32 to vector<32x16xi32>
    %513 = arith.select %511, %507, %512 : vector<32x16xi1>, vector<32x16xi32>
    %cst_91 = arith.constant dense<2147483647> : vector<32xi32>
    %514 = vector.multi_reduction <minsi>, %513, %cst_91 [1] : vector<32x16xi32> to vector<32xi32>
    %515 = vector.shape_cast %514 : vector<32xi32> to vector<32x1xi32>
    %516 = vector.broadcast %515 : vector<32x1xi32> to vector<32x16xi32>
    %517 = arith.cmpi eq, %507, %516 : vector<32x16xi32>
    %c1_i32_92 = arith.constant 1 : i32
    %518 = vector.broadcast %c1_i32_92 : i32 to vector<32x16xi32>
    %519 = arith.select %517, %518, %467 : vector<32x16xi1>, vector<32x16xi32>
    %520 = arith.select %517, %504, %468 : vector<32x16xi1>, vector<32x16xf32>
    %521 = arith.select %517, %507, %469 : vector<32x16xi1>, vector<32x16xi32>
    %cst_93 = arith.constant 1.000000e+30 : f32
    %522 = vector.broadcast %cst_93 : f32 to vector<32x16xf32>
    %523 = arith.select %517, %522, %504 : vector<32x16xi1>, vector<32x16xf32>
    %524 = vector.shape_cast %517 : vector<32x16xi1> to vector<1x32x16xi1>
    %cst_94 = arith.constant 0.000000e+00 : f32
    %525 = vector.shape_cast %524 : vector<1x32x16xi1> to vector<1x32x16xi1>
    %526 = vector.broadcast %525 : vector<1x32x16xi1> to vector<3x32x16xi1>
    %527 = vector.broadcast %cst_94 : f32 to vector<3x32x16xf32>
    %528 = arith.select %526, %1, %527 : vector<3x32x16xi1>, vector<3x32x16xf32>
    %cst_95 = arith.constant dense<0.000000e+00> : vector<3x32xf32>
    %529 = vector.multi_reduction <add>, %528, %cst_95 [2] : vector<3x32x16xf32> to vector<3x32xf32>
    %530 = vector.shape_cast %529 : vector<3x32xf32> to vector<3x32x1xf32>
    %c4_i32_96 = arith.constant 4 : i32
    %531 = vector.broadcast %c4_i32_96 : i32 to vector<32x1xi32>
    %532 = arith.shrsi %515, %531 : vector<32x1xi32>
    %c10_i32 = arith.constant 10 : i32
    %533 = vector.broadcast %530 : vector<3x32x1xf32> to vector<3x32x16xf32>
    %534 = arith.subf %1, %533 : vector<3x32x16xf32>
    %535 = vector.extract_strided_slice %534 {offsets = [0, 0, 0], sizes = [1, 32, 16], strides = [1, 1, 1]} : vector<3x32x16xf32> to vector<1x32x16xf32>
    %536 = vector.shape_cast %535 : vector<1x32x16xf32> to vector<32x16xf32>
    %537 = vector.extract_strided_slice %534 {offsets = [0, 0, 0], sizes = [1, 32, 16], strides = [1, 1, 1]} : vector<3x32x16xf32> to vector<1x32x16xf32>
    %538 = vector.shape_cast %537 : vector<1x32x16xf32> to vector<32x16xf32>
    %539 = arith.mulf %536, %538 : vector<32x16xf32>
    %540 = vector.extract_strided_slice %534 {offsets = [1, 0, 0], sizes = [1, 32, 16], strides = [1, 1, 1]} : vector<3x32x16xf32> to vector<1x32x16xf32>
    %541 = vector.shape_cast %540 : vector<1x32x16xf32> to vector<32x16xf32>
    %542 = vector.extract_strided_slice %534 {offsets = [1, 0, 0], sizes = [1, 32, 16], strides = [1, 1, 1]} : vector<3x32x16xf32> to vector<1x32x16xf32>
    %543 = vector.shape_cast %542 : vector<1x32x16xf32> to vector<32x16xf32>
    %544 = arith.mulf %541, %543 : vector<32x16xf32>
    %545 = arith.addf %539, %544 : vector<32x16xf32>
    %546 = vector.extract_strided_slice %534 {offsets = [2, 0, 0], sizes = [1, 32, 16], strides = [1, 1, 1]} : vector<3x32x16xf32> to vector<1x32x16xf32>
    %547 = vector.shape_cast %546 : vector<1x32x16xf32> to vector<32x16xf32>
    %548 = vector.extract_strided_slice %534 {offsets = [2, 0, 0], sizes = [1, 32, 16], strides = [1, 1, 1]} : vector<3x32x16xf32> to vector<1x32x16xf32>
    %549 = vector.shape_cast %548 : vector<1x32x16xf32> to vector<32x16xf32>
    %550 = arith.mulf %547, %549 : vector<32x16xf32>
    %551 = arith.addf %545, %550 : vector<32x16xf32>
    %c0_i32_97 = arith.constant 0 : i32
    %552 = vector.broadcast %c0_i32_97 : i32 to vector<32x16xi32>
    %553 = arith.cmpi eq, %519, %552 : vector<32x16xi32>
    %554 = arith.cmpf olt, %551, %523 : vector<32x16xf32>
    %555 = arith.andi %553, %554 : vector<32x16xi1>
    %556 = arith.select %555, %551, %523 : vector<32x16xi1>, vector<32x16xf32>
    %557 = vector.broadcast %532 : vector<32x1xi32> to vector<32x16xi32>
    %558 = arith.addi %4, %557 : vector<32x16xi32>
    %559 = arith.select %555, %558, %507 : vector<32x16xi1>, vector<32x16xi32>
    %cst_98 = arith.constant dense<0x7F800000> : vector<32xf32>
    %560 = vector.multi_reduction <minimumf>, %556, %cst_98 [1] : vector<32x16xf32> to vector<32xf32>
    %561 = vector.shape_cast %560 : vector<32xf32> to vector<32x1xf32>
    %562 = vector.broadcast %561 : vector<32x1xf32> to vector<32x16xf32>
    %563 = arith.cmpf oeq, %556, %562 : vector<32x16xf32>
    %c1073741823_i32_99 = arith.constant 1073741823 : i32
    %564 = vector.broadcast %c1073741823_i32_99 : i32 to vector<32x16xi32>
    %565 = arith.select %563, %559, %564 : vector<32x16xi1>, vector<32x16xi32>
    %cst_100 = arith.constant dense<2147483647> : vector<32xi32>
    %566 = vector.multi_reduction <minsi>, %565, %cst_100 [1] : vector<32x16xi32> to vector<32xi32>
    %567 = vector.shape_cast %566 : vector<32xi32> to vector<32x1xi32>
    %568 = vector.broadcast %567 : vector<32x1xi32> to vector<32x16xi32>
    %569 = arith.cmpi eq, %559, %568 : vector<32x16xi32>
    %c1_i32_101 = arith.constant 1 : i32
    %570 = vector.broadcast %c1_i32_101 : i32 to vector<32x16xi32>
    %571 = arith.select %569, %570, %519 : vector<32x16xi1>, vector<32x16xi32>
    %572 = arith.select %569, %556, %520 : vector<32x16xi1>, vector<32x16xf32>
    %573 = arith.select %569, %559, %521 : vector<32x16xi1>, vector<32x16xi32>
    %cst_102 = arith.constant 1.000000e+30 : f32
    %574 = vector.broadcast %cst_102 : f32 to vector<32x16xf32>
    %575 = arith.select %569, %574, %556 : vector<32x16xi1>, vector<32x16xf32>
    %576 = vector.shape_cast %569 : vector<32x16xi1> to vector<1x32x16xi1>
    %cst_103 = arith.constant 0.000000e+00 : f32
    %577 = vector.shape_cast %576 : vector<1x32x16xi1> to vector<1x32x16xi1>
    %578 = vector.broadcast %577 : vector<1x32x16xi1> to vector<3x32x16xi1>
    %579 = vector.broadcast %cst_103 : f32 to vector<3x32x16xf32>
    %580 = arith.select %578, %1, %579 : vector<3x32x16xi1>, vector<3x32x16xf32>
    %cst_104 = arith.constant dense<0.000000e+00> : vector<3x32xf32>
    %581 = vector.multi_reduction <add>, %580, %cst_104 [2] : vector<3x32x16xf32> to vector<3x32xf32>
    %582 = vector.shape_cast %581 : vector<3x32xf32> to vector<3x32x1xf32>
    %c4_i32_105 = arith.constant 4 : i32
    %583 = vector.broadcast %c4_i32_105 : i32 to vector<32x1xi32>
    %584 = arith.shrsi %567, %583 : vector<32x1xi32>
    %c11_i32 = arith.constant 11 : i32
    %585 = vector.broadcast %582 : vector<3x32x1xf32> to vector<3x32x16xf32>
    %586 = arith.subf %1, %585 : vector<3x32x16xf32>
    %587 = vector.extract_strided_slice %586 {offsets = [0, 0, 0], sizes = [1, 32, 16], strides = [1, 1, 1]} : vector<3x32x16xf32> to vector<1x32x16xf32>
    %588 = vector.shape_cast %587 : vector<1x32x16xf32> to vector<32x16xf32>
    %589 = vector.extract_strided_slice %586 {offsets = [0, 0, 0], sizes = [1, 32, 16], strides = [1, 1, 1]} : vector<3x32x16xf32> to vector<1x32x16xf32>
    %590 = vector.shape_cast %589 : vector<1x32x16xf32> to vector<32x16xf32>
    %591 = arith.mulf %588, %590 : vector<32x16xf32>
    %592 = vector.extract_strided_slice %586 {offsets = [1, 0, 0], sizes = [1, 32, 16], strides = [1, 1, 1]} : vector<3x32x16xf32> to vector<1x32x16xf32>
    %593 = vector.shape_cast %592 : vector<1x32x16xf32> to vector<32x16xf32>
    %594 = vector.extract_strided_slice %586 {offsets = [1, 0, 0], sizes = [1, 32, 16], strides = [1, 1, 1]} : vector<3x32x16xf32> to vector<1x32x16xf32>
    %595 = vector.shape_cast %594 : vector<1x32x16xf32> to vector<32x16xf32>
    %596 = arith.mulf %593, %595 : vector<32x16xf32>
    %597 = arith.addf %591, %596 : vector<32x16xf32>
    %598 = vector.extract_strided_slice %586 {offsets = [2, 0, 0], sizes = [1, 32, 16], strides = [1, 1, 1]} : vector<3x32x16xf32> to vector<1x32x16xf32>
    %599 = vector.shape_cast %598 : vector<1x32x16xf32> to vector<32x16xf32>
    %600 = vector.extract_strided_slice %586 {offsets = [2, 0, 0], sizes = [1, 32, 16], strides = [1, 1, 1]} : vector<3x32x16xf32> to vector<1x32x16xf32>
    %601 = vector.shape_cast %600 : vector<1x32x16xf32> to vector<32x16xf32>
    %602 = arith.mulf %599, %601 : vector<32x16xf32>
    %603 = arith.addf %597, %602 : vector<32x16xf32>
    %c0_i32_106 = arith.constant 0 : i32
    %604 = vector.broadcast %c0_i32_106 : i32 to vector<32x16xi32>
    %605 = arith.cmpi eq, %571, %604 : vector<32x16xi32>
    %606 = arith.cmpf olt, %603, %575 : vector<32x16xf32>
    %607 = arith.andi %605, %606 : vector<32x16xi1>
    %608 = arith.select %607, %603, %575 : vector<32x16xi1>, vector<32x16xf32>
    %609 = vector.broadcast %584 : vector<32x1xi32> to vector<32x16xi32>
    %610 = arith.addi %4, %609 : vector<32x16xi32>
    %611 = arith.select %607, %610, %559 : vector<32x16xi1>, vector<32x16xi32>
    %cst_107 = arith.constant dense<0x7F800000> : vector<32xf32>
    %612 = vector.multi_reduction <minimumf>, %608, %cst_107 [1] : vector<32x16xf32> to vector<32xf32>
    %613 = vector.shape_cast %612 : vector<32xf32> to vector<32x1xf32>
    %614 = vector.broadcast %613 : vector<32x1xf32> to vector<32x16xf32>
    %615 = arith.cmpf oeq, %608, %614 : vector<32x16xf32>
    %c1073741823_i32_108 = arith.constant 1073741823 : i32
    %616 = vector.broadcast %c1073741823_i32_108 : i32 to vector<32x16xi32>
    %617 = arith.select %615, %611, %616 : vector<32x16xi1>, vector<32x16xi32>
    %cst_109 = arith.constant dense<2147483647> : vector<32xi32>
    %618 = vector.multi_reduction <minsi>, %617, %cst_109 [1] : vector<32x16xi32> to vector<32xi32>
    %619 = vector.shape_cast %618 : vector<32xi32> to vector<32x1xi32>
    %620 = vector.broadcast %619 : vector<32x1xi32> to vector<32x16xi32>
    %621 = arith.cmpi eq, %611, %620 : vector<32x16xi32>
    %c1_i32_110 = arith.constant 1 : i32
    %622 = vector.broadcast %c1_i32_110 : i32 to vector<32x16xi32>
    %623 = arith.select %621, %622, %571 : vector<32x16xi1>, vector<32x16xi32>
    %624 = arith.select %621, %608, %572 : vector<32x16xi1>, vector<32x16xf32>
    %625 = arith.select %621, %611, %573 : vector<32x16xi1>, vector<32x16xi32>
    %cst_111 = arith.constant 1.000000e+30 : f32
    %626 = vector.broadcast %cst_111 : f32 to vector<32x16xf32>
    %627 = arith.select %621, %626, %608 : vector<32x16xi1>, vector<32x16xf32>
    %628 = vector.shape_cast %621 : vector<32x16xi1> to vector<1x32x16xi1>
    %cst_112 = arith.constant 0.000000e+00 : f32
    %629 = vector.shape_cast %628 : vector<1x32x16xi1> to vector<1x32x16xi1>
    %630 = vector.broadcast %629 : vector<1x32x16xi1> to vector<3x32x16xi1>
    %631 = vector.broadcast %cst_112 : f32 to vector<3x32x16xf32>
    %632 = arith.select %630, %1, %631 : vector<3x32x16xi1>, vector<3x32x16xf32>
    %cst_113 = arith.constant dense<0.000000e+00> : vector<3x32xf32>
    %633 = vector.multi_reduction <add>, %632, %cst_113 [2] : vector<3x32x16xf32> to vector<3x32xf32>
    %634 = vector.shape_cast %633 : vector<3x32xf32> to vector<3x32x1xf32>
    %c4_i32_114 = arith.constant 4 : i32
    %635 = vector.broadcast %c4_i32_114 : i32 to vector<32x1xi32>
    %636 = arith.shrsi %619, %635 : vector<32x1xi32>
    %c12_i32 = arith.constant 12 : i32
    %637 = vector.broadcast %634 : vector<3x32x1xf32> to vector<3x32x16xf32>
    %638 = arith.subf %1, %637 : vector<3x32x16xf32>
    %639 = vector.extract_strided_slice %638 {offsets = [0, 0, 0], sizes = [1, 32, 16], strides = [1, 1, 1]} : vector<3x32x16xf32> to vector<1x32x16xf32>
    %640 = vector.shape_cast %639 : vector<1x32x16xf32> to vector<32x16xf32>
    %641 = vector.extract_strided_slice %638 {offsets = [0, 0, 0], sizes = [1, 32, 16], strides = [1, 1, 1]} : vector<3x32x16xf32> to vector<1x32x16xf32>
    %642 = vector.shape_cast %641 : vector<1x32x16xf32> to vector<32x16xf32>
    %643 = arith.mulf %640, %642 : vector<32x16xf32>
    %644 = vector.extract_strided_slice %638 {offsets = [1, 0, 0], sizes = [1, 32, 16], strides = [1, 1, 1]} : vector<3x32x16xf32> to vector<1x32x16xf32>
    %645 = vector.shape_cast %644 : vector<1x32x16xf32> to vector<32x16xf32>
    %646 = vector.extract_strided_slice %638 {offsets = [1, 0, 0], sizes = [1, 32, 16], strides = [1, 1, 1]} : vector<3x32x16xf32> to vector<1x32x16xf32>
    %647 = vector.shape_cast %646 : vector<1x32x16xf32> to vector<32x16xf32>
    %648 = arith.mulf %645, %647 : vector<32x16xf32>
    %649 = arith.addf %643, %648 : vector<32x16xf32>
    %650 = vector.extract_strided_slice %638 {offsets = [2, 0, 0], sizes = [1, 32, 16], strides = [1, 1, 1]} : vector<3x32x16xf32> to vector<1x32x16xf32>
    %651 = vector.shape_cast %650 : vector<1x32x16xf32> to vector<32x16xf32>
    %652 = vector.extract_strided_slice %638 {offsets = [2, 0, 0], sizes = [1, 32, 16], strides = [1, 1, 1]} : vector<3x32x16xf32> to vector<1x32x16xf32>
    %653 = vector.shape_cast %652 : vector<1x32x16xf32> to vector<32x16xf32>
    %654 = arith.mulf %651, %653 : vector<32x16xf32>
    %655 = arith.addf %649, %654 : vector<32x16xf32>
    %c0_i32_115 = arith.constant 0 : i32
    %656 = vector.broadcast %c0_i32_115 : i32 to vector<32x16xi32>
    %657 = arith.cmpi eq, %623, %656 : vector<32x16xi32>
    %658 = arith.cmpf olt, %655, %627 : vector<32x16xf32>
    %659 = arith.andi %657, %658 : vector<32x16xi1>
    %660 = arith.select %659, %655, %627 : vector<32x16xi1>, vector<32x16xf32>
    %661 = vector.broadcast %636 : vector<32x1xi32> to vector<32x16xi32>
    %662 = arith.addi %4, %661 : vector<32x16xi32>
    %663 = arith.select %659, %662, %611 : vector<32x16xi1>, vector<32x16xi32>
    %cst_116 = arith.constant dense<0x7F800000> : vector<32xf32>
    %664 = vector.multi_reduction <minimumf>, %660, %cst_116 [1] : vector<32x16xf32> to vector<32xf32>
    %665 = vector.shape_cast %664 : vector<32xf32> to vector<32x1xf32>
    %666 = vector.broadcast %665 : vector<32x1xf32> to vector<32x16xf32>
    %667 = arith.cmpf oeq, %660, %666 : vector<32x16xf32>
    %c1073741823_i32_117 = arith.constant 1073741823 : i32
    %668 = vector.broadcast %c1073741823_i32_117 : i32 to vector<32x16xi32>
    %669 = arith.select %667, %663, %668 : vector<32x16xi1>, vector<32x16xi32>
    %cst_118 = arith.constant dense<2147483647> : vector<32xi32>
    %670 = vector.multi_reduction <minsi>, %669, %cst_118 [1] : vector<32x16xi32> to vector<32xi32>
    %671 = vector.shape_cast %670 : vector<32xi32> to vector<32x1xi32>
    %672 = vector.broadcast %671 : vector<32x1xi32> to vector<32x16xi32>
    %673 = arith.cmpi eq, %663, %672 : vector<32x16xi32>
    %c1_i32_119 = arith.constant 1 : i32
    %674 = vector.broadcast %c1_i32_119 : i32 to vector<32x16xi32>
    %675 = arith.select %673, %674, %623 : vector<32x16xi1>, vector<32x16xi32>
    %676 = arith.select %673, %660, %624 : vector<32x16xi1>, vector<32x16xf32>
    %677 = arith.select %673, %663, %625 : vector<32x16xi1>, vector<32x16xi32>
    %cst_120 = arith.constant 1.000000e+30 : f32
    %678 = vector.broadcast %cst_120 : f32 to vector<32x16xf32>
    %679 = arith.select %673, %678, %660 : vector<32x16xi1>, vector<32x16xf32>
    %680 = vector.shape_cast %673 : vector<32x16xi1> to vector<1x32x16xi1>
    %cst_121 = arith.constant 0.000000e+00 : f32
    %681 = vector.shape_cast %680 : vector<1x32x16xi1> to vector<1x32x16xi1>
    %682 = vector.broadcast %681 : vector<1x32x16xi1> to vector<3x32x16xi1>
    %683 = vector.broadcast %cst_121 : f32 to vector<3x32x16xf32>
    %684 = arith.select %682, %1, %683 : vector<3x32x16xi1>, vector<3x32x16xf32>
    %cst_122 = arith.constant dense<0.000000e+00> : vector<3x32xf32>
    %685 = vector.multi_reduction <add>, %684, %cst_122 [2] : vector<3x32x16xf32> to vector<3x32xf32>
    %686 = vector.shape_cast %685 : vector<3x32xf32> to vector<3x32x1xf32>
    %c4_i32_123 = arith.constant 4 : i32
    %687 = vector.broadcast %c4_i32_123 : i32 to vector<32x1xi32>
    %688 = arith.shrsi %671, %687 : vector<32x1xi32>
    %c13_i32 = arith.constant 13 : i32
    %689 = vector.broadcast %686 : vector<3x32x1xf32> to vector<3x32x16xf32>
    %690 = arith.subf %1, %689 : vector<3x32x16xf32>
    %691 = vector.extract_strided_slice %690 {offsets = [0, 0, 0], sizes = [1, 32, 16], strides = [1, 1, 1]} : vector<3x32x16xf32> to vector<1x32x16xf32>
    %692 = vector.shape_cast %691 : vector<1x32x16xf32> to vector<32x16xf32>
    %693 = vector.extract_strided_slice %690 {offsets = [0, 0, 0], sizes = [1, 32, 16], strides = [1, 1, 1]} : vector<3x32x16xf32> to vector<1x32x16xf32>
    %694 = vector.shape_cast %693 : vector<1x32x16xf32> to vector<32x16xf32>
    %695 = arith.mulf %692, %694 : vector<32x16xf32>
    %696 = vector.extract_strided_slice %690 {offsets = [1, 0, 0], sizes = [1, 32, 16], strides = [1, 1, 1]} : vector<3x32x16xf32> to vector<1x32x16xf32>
    %697 = vector.shape_cast %696 : vector<1x32x16xf32> to vector<32x16xf32>
    %698 = vector.extract_strided_slice %690 {offsets = [1, 0, 0], sizes = [1, 32, 16], strides = [1, 1, 1]} : vector<3x32x16xf32> to vector<1x32x16xf32>
    %699 = vector.shape_cast %698 : vector<1x32x16xf32> to vector<32x16xf32>
    %700 = arith.mulf %697, %699 : vector<32x16xf32>
    %701 = arith.addf %695, %700 : vector<32x16xf32>
    %702 = vector.extract_strided_slice %690 {offsets = [2, 0, 0], sizes = [1, 32, 16], strides = [1, 1, 1]} : vector<3x32x16xf32> to vector<1x32x16xf32>
    %703 = vector.shape_cast %702 : vector<1x32x16xf32> to vector<32x16xf32>
    %704 = vector.extract_strided_slice %690 {offsets = [2, 0, 0], sizes = [1, 32, 16], strides = [1, 1, 1]} : vector<3x32x16xf32> to vector<1x32x16xf32>
    %705 = vector.shape_cast %704 : vector<1x32x16xf32> to vector<32x16xf32>
    %706 = arith.mulf %703, %705 : vector<32x16xf32>
    %707 = arith.addf %701, %706 : vector<32x16xf32>
    %c0_i32_124 = arith.constant 0 : i32
    %708 = vector.broadcast %c0_i32_124 : i32 to vector<32x16xi32>
    %709 = arith.cmpi eq, %675, %708 : vector<32x16xi32>
    %710 = arith.cmpf olt, %707, %679 : vector<32x16xf32>
    %711 = arith.andi %709, %710 : vector<32x16xi1>
    %712 = arith.select %711, %707, %679 : vector<32x16xi1>, vector<32x16xf32>
    %713 = vector.broadcast %688 : vector<32x1xi32> to vector<32x16xi32>
    %714 = arith.addi %4, %713 : vector<32x16xi32>
    %715 = arith.select %711, %714, %663 : vector<32x16xi1>, vector<32x16xi32>
    %cst_125 = arith.constant dense<0x7F800000> : vector<32xf32>
    %716 = vector.multi_reduction <minimumf>, %712, %cst_125 [1] : vector<32x16xf32> to vector<32xf32>
    %717 = vector.shape_cast %716 : vector<32xf32> to vector<32x1xf32>
    %718 = vector.broadcast %717 : vector<32x1xf32> to vector<32x16xf32>
    %719 = arith.cmpf oeq, %712, %718 : vector<32x16xf32>
    %c1073741823_i32_126 = arith.constant 1073741823 : i32
    %720 = vector.broadcast %c1073741823_i32_126 : i32 to vector<32x16xi32>
    %721 = arith.select %719, %715, %720 : vector<32x16xi1>, vector<32x16xi32>
    %cst_127 = arith.constant dense<2147483647> : vector<32xi32>
    %722 = vector.multi_reduction <minsi>, %721, %cst_127 [1] : vector<32x16xi32> to vector<32xi32>
    %723 = vector.shape_cast %722 : vector<32xi32> to vector<32x1xi32>
    %724 = vector.broadcast %723 : vector<32x1xi32> to vector<32x16xi32>
    %725 = arith.cmpi eq, %715, %724 : vector<32x16xi32>
    %c1_i32_128 = arith.constant 1 : i32
    %726 = vector.broadcast %c1_i32_128 : i32 to vector<32x16xi32>
    %727 = arith.select %725, %726, %675 : vector<32x16xi1>, vector<32x16xi32>
    %728 = arith.select %725, %712, %676 : vector<32x16xi1>, vector<32x16xf32>
    %729 = arith.select %725, %715, %677 : vector<32x16xi1>, vector<32x16xi32>
    %cst_129 = arith.constant 1.000000e+30 : f32
    %730 = vector.broadcast %cst_129 : f32 to vector<32x16xf32>
    %731 = arith.select %725, %730, %712 : vector<32x16xi1>, vector<32x16xf32>
    %732 = vector.shape_cast %725 : vector<32x16xi1> to vector<1x32x16xi1>
    %cst_130 = arith.constant 0.000000e+00 : f32
    %733 = vector.shape_cast %732 : vector<1x32x16xi1> to vector<1x32x16xi1>
    %734 = vector.broadcast %733 : vector<1x32x16xi1> to vector<3x32x16xi1>
    %735 = vector.broadcast %cst_130 : f32 to vector<3x32x16xf32>
    %736 = arith.select %734, %1, %735 : vector<3x32x16xi1>, vector<3x32x16xf32>
    %cst_131 = arith.constant dense<0.000000e+00> : vector<3x32xf32>
    %737 = vector.multi_reduction <add>, %736, %cst_131 [2] : vector<3x32x16xf32> to vector<3x32xf32>
    %738 = vector.shape_cast %737 : vector<3x32xf32> to vector<3x32x1xf32>
    %c4_i32_132 = arith.constant 4 : i32
    %739 = vector.broadcast %c4_i32_132 : i32 to vector<32x1xi32>
    %740 = arith.shrsi %723, %739 : vector<32x1xi32>
    %c14_i32 = arith.constant 14 : i32
    %741 = vector.broadcast %738 : vector<3x32x1xf32> to vector<3x32x16xf32>
    %742 = arith.subf %1, %741 : vector<3x32x16xf32>
    %743 = vector.extract_strided_slice %742 {offsets = [0, 0, 0], sizes = [1, 32, 16], strides = [1, 1, 1]} : vector<3x32x16xf32> to vector<1x32x16xf32>
    %744 = vector.shape_cast %743 : vector<1x32x16xf32> to vector<32x16xf32>
    %745 = vector.extract_strided_slice %742 {offsets = [0, 0, 0], sizes = [1, 32, 16], strides = [1, 1, 1]} : vector<3x32x16xf32> to vector<1x32x16xf32>
    %746 = vector.shape_cast %745 : vector<1x32x16xf32> to vector<32x16xf32>
    %747 = arith.mulf %744, %746 : vector<32x16xf32>
    %748 = vector.extract_strided_slice %742 {offsets = [1, 0, 0], sizes = [1, 32, 16], strides = [1, 1, 1]} : vector<3x32x16xf32> to vector<1x32x16xf32>
    %749 = vector.shape_cast %748 : vector<1x32x16xf32> to vector<32x16xf32>
    %750 = vector.extract_strided_slice %742 {offsets = [1, 0, 0], sizes = [1, 32, 16], strides = [1, 1, 1]} : vector<3x32x16xf32> to vector<1x32x16xf32>
    %751 = vector.shape_cast %750 : vector<1x32x16xf32> to vector<32x16xf32>
    %752 = arith.mulf %749, %751 : vector<32x16xf32>
    %753 = arith.addf %747, %752 : vector<32x16xf32>
    %754 = vector.extract_strided_slice %742 {offsets = [2, 0, 0], sizes = [1, 32, 16], strides = [1, 1, 1]} : vector<3x32x16xf32> to vector<1x32x16xf32>
    %755 = vector.shape_cast %754 : vector<1x32x16xf32> to vector<32x16xf32>
    %756 = vector.extract_strided_slice %742 {offsets = [2, 0, 0], sizes = [1, 32, 16], strides = [1, 1, 1]} : vector<3x32x16xf32> to vector<1x32x16xf32>
    %757 = vector.shape_cast %756 : vector<1x32x16xf32> to vector<32x16xf32>
    %758 = arith.mulf %755, %757 : vector<32x16xf32>
    %759 = arith.addf %753, %758 : vector<32x16xf32>
    %c0_i32_133 = arith.constant 0 : i32
    %760 = vector.broadcast %c0_i32_133 : i32 to vector<32x16xi32>
    %761 = arith.cmpi eq, %727, %760 : vector<32x16xi32>
    %762 = arith.cmpf olt, %759, %731 : vector<32x16xf32>
    %763 = arith.andi %761, %762 : vector<32x16xi1>
    %764 = arith.select %763, %759, %731 : vector<32x16xi1>, vector<32x16xf32>
    %765 = vector.broadcast %740 : vector<32x1xi32> to vector<32x16xi32>
    %766 = arith.addi %4, %765 : vector<32x16xi32>
    %767 = arith.select %763, %766, %715 : vector<32x16xi1>, vector<32x16xi32>
    %cst_134 = arith.constant dense<0x7F800000> : vector<32xf32>
    %768 = vector.multi_reduction <minimumf>, %764, %cst_134 [1] : vector<32x16xf32> to vector<32xf32>
    %769 = vector.shape_cast %768 : vector<32xf32> to vector<32x1xf32>
    %770 = vector.broadcast %769 : vector<32x1xf32> to vector<32x16xf32>
    %771 = arith.cmpf oeq, %764, %770 : vector<32x16xf32>
    %c1073741823_i32_135 = arith.constant 1073741823 : i32
    %772 = vector.broadcast %c1073741823_i32_135 : i32 to vector<32x16xi32>
    %773 = arith.select %771, %767, %772 : vector<32x16xi1>, vector<32x16xi32>
    %cst_136 = arith.constant dense<2147483647> : vector<32xi32>
    %774 = vector.multi_reduction <minsi>, %773, %cst_136 [1] : vector<32x16xi32> to vector<32xi32>
    %775 = vector.shape_cast %774 : vector<32xi32> to vector<32x1xi32>
    %776 = vector.broadcast %775 : vector<32x1xi32> to vector<32x16xi32>
    %777 = arith.cmpi eq, %767, %776 : vector<32x16xi32>
    %c1_i32_137 = arith.constant 1 : i32
    %778 = vector.broadcast %c1_i32_137 : i32 to vector<32x16xi32>
    %779 = arith.select %777, %778, %727 : vector<32x16xi1>, vector<32x16xi32>
    %780 = arith.select %777, %764, %728 : vector<32x16xi1>, vector<32x16xf32>
    %781 = arith.select %777, %767, %729 : vector<32x16xi1>, vector<32x16xi32>
    %cst_138 = arith.constant 1.000000e+30 : f32
    %782 = vector.broadcast %cst_138 : f32 to vector<32x16xf32>
    %783 = arith.select %777, %782, %764 : vector<32x16xi1>, vector<32x16xf32>
    %784 = vector.shape_cast %777 : vector<32x16xi1> to vector<1x32x16xi1>
    %cst_139 = arith.constant 0.000000e+00 : f32
    %785 = vector.shape_cast %784 : vector<1x32x16xi1> to vector<1x32x16xi1>
    %786 = vector.broadcast %785 : vector<1x32x16xi1> to vector<3x32x16xi1>
    %787 = vector.broadcast %cst_139 : f32 to vector<3x32x16xf32>
    %788 = arith.select %786, %1, %787 : vector<3x32x16xi1>, vector<3x32x16xf32>
    %cst_140 = arith.constant dense<0.000000e+00> : vector<3x32xf32>
    %789 = vector.multi_reduction <add>, %788, %cst_140 [2] : vector<3x32x16xf32> to vector<3x32xf32>
    %790 = vector.shape_cast %789 : vector<3x32xf32> to vector<3x32x1xf32>
    %c4_i32_141 = arith.constant 4 : i32
    %791 = vector.broadcast %c4_i32_141 : i32 to vector<32x1xi32>
    %792 = arith.shrsi %775, %791 : vector<32x1xi32>
    %793 = math.sqrt %780 : vector<32x16xf32>
    %cst_142 = arith.constant dense<0.000000e+00> : vector<32xf32>
    %794 = vector.multi_reduction <add>, %793, %cst_142 [1] : vector<32x16xf32> to vector<32xf32>
    %795 = vector.shape_cast %794 : vector<32xf32> to vector<32x1xf32>
    %cst_143 = arith.constant 0.0666666701 : f32
    %796 = vector.broadcast %cst_143 : f32 to vector<32x1xf32>
    %797 = arith.mulf %795, %796 : vector<32x1xf32>
    %cst_144 = arith.constant 1.500000e+00 : f32
    %798 = vector.broadcast %cst_144 : f32 to vector<32x1xf32>
    %799 = arith.mulf %798, %797 : vector<32x1xf32>
    %800 = vector.broadcast %799 : vector<32x1xf32> to vector<32x16xf32>
    %801 = arith.cmpf ogt, %793, %800 : vector<32x16xf32>
    %cst_145 = arith.constant 0.000000e+00 : f32
    %802 = vector.broadcast %cst_145 : f32 to vector<32x16xf32>
    %803 = arith.select %801, %793, %802 : vector<32x16xi1>, vector<32x16xf32>
    %c0_146 = arith.constant 0 : index
    %c0_147 = arith.constant 0 : index
    %c0_148 = arith.constant 0 : index
    %804 = vector.load %arg3[%c0_146, %c0_147, %c0_148] : memref<1x32x16xf32, #tpu.memory_space<vmem>>, vector<1x32x16xf32>
    %805 = vector.shape_cast %804 : vector<1x32x16xf32> to vector<32x16xf32>
    %806 = vector.shape_cast %803 : vector<32x16xf32> to vector<1x32x16xf32>
    tpu.vector_store %arg3[%c0_146, %c0_147, %c0_148], %806 {strides = array<i32>} : memref<1x32x16xf32, #tpu.memory_space<vmem>>, vector<1x32x16xf32>,
    %c15_i32 = arith.constant 15 : i32
    %807 = vector.broadcast %c15_i32 : i32 to vector<32x16xi32>
    %808 = arith.andi %781, %807 : vector<32x16xi32>
    %c-1_i32 = arith.constant -1 : i32
    %809 = vector.broadcast %c-1_i32 : i32 to vector<32x16xi32>
    %810 = arith.select %801, %808, %809 : vector<32x16xi1>, vector<32x16xi32>
    %c0_149 = arith.constant 0 : index
    %c0_150 = arith.constant 0 : index
    %c0_151 = arith.constant 0 : index
    %811 = vector.load %arg4[%c0_149, %c0_150, %c0_151] : memref<1x32x16xi32, #tpu.memory_space<vmem>>, vector<1x32x16xi32>
    %812 = vector.shape_cast %811 : vector<1x32x16xi32> to vector<32x16xi32>
    %813 = vector.shape_cast %810 : vector<32x16xi32> to vector<1x32x16xi32>
    tpu.vector_store %arg4[%c0_149, %c0_150, %c0_151], %813 {strides = array<i32>} : memref<1x32x16xi32, #tpu.memory_space<vmem>>, vector<1x32x16xi32>,
    %c0_152 = arith.constant 0 : index
    %c0_153 = arith.constant 0 : index
    %c0_154 = arith.constant 0 : index
    %814 = vector.load %arg5[%c0_152, %c0_153, %c0_154] : memref<1x32x1xf32, #tpu.memory_space<vmem>>, vector<1x32x1xf32>
    %815 = vector.shape_cast %814 : vector<1x32x1xf32> to vector<32x1xf32>
    %816 = vector.shape_cast %797 : vector<32x1xf32> to vector<1x32x1xf32>
    tpu.vector_store %arg5[%c0_152, %c0_153, %c0_154], %816 {strides = array<i32>} : memref<1x32x1xf32, #tpu.memory_space<vmem>>, vector<1x32x1xf32>,
    return
  }
  func.func @transform_0(%arg0: i32, %arg1: i32) -> (i32, i32, i32, i32) {
    %c0_i32 = arith.constant 0 : i32
    %c0_i32_0 = arith.constant 0 : i32
    %c0_i32_1 = arith.constant 0 : i32
    return %arg0, %c0_i32, %arg1, %c0_i32_0 : i32, i32, i32, i32
  }
  func.func @transform_1(%arg0: i32, %arg1: i32) -> (i32, i32, i32) {
    %c0_i32 = arith.constant 0 : i32
    %c0_i32_0 = arith.constant 0 : i32
    return %arg0, %arg1, %c0_i32 : i32, i32, i32
  }
  func.func @transform_2(%arg0: i32, %arg1: i32) -> (i32, i32, i32) {
    %c0_i32 = arith.constant 0 : i32
    %c0_i32_0 = arith.constant 0 : i32
    return %arg0, %arg1, %c0_i32 : i32, i32, i32
  }
  func.func @transform_3(%arg0: i32, %arg1: i32) -> (i32, i32, i32) {
    %c0_i32 = arith.constant 0 : i32
    %c0_i32_0 = arith.constant 0 : i32
    return %arg0, %arg1, %c0_i32 : i32, i32, i32
  }
}

</mosaic_0001>

<llo_original>
// kernel: tpu_custom_call.1
$region0: #{tpu_custom_call.1}
  #allocation0 [shape = 'u32[]', space=smem, size = 0x4, offset = 0x4, fixed_abs, tag = 'smem constant byte address 0x4 - core index']
  #allocation1 [shape = 'u32[144,128]{1,0:T(1,128)}', space=vmem, size = 0x12000, scoped, tag = 'internal scratch']
  %s0 = inlined_call_operand.vmem [shape: f32[2,3,32,16], index: 0, kind: input, shape index: {}]
  %s1 = inlined_call_operand.vmem [shape: f32[2,32,16], index: 1, kind: output, shape index: {0}]
  %s2 = inlined_call_operand.vmem [shape: s32[2,32,16], index: 2, kind: output, shape index: {1}]
  %s3 = inlined_call_operand.vmem [shape: f32[2,32,1], index: 3, kind: output, shape index: {2}]
  %4 = xla_tuple %s1, %s2, %s3
  %s5 = sld [smem:[#allocation0]]
  $region53: #{tpu_custom_call.1} parent=0
    _
  %s7 = ssub.s32 1, %s5
  %s8 = scalar_select 0, %s7, %s5
  loop: start=0, step=1, limit=4
  $region2: #{tpu_custom_call.1} parent=0 // loop_pre_header
    _
  $region3: #{tpu_custom_call.1} parent=0 // loop_header
    %s10 = sphi 0, %s14
    %p11 = scmp.ge.s32.totalorder %s10, 4
    %s17 = sphi 0, %s29
    %s18 = sphi 0, %s25
    %s19 = sphi 0, %s17
    %s20 = sphi 0, %s18
    %s21 = sphi 0, %s19
    %s22 = sphi 0, %s20
    %s34 = sphi 0, %s36
    %s37 = sphi 0, %s34
    %s38 = sphi 0, %s37
    %s54 = sphi 0, %s38
    %s62 = sphi 0, %s64
    %s65 = sphi 0, %s62
    %s66 = sphi 0, %s65
    %s82 = sphi 0, %s66
    %s90 = sphi 0, %s92
    %s93 = sphi 0, %s90
    %s94 = sphi 0, %s93
    %s110 = sphi 0, %s94
    %s118 = sphi 0, %s120
    %s121 = sphi 0, %s118
    %s122 = sphi 0, %s121
    %s138 = sphi 0, %s122
  $region4: #{tpu_custom_call.1} parent=0 // loop_header_branch
    %13 = sbr.rel (%p11) target = $region8
  $region5: #{tpu_custom_call.1} parent=0 // loop_body
    %s15 = ssub.s32 %s10, 1
    %s16 = ssub.s32 %s10, 2
    %s23 = sadd.s32 1, %s18
    %p24 = scmp.ge.s32.totalorder %s23, 1
    %s25 = scalar_select %p24, 0, %s23
    %s26 = sadd.s32 1, %s17
    %s27 = scalar_select %p24, %s26, %s17
    %p28 = scmp.ge.s32.totalorder %s27, 2
    %s29 = scalar_select %p28, 0, %s27
    %s30 = ssub.s32 %s17, %s29
    %s31 = ssub.s32 %s18, %s25
    %s32 = sor.u32 %s30, %s31
    %p33 = scmp.eq.s32.totalorder %s32, 0
    %s35 = sadd.s32 %s34, 1
    %s36 = scalar_select %p33, %s34, %s35
    %p39 = pneg %p33
    %p40 = scmp.eq.s32.totalorder %s10, 1
    %p41 = por %p39, %p40
    %p42 = scmp.ne.s32.totalorder %s34, %s37
    %p43 = scmp.eq.s32.totalorder %s10, 0
    %p44 = por %p42, %p43
    %p45 = scmp.ne.s32.totalorder %s34, %s37
    %p46 = scmp.eq.s32.totalorder %s15, 1
    %p47 = por %p45, %p46
    %p48 = scmp.ne.s32.totalorder %s37, %s38
    %p49 = scmp.eq.s32.totalorder %s15, 0
    %p50 = por %p48, %p49
    %p51 = scmp.ne.s32.totalorder %s37, %s38
    %p52 = scmp.eq.s32.totalorder %s16, 1
    %p53 = por %p51, %p52
    %p55 = scmp.ne.s32.totalorder %s38, %s54
    %p56 = scmp.eq.s32.totalorder %s16, 0
    %p57 = por %p55, %p56
    %s58 = ssub.s32 %s17, %s29
    %s59 = ssub.s32 %s18, %s25
    %s60 = sor.u32 %s58, %s59
    %p61 = scmp.eq.s32.totalorder %s60, 0
    %s63 = sadd.s32 %s62, 1
    %s64 = scalar_select %p61, %s62, %s63
    %p67 = pneg %p61
    %p68 = scmp.eq.s32.totalorder %s10, 1
    %p69 = por %p67, %p68
    %p70 = scmp.ne.s32.totalorder %s62, %s65
    %p71 = scmp.eq.s32.totalorder %s10, 0
    %p72 = por %p70, %p71
    %p73 = scmp.ne.s32.totalorder %s62, %s65
    %p74 = scmp.eq.s32.totalorder %s15, 1
    %p75 = por %p73, %p74
    %p76 = scmp.ne.s32.totalorder %s65, %s66
    %p77 = scmp.eq.s32.totalorder %s15, 0
    %p78 = por %p76, %p77
    %p79 = scmp.ne.s32.totalorder %s65, %s66
    %p80 = scmp.eq.s32.totalorder %s16, 1
    %p81 = por %p79, %p80
    %p83 = scmp.ne.s32.totalorder %s66, %s82
    %p84 = scmp.eq.s32.totalorder %s16, 0
    %p85 = por %p83, %p84
    %s86 = ssub.s32 %s17, %s29
    %s87 = ssub.s32 %s18, %s25
    %s88 = sor.u32 %s86, %s87
    %p89 = scmp.eq.s32.totalorder %s88, 0
    %s91 = sadd.s32 %s90, 1
    %s92 = scalar_select %p89, %s90, %s91
    %p95 = pneg %p89
    %p96 = scmp.eq.s32.totalorder %s10, 1
    %p97 = por %p95, %p96
    %p98 = scmp.ne.s32.totalorder %s90, %s93
    %p99 = scmp.eq.s32.totalorder %s10, 0
    %p100 = por %p98, %p99
    %p101 = scmp.ne.s32.totalorder %s90, %s93
    %p102 = scmp.eq.s32.totalorder %s15, 1
    %p103 = por %p101, %p102
    %p104 = scmp.ne.s32.totalorder %s93, %s94
    %p105 = scmp.eq.s32.totalorder %s15, 0
    %p106 = por %p104, %p105
    %p107 = scmp.ne.s32.totalorder %s93, %s94
    %p108 = scmp.eq.s32.totalorder %s16, 1
    %p109 = por %p107, %p108
    %p111 = scmp.ne.s32.totalorder %s94, %s110
    %p112 = scmp.eq.s32.totalorder %s16, 0
    %p113 = por %p111, %p112
    %s114 = ssub.s32 %s17, %s29
    %s115 = ssub.s32 %s18, %s25
    %s116 = sor.u32 %s114, %s115
    %p117 = scmp.eq.s32.totalorder %s116, 0
    %s119 = sadd.s32 %s118, 1
    %s120 = scalar_select %p117, %s118, %s119
    %p123 = pneg %p117
    %p124 = scmp.eq.s32.totalorder %s10, 1
    %p125 = por %p123, %p124
    %p126 = scmp.ne.s32.totalorder %s118, %s121
    %p127 = scmp.eq.s32.totalorder %s10, 0
    %p128 = por %p126, %p127
    %p129 = scmp.ne.s32.totalorder %s118, %s121
    %p130 = scmp.eq.s32.totalorder %s15, 1
    %p131 = por %p129, %p130
    %p132 = scmp.ne.s32.totalorder %s121, %s122
    %p133 = scmp.eq.s32.totalorder %s15, 0
    %p134 = por %p132, %p133
    %p135 = scmp.ne.s32.totalorder %s121, %s122
    %p136 = scmp.eq.s32.totalorder %s16, 1
    %p137 = por %p135, %p136
    %p139 = scmp.ne.s32.totalorder %s122, %s138
    %p140 = scmp.eq.s32.totalorder %s16, 0
    %p141 = por %p139, %p140
    %p142 = scmp.le.s32.totalorder 1, %s10
    %p143 = scmp.lt.s32.totalorder %s10, 3
    %p144 = pnand %p142, %p143
    %p145 = pneg %p144
    // Predicated region
    $region9: #{tpu_custom_call.1} parent=5 // pred_check
      _
    $region10: #{tpu_custom_call.1} parent=5 // pred_check_branch
      %147 = sbr.rel (%p144) target = $region12
    $region11: #{tpu_custom_call.1} parent=5 // pred_region
      %s148 = ssub.s32 %s10, 1
    $region12: #{tpu_custom_call.1} parent=5 // pred_fallthru
      _
    %p149 = scmp.lt.s32.totalorder %s10, 2
    // Predicated region
    $region13: #{tpu_custom_call.1} parent=5 // pred_check
      %p150 = pneg %p149
    $region14: #{tpu_custom_call.1} parent=5 // pred_check_branch
      %152 = sbr.rel (%p150) target = $region16
    $region15: #{tpu_custom_call.1} parent=5 // pred_region
      // Predicated region
      $region17: #{tpu_custom_call.1} parent=15 // pred_check
        %p153 = pneg %p44
      $region18: #{tpu_custom_call.1} parent=15 // pred_check_branch
        %155 = sbr.rel (%p153) target = $region20
      $region19: #{tpu_custom_call.1} parent=15 // pred_region
        %s156 = smul.u32 4, %s18
        %p157 = scmp.lt.s32.totalorder %s17, 1
        %s158 = scalar_select %p157, %s17, 1
        %p159 = scmp.lt.s32.totalorder %s156, 3
        %s160 = scalar_select %p159, %s156, 3
        %s161 = smul.addr %s158, 12
        %s162 = sadd.s32 %s160, %s161
        %s163 = smul.addr %s162, 8
        %s164 = scalar_lea.vmem %s0, %s163
        %s165 = smul.u32 4, %s18
      $region20: #{tpu_custom_call.1} parent=15 // pred_fallthru
        _
    $region16: #{tpu_custom_call.1} parent=5 // pred_fallthru
      _
    %p166 = scmp.le.s32.totalorder 1, %s10
    %p167 = scmp.lt.s32.totalorder %s10, 3
    %p168 = pnand %p166, %p167
    %p169 = pneg %p168
    // Predicated region
    $region21: #{tpu_custom_call.1} parent=5 // pred_check
      _
    $region22: #{tpu_custom_call.1} parent=5 // pred_check_branch
      %171 = sbr.rel (%p168) target = $region24
    $region23: #{tpu_custom_call.1} parent=5 // pred_region
      %s172 = ssub.s32 %s10, 1
      %s173 = smul.u32 4, %s20
      %p174 = scmp.lt.s32.totalorder %s19, 1
      %s175 = scalar_select %p174, %s19, 1
      %p176 = scmp.lt.s32.totalorder %s173, 3
      %s177 = scalar_select %p176, %s173, 3
      %s178 = smul.addr %s175, 12
      %s179 = sadd.s32 %s177, %s178
      %s180 = smul.addr %s179, 8
      %s181 = scalar_lea.vmem %s0, %s180
      %p182 = pneg %p50
      %p183 = pneg %p47
      %p184 = pneg %p78
      %p185 = pneg %p75
      %s186 = smul.u32 4, %s20
      %p187 = scmp.lt.s32.totalorder %s19, 1
      %s188 = scalar_select %p187, %s19, 1
      %p189 = scmp.lt.s32.totalorder %s186, 3
      %s190 = scalar_select %p189, %s186, 3
      %s191 = smul.addr %s188, 4
      %s192 = sadd.s32 %s190, %s191
      %s193 = smul.addr %s192, 8
      %s194 = scalar_lea.vmem %s1, %s193
      %p195 = pneg %p106
      %p196 = pneg %p103
      %s197 = smul.u32 4, %s20
      %p198 = scmp.lt.s32.totalorder %s19, 1
      %s199 = scalar_select %p198, %s19, 1
      %p200 = scmp.lt.s32.totalorder %s197, 3
      %s201 = scalar_select %p200, %s197, 3
      %s202 = smul.addr %s199, 4
      %s203 = sadd.s32 %s201, %s202
      %s204 = smul.addr %s203, 8
      %s205 = scalar_lea.vmem %s2, %s204
      %p206 = pneg %p134
      %p207 = pneg %p131
      %s208 = smul.u32 4, %s20
      %p209 = scmp.lt.s32.totalorder %s19, 1
      %s210 = scalar_select %p209, %s19, 1
      %p211 = scmp.lt.s32.totalorder %s208, 3
      %s212 = scalar_select %p211, %s208, 3
      %s213 = smul.addr %s210, 4
      %s214 = sadd.s32 %s212, %s213
      %s215 = smul.addr %s214, 8
      %s216 = scalar_lea.vmem %s3, %s215
      %s217 = smul.u32 4, %s20
      %p218 = scmp.lt.s32.totalorder %s19, 1
      %s219 = scalar_select %p218, %s19, 1
      %p220 = scmp.lt.s32.totalorder %s217, 3
      %s221 = scalar_select %p220, %s217, 3
      %s222 = smul.addr %s219, 12
      %s223 = sadd.s32 %s221, %s222
      %s224 = smul.addr %s223, 8
      %s225 = scalar_lea.vmem %s0, %s224
      %s226 = smul.u32 4, %s20
      %s227 = smul.u32 4, %s20
      %p228 = scmp.lt.s32.totalorder %s19, 1
      %s229 = scalar_select %p228, %s19, 1
      %p230 = scmp.lt.s32.totalorder %s227, 3
      %s231 = scalar_select %p230, %s227, 3
      %s232 = smul.addr %s229, 4
      %s233 = sadd.s32 %s231, %s232
      %s234 = smul.addr %s233, 8
      %s235 = scalar_lea.vmem %s1, %s234
      %s236 = smul.u32 4, %s20
      %s237 = smul.u32 4, %s20
      %p238 = scmp.lt.s32.totalorder %s19, 1
      %s239 = scalar_select %p238, %s19, 1
      %p240 = scmp.lt.s32.totalorder %s237, 3
      %s241 = scalar_select %p240, %s237, 3
      %s242 = smul.addr %s239, 4
      %s243 = sadd.s32 %s241, %s242
      %s244 = smul.addr %s243, 8
      %s245 = scalar_lea.vmem %s2, %s244
      %s246 = smul.u32 4, %s20
      %s247 = smul.u32 4, %s20
      %p248 = scmp.lt.s32.totalorder %s19, 1
      %s249 = scalar_select %p248, %s19, 1
      %p250 = scmp.lt.s32.totalorder %s247, 3
      %s251 = scalar_select %p250, %s247, 3
      %s252 = smul.addr %s249, 4
      %s253 = sadd.s32 %s251, %s252
      %s254 = smul.addr %s253, 8
      %s255 = scalar_lea.vmem %s3, %s254
      %s256 = smul.u32 4, %s20
      %v257 = vld [vmem:[%s225] sm:$0xff]
      %v258 = vld [vmem:[%s225 + $0x8] sm:$0xff]
      %v259 = vld [vmem:[%s225 + $0x10] sm:$0xff]
      %v260 = vld [vmem:[%s225 + $0x18] sm:$0xff]
      %v261 = vld [vmem:[%s225 + $0x20] sm:$0xff]
      %v262 = vld [vmem:[%s225 + $0x28] sm:$0xff]
      %v263 = vld [vmem:[%s225 + $0x30] sm:$0xff]
      %v264 = vld [vmem:[%s225 + $0x38] sm:$0xff]
      %v265 = vld [vmem:[%s225 + $0x40] sm:$0xff]
      %v266 = vld [vmem:[%s225 + $0x48] sm:$0xff]
      %v267 = vld [vmem:[%s225 + $0x50] sm:$0xff]
      %v268 = vld [vmem:[%s225 + $0x58] sm:$0xff]
      %v269 = vlaneseq
      %v270 = vand.u32 %v269, 127
      %v271 = vshll.u32 %v270, 4
      %vm272 = vcmp.eq.s32.totalorder %v270, 0
      %v273 = vsel %vm272, 1, 0
      %275 = vset.pattern.permute.xlu0 0
      %276 = vperm.xlu0 %275, %v257
      %v277 = vpop.permute.xlu0 %276
      %280 = vset.pattern.permute.xlu0 0
      %281 = vperm.xlu0 %280, %v258
      %v282 = vpop.permute.xlu0 %281
      %285 = vset.pattern.permute.xlu0 0
      %286 = vperm.xlu0 %285, %v259
      %v287 = vpop.permute.xlu0 %286
      %290 = vset.pattern.permute.xlu0 0
      %291 = vperm.xlu0 %290, %v260
      %v292 = vpop.permute.xlu0 %291
      %295 = vset.pattern.permute.xlu0 0
      %296 = vperm.xlu0 %295, %v261
      %v297 = vpop.permute.xlu0 %296
      %300 = vset.pattern.permute.xlu0 0
      %301 = vperm.xlu0 %300, %v262
      %v302 = vpop.permute.xlu0 %301
      %305 = vset.pattern.permute.xlu0 0
      %306 = vperm.xlu0 %305, %v263
      %v307 = vpop.permute.xlu0 %306
      %310 = vset.pattern.permute.xlu0 0
      %311 = vperm.xlu0 %310, %v264
      %v312 = vpop.permute.xlu0 %311
      %315 = vset.pattern.permute.xlu0 0
      %316 = vperm.xlu0 %315, %v265
      %v317 = vpop.permute.xlu0 %316
      %320 = vset.pattern.permute.xlu0 0
      %321 = vperm.xlu0 %320, %v266
      %v322 = vpop.permute.xlu0 %321
      %325 = vset.pattern.permute.xlu0 0
      %326 = vperm.xlu0 %325, %v267
      %v327 = vpop.permute.xlu0 %326
      %330 = vset.pattern.permute.xlu0 0
      %331 = vperm.xlu0 %330, %v268
      %v332 = vpop.permute.xlu0 %331
      %v334 = vsub.f32 %v257, %v277
      %v335 = vsub.f32 %v258, %v282
      %v336 = vsub.f32 %v259, %v287
      %v337 = vsub.f32 %v260, %v292
      %v338 = vsub.f32 %v261, %v297
      %v339 = vsub.f32 %v262, %v302
      %v340 = vsub.f32 %v263, %v307
      %v341 = vsub.f32 %v264, %v312
      %v342 = vsub.f32 %v265, %v317
      %v343 = vsub.f32 %v266, %v322
      %v344 = vsub.f32 %v267, %v327
      %v345 = vsub.f32 %v268, %v332
      %v346 = vmul.f32 %v334, %v334
      %v347 = vmul.f32 %v335, %v335
      %v348 = vmul.f32 %v336, %v336
      %v349 = vmul.f32 %v337, %v337
      %v350 = vmul.f32 %v338, %v338
      %v351 = vmul.f32 %v339, %v339
      %v352 = vmul.f32 %v340, %v340
      %v353 = vmul.f32 %v341, %v341
      %v354 = vadd.f32 %v346, %v350
      %v355 = vadd.f32 %v347, %v351
      %v356 = vadd.f32 %v348, %v352
      %v357 = vadd.f32 %v349, %v353
      %v358 = vmul.f32 %v342, %v342
      %v359 = vmul.f32 %v343, %v343
      %v360 = vmul.f32 %v344, %v344
      %v361 = vmul.f32 %v345, %v345
      %v362 = vadd.f32 %v354, %v358
      %v363 = vadd.f32 %v355, %v359
      %v364 = vadd.f32 %v356, %v360
      %v365 = vadd.f32 %v357, %v361
      %vm366 = vcmp.eq.s32.totalorder %v273, 0
      %vm367 = vcmp.lt.f32.partialorder %v362, 1e+30
      %vm368 = vcmp.lt.f32.partialorder %v363, 1e+30
      %vm369 = vcmp.lt.f32.partialorder %v364, 1e+30
      %vm370 = vcmp.lt.f32.partialorder %v365, 1e+30
      %vm371 = vmand %vm366, %vm367
      %vm372 = vmand %vm366, %vm368
      %vm373 = vmand %vm366, %vm369
      %vm374 = vmand %vm366, %vm370
      %v375 = vsel %vm371, %v362, 1e+30
      %v376 = vsel %vm372, %v363, 1e+30
      %v377 = vsel %vm373, %v364, 1e+30
      %v378 = vsel %vm374, %v365, 1e+30
      %vm379 = vcmask 130048
      %v380 = vsel %vm379, %v375, inf
      %381 = vmin.xlane.f32.xlu0 %v380
      %v382 = vpop.xlane.xlu0 %381
      %v383 = vsel %vm379, %v376, inf
      %384 = vmin.xlane.f32.xlu0 %v383
      %v385 = vpop.xlane.xlu0 %384
      %v386 = vsel %vm379, %v377, inf
      %387 = vmin.xlane.f32.xlu0 %v386
      %v388 = vpop.xlane.xlu0 %387
      %v389 = vsel %vm379, %v378, inf
      %390 = vmin.xlane.f32.xlu0 %v389
      %v391 = vpop.xlane.xlu0 %390
      %vm392 = vcmp.eq.f32.partialorder %v375, %v382
      %vm393 = vcmp.eq.f32.partialorder %v376, %v385
      %vm394 = vcmp.eq.f32.partialorder %v377, %v388
      %vm395 = vcmp.eq.f32.partialorder %v378, %v391
      %v396 = vsel %vm392, %v271, 1073741823
      %v397 = vsel %vm393, %v271, 1073741823
      %v398 = vsel %vm394, %v271, 1073741823
      %v399 = vsel %vm395, %v271, 1073741823
      %v400 = vsel %vm379, %v396, 2147483647
      %v401 = vand.u32 %v400, 65535
      %v402 = vshra.s32 %v400, 16
      %v403 = vcvt.s32.f32 %v401
      %v404 = vcvt.s32.f32 %v402
      %405 = vmin.xlane.f32.xlu0 %v404
      %v406 = vpop.xlane.xlu0 %405
      %vm407 = vcmp.eq.f32.partialorder %v404, %v406
      %v408 = vsel %vm407, %v403, inf
      %409 = vmin.xlane.f32.xlu0 %v408
      %v410 = vpop.xlane.xlu0 %409
      %v411 = vcvt.f32.s32 %v410
      %v412 = vcvt.f32.s32 %v406
      %v413 = vshll.u32 %v412, 16
      %v414 = vadd.s32 %v413, %v411
      %v415 = vsel %vm379, %v397, 2147483647
      %v416 = vand.u32 %v415, 65535
      %v417 = vshra.s32 %v415, 16
      %v418 = vcvt.s32.f32 %v416
      %v419 = vcvt.s32.f32 %v417
      %420 = vmin.xlane.f32.xlu0 %v419
      %v421 = vpop.xlane.xlu0 %420
      %vm422 = vcmp.eq.f32.partialorder %v419, %v421
      %v423 = vsel %vm422, %v418, inf
      %424 = vmin.xlane.f32.xlu0 %v423
      %v425 = vpop.xlane.xlu0 %424
      %v426 = vcvt.f32.s32 %v425
      %v427 = vcvt.f32.s32 %v421
      %v428 = vshll.u32 %v427, 16
      %v429 = vadd.s32 %v428, %v426
      %v430 = vsel %vm379, %v398, 2147483647
      %v431 = vand.u32 %v430, 65535
      %v432 = vshra.s32 %v430, 16
      %v433 = vcvt.s32.f32 %v431
      %v434 = vcvt.s32.f32 %v432
      %435 = vmin.xlane.f32.xlu0 %v434
      %v436 = vpop.xlane.xlu0 %435
      %vm437 = vcmp.eq.f32.partialorder %v434, %v436
      %v438 = vsel %vm437, %v433, inf
      %439 = vmin.xlane.f32.xlu0 %v438
      %v440 = vpop.xlane.xlu0 %439
      %v441 = vcvt.f32.s32 %v440
      %v442 = vcvt.f32.s32 %v436
      %v443 = vshll.u32 %v442, 16
      %v444 = vadd.s32 %v443, %v441
      %v445 = vsel %vm379, %v399, 2147483647
      %v446 = vand.u32 %v445, 65535
      %v447 = vshra.s32 %v445, 16
      %v448 = vcvt.s32.f32 %v446
      %v449 = vcvt.s32.f32 %v447
      %450 = vmin.xlane.f32.xlu0 %v449
      %v451 = vpop.xlane.xlu0 %450
      %vm452 = vcmp.eq.f32.partialorder %v449, %v451
      %v453 = vsel %vm452, %v448, inf
      %454 = vmin.xlane.f32.xlu0 %v453
      %v455 = vpop.xlane.xlu0 %454
      %v456 = vcvt.f32.s32 %v455
      %v457 = vcvt.f32.s32 %v451
      %v458 = vshll.u32 %v457, 16
      %v459 = vadd.s32 %v458, %v456
      %vm460 = vcmp.eq.s32.totalorder %v271, %v414
      %vm461 = vcmp.eq.s32.totalorder %v271, %v429
      %vm462 = vcmp.eq.s32.totalorder %v271, %v444
      %vm463 = vcmp.eq.s32.totalorder %v271, %v459
      %v464 = vsel %vm460, 1, %v273
      %v465 = vsel %vm461, 1, %v273
      %v466 = vsel %vm462, 1, %v273
      %v467 = vsel %vm463, 1, %v273
      %v468 = vsel %vm460, %v375, 0.0
      %v469 = vsel %vm461, %v376, 0.0
      %v470 = vsel %vm462, %v377, 0.0
      %v471 = vsel %vm463, %v378, 0.0
      %v472 = vsel %vm460, %v271, 0
      %v473 = vsel %vm461, %v271, 0
      %v474 = vsel %vm462, %v271, 0
      %v475 = vsel %vm463, %v271, 0
      %v476 = vsel %vm460, 1e+30, %v375
      %v477 = vsel %vm461, 1e+30, %v376
      %v478 = vsel %vm462, 1e+30, %v377
      %v479 = vsel %vm463, 1e+30, %v378
      %v480 = vsel %vm460, 1, 0
      %v481 = vsel %vm461, 1, 0
      %v482 = vsel %vm462, 1, 0
      %v483 = vsel %vm463, 1, 0
      %vm484 = vcmp.eq.s32.totalorder %v480, 1
      %vm485 = vcmp.eq.s32.totalorder %v481, 1
      %vm486 = vcmp.eq.s32.totalorder %v482, 1
      %vm487 = vcmp.eq.s32.totalorder %v483, 1
      %v488 = vsel %vm484, %v257, 0.0
      %v489 = vsel %vm485, %v258, 0.0
      %v490 = vsel %vm486, %v259, 0.0
      %v491 = vsel %vm487, %v260, 0.0
      %v492 = vsel %vm484, %v261, 0.0
      %v493 = vsel %vm485, %v262, 0.0
      %v494 = vsel %vm486, %v263, 0.0
      %v495 = vsel %vm487, %v264, 0.0
      %v496 = vsel %vm484, %v265, 0.0
      %v497 = vsel %vm485, %v266, 0.0
      %v498 = vsel %vm486, %v267, 0.0
      %v499 = vsel %vm487, %v268, 0.0
      %v500 = vsel %vm379, %v488, 0.0
      %501 = vadd.xlane.f32.xlu0 %v500
      %v502 = vpop.xlane.xlu0 %501
      %v503 = vsel %vm379, %v489, 0.0
      %504 = vadd.xlane.f32.xlu0 %v503
      %v505 = vpop.xlane.xlu0 %504
      %v506 = vsel %vm379, %v490, 0.0
      %507 = vadd.xlane.f32.xlu0 %v506
      %v508 = vpop.xlane.xlu0 %507
      %v509 = vsel %vm379, %v491, 0.0
      %510 = vadd.xlane.f32.xlu0 %v509
      %v511 = vpop.xlane.xlu0 %510
      %v512 = vsel %vm379, %v492, 0.0
      %513 = vadd.xlane.f32.xlu0 %v512
      %v514 = vpop.xlane.xlu0 %513
      %v515 = vsel %vm379, %v493, 0.0
      %516 = vadd.xlane.f32.xlu0 %v515
      %v517 = vpop.xlane.xlu0 %516
      %v518 = vsel %vm379, %v494, 0.0
      %519 = vadd.xlane.f32.xlu0 %v518
      %v520 = vpop.xlane.xlu0 %519
      %v521 = vsel %vm379, %v495, 0.0
      %522 = vadd.xlane.f32.xlu0 %v521
      %v523 = vpop.xlane.xlu0 %522
      %v524 = vsel %vm379, %v496, 0.0
      %525 = vadd.xlane.f32.xlu0 %v524
      %v526 = vpop.xlane.xlu0 %525
      %v527 = vsel %vm379, %v497, 0.0
      %528 = vadd.xlane.f32.xlu0 %v527
      %v529 = vpop.xlane.xlu0 %528
      %v530 = vsel %vm379, %v498, 0.0
      %531 = vadd.xlane.f32.xlu0 %v530
      %v532 = vpop.xlane.xlu0 %531
      %v533 = vsel %vm379, %v499, 0.0
      %534 = vadd.xlane.f32.xlu0 %v533
      %v535 = vpop.xlane.xlu0 %534
      %v536 = vshra.s32 %v414, 4
      %v537 = vshra.s32 %v429, 4
      %v538 = vshra.s32 %v444, 4
      %v539 = vshra.s32 %v459, 4
      %v540 = vsub.f32 %v257, %v502
      %v541 = vsub.f32 %v258, %v505
      %v542 = vsub.f32 %v259, %v508
      %v543 = vsub.f32 %v260, %v511
      %v544 = vsub.f32 %v261, %v514
      %v545 = vsub.f32 %v262, %v517
      %v546 = vsub.f32 %v263, %v520
      %v547 = vsub.f32 %v264, %v523
      %v548 = vsub.f32 %v265, %v526
      %v549 = vsub.f32 %v266, %v529
      %v550 = vsub.f32 %v267, %v532
      %v551 = vsub.f32 %v268, %v535
      %v552 = vmul.f32 %v540, %v540
      %v553 = vmul.f32 %v541, %v541
      %v554 = vmul.f32 %v542, %v542
      %v555 = vmul.f32 %v543, %v543
      %v556 = vmul.f32 %v544, %v544
      %v557 = vmul.f32 %v545, %v545
      %v558 = vmul.f32 %v546, %v546
      %v559 = vmul.f32 %v547, %v547
      %v560 = vadd.f32 %v552, %v556
      %v561 = vadd.f32 %v553, %v557
      %v562 = vadd.f32 %v554, %v558
      %v563 = vadd.f32 %v555, %v559
      %v564 = vmul.f32 %v548, %v548
      %v565 = vmul.f32 %v549, %v549
      %v566 = vmul.f32 %v550, %v550
      %v567 = vmul.f32 %v551, %v551
      %v568 = vadd.f32 %v560, %v564
      %v569 = vadd.f32 %v561, %v565
      %v570 = vadd.f32 %v562, %v566
      %v571 = vadd.f32 %v563, %v567
      %vm572 = vcmp.eq.s32.totalorder %v464, 0
      %vm573 = vcmp.eq.s32.totalorder %v465, 0
      %vm574 = vcmp.eq.s32.totalorder %v466, 0
      %vm575 = vcmp.eq.s32.totalorder %v467, 0
      %vm576 = vcmp.lt.f32.partialorder %v568, %v476
      %vm577 = vcmp.lt.f32.partialorder %v569, %v477
      %vm578 = vcmp.lt.f32.partialorder %v570, %v478
      %vm579 = vcmp.lt.f32.partialorder %v571, %v479
      %vm580 = vmand %vm572, %vm576
      %vm581 = vmand %vm573, %vm577
      %vm582 = vmand %vm574, %vm578
      %vm583 = vmand %vm575, %vm579
      %v584 = vsel %vm580, %v568, %v476
      %v585 = vsel %vm581, %v569, %v477
      %v586 = vsel %vm582, %v570, %v478
      %v587 = vsel %vm583, %v571, %v479
      %v588 = vadd.s32 %v271, %v536
      %v589 = vadd.s32 %v271, %v537
      %v590 = vadd.s32 %v271, %v538
      %v591 = vadd.s32 %v271, %v539
      %v592 = vsel %vm580, %v588, %v271
      %v593 = vsel %vm581, %v589, %v271
      %v594 = vsel %vm582, %v590, %v271
      %v595 = vsel %vm583, %v591, %v271
      %v596 = vsel %vm379, %v584, inf
      %597 = vmin.xlane.f32.xlu0 %v596
      %v598 = vpop.xlane.xlu0 %597
      %v599 = vsel %vm379, %v585, inf
      %600 = vmin.xlane.f32.xlu0 %v599
      %v601 = vpop.xlane.xlu0 %600
      %v602 = vsel %vm379, %v586, inf
      %603 = vmin.xlane.f32.xlu0 %v602
      %v604 = vpop.xlane.xlu0 %603
      %v605 = vsel %vm379, %v587, inf
      %606 = vmin.xlane.f32.xlu0 %v605
      %v607 = vpop.xlane.xlu0 %606
      %vm608 = vcmp.eq.f32.partialorder %v584, %v598
      %vm609 = vcmp.eq.f32.partialorder %v585, %v601
      %vm610 = vcmp.eq.f32.partialorder %v586, %v604
      %vm611 = vcmp.eq.f32.partialorder %v587, %v607
      %v612 = vsel %vm608, %v592, 1073741823
      %v613 = vsel %vm609, %v593, 1073741823
      %v614 = vsel %vm610, %v594, 1073741823
      %v615 = vsel %vm611, %v595, 1073741823
      %v616 = vsel %vm379, %v612, 2147483647
      %v617 = vand.u32 %v616, 65535
      %v618 = vshra.s32 %v616, 16
      %v619 = vcvt.s32.f32 %v617
      %v620 = vcvt.s32.f32 %v618
      %621 = vmin.xlane.f32.xlu0 %v620
      %v622 = vpop.xlane.xlu0 %621
      %vm623 = vcmp.eq.f32.partialorder %v620, %v622
      %v624 = vsel %vm623, %v619, inf
      %625 = vmin.xlane.f32.xlu0 %v624
      %v626 = vpop.xlane.xlu0 %625
      %v627 = vcvt.f32.s32 %v626
      %v628 = vcvt.f32.s32 %v622
      %v629 = vshll.u32 %v628, 16
      %v630 = vadd.s32 %v629, %v627
      %v631 = vsel %vm379, %v613, 2147483647
      %v632 = vand.u32 %v631, 65535
      %v633 = vshra.s32 %v631, 16
      %v634 = vcvt.s32.f32 %v632
      %v635 = vcvt.s32.f32 %v633
      %636 = vmin.xlane.f32.xlu0 %v635
      %v637 = vpop.xlane.xlu0 %636
      %vm638 = vcmp.eq.f32.partialorder %v635, %v637
      %v639 = vsel %vm638, %v634, inf
      %640 = vmin.xlane.f32.xlu0 %v639
      %v641 = vpop.xlane.xlu0 %640
      %v642 = vcvt.f32.s32 %v641
      %v643 = vcvt.f32.s32 %v637
      %v644 = vshll.u32 %v643, 16
      %v645 = vadd.s32 %v644, %v642
      %v646 = vsel %vm379, %v614, 2147483647
      %v647 = vand.u32 %v646, 65535
      %v648 = vshra.s32 %v646, 16
      %v649 = vcvt.s32.f32 %v647
      %v650 = vcvt.s32.f32 %v648
      %651 = vmin.xlane.f32.xlu0 %v650
      %v652 = vpop.xlane.xlu0 %651
      %vm653 = vcmp.eq.f32.partialorder %v650, %v652
      %v654 = vsel %vm653, %v649, inf
      %655 = vmin.xlane.f32.xlu0 %v654
      %v656 = vpop.xlane.xlu0 %655
      %v657 = vcvt.f32.s32 %v656
      %v658 = vcvt.f32.s32 %v652
      %v659 = vshll.u32 %v658, 16
      %v660 = vadd.s32 %v659, %v657
      %v661 = vsel %vm379, %v615, 2147483647
      %v662 = vand.u32 %v661, 65535
      %v663 = vshra.s32 %v661, 16
      %v664 = vcvt.s32.f32 %v662
      %v665 = vcvt.s32.f32 %v663
      %666 = vmin.xlane.f32.xlu0 %v665
      %v667 = vpop.xlane.xlu0 %666
      %vm668 = vcmp.eq.f32.partialorder %v665, %v667
      %v669 = vsel %vm668, %v664, inf
      %670 = vmin.xlane.f32.xlu0 %v669
      %v671 = vpop.xlane.xlu0 %670
      %v672 = vcvt.f32.s32 %v671
      %v673 = vcvt.f32.s32 %v667
      %v674 = vshll.u32 %v673, 16
      %v675 = vadd.s32 %v674, %v672
      %vm676 = vcmp.eq.s32.totalorder %v592, %v630
      %vm677 = vcmp.eq.s32.totalorder %v593, %v645
      %vm678 = vcmp.eq.s32.totalorder %v594, %v660
      %vm679 = vcmp.eq.s32.totalorder %v595, %v675
      %v680 = vsel %vm676, 1, %v464
      %v681 = vsel %vm677, 1, %v465
      %v682 = vsel %vm678, 1, %v466
      %v683 = vsel %vm679, 1, %v467
      %v684 = vsel %vm676, %v584, %v468
      %v685 = vsel %vm677, %v585, %v469
      %v686 = vsel %vm678, %v586, %v470
      %v687 = vsel %vm679, %v587, %v471
      %v688 = vsel %vm676, %v592, %v472
      %v689 = vsel %vm677, %v593, %v473
      %v690 = vsel %vm678, %v594, %v474
      %v691 = vsel %vm679, %v595, %v475
      %v692 = vsel %vm676, 1e+30, %v584
      %v693 = vsel %vm677, 1e+30, %v585
      %v694 = vsel %vm678, 1e+30, %v586
      %v695 = vsel %vm679, 1e+30, %v587
      %v696 = vsel %vm676, 1, 0
      %v697 = vsel %vm677, 1, 0
      %v698 = vsel %vm678, 1, 0
      %v699 = vsel %vm679, 1, 0
      %vm700 = vcmp.eq.s32.totalorder %v696, 1
      %vm701 = vcmp.eq.s32.totalorder %v697, 1
      %vm702 = vcmp.eq.s32.totalorder %v698, 1
      %vm703 = vcmp.eq.s32.totalorder %v699, 1
      %v704 = vsel %vm700, %v257, 0.0
      %v705 = vsel %vm701, %v258, 0.0
      %v706 = vsel %vm702, %v259, 0.0
      %v707 = vsel %vm703, %v260, 0.0
      %v708 = vsel %vm700, %v261, 0.0
      %v709 = vsel %vm701, %v262, 0.0
      %v710 = vsel %vm702, %v263, 0.0
      %v711 = vsel %vm703, %v264, 0.0
      %v712 = vsel %vm700, %v265, 0.0
      %v713 = vsel %vm701, %v266, 0.0
      %v714 = vsel %vm702, %v267, 0.0
      %v715 = vsel %vm703, %v268, 0.0
      %v716 = vsel %vm379, %v704, 0.0
      %717 = vadd.xlane.f32.xlu0 %v716
      %v718 = vpop.xlane.xlu0 %717
      %v719 = vsel %vm379, %v705, 0.0
      %720 = vadd.xlane.f32.xlu0 %v719
      %v721 = vpop.xlane.xlu0 %720
      %v722 = vsel %vm379, %v706, 0.0
      %723 = vadd.xlane.f32.xlu0 %v722
      %v724 = vpop.xlane.xlu0 %723
      %v725 = vsel %vm379, %v707, 0.0
      %726 = vadd.xlane.f32.xlu0 %v725
      %v727 = vpop.xlane.xlu0 %726
      %v728 = vsel %vm379, %v708, 0.0
      %729 = vadd.xlane.f32.xlu0 %v728
      %v730 = vpop.xlane.xlu0 %729
      %v731 = vsel %vm379, %v709, 0.0
      %732 = vadd.xlane.f32.xlu0 %v731
      %v733 = vpop.xlane.xlu0 %732
      %v734 = vsel %vm379, %v710, 0.0
      %735 = vadd.xlane.f32.xlu0 %v734
      %v736 = vpop.xlane.xlu0 %735
      %v737 = vsel %vm379, %v711, 0.0
      %738 = vadd.xlane.f32.xlu0 %v737
      %v739 = vpop.xlane.xlu0 %738
      %v740 = vsel %vm379, %v712, 0.0
      %741 = vadd.xlane.f32.xlu0 %v740
      %v742 = vpop.xlane.xlu0 %741
      %v743 = vsel %vm379, %v713, 0.0
      %744 = vadd.xlane.f32.xlu0 %v743
      %v745 = vpop.xlane.xlu0 %744
      %v746 = vsel %vm379, %v714, 0.0
      %747 = vadd.xlane.f32.xlu0 %v746
      %v748 = vpop.xlane.xlu0 %747
      %v749 = vsel %vm379, %v715, 0.0
      %750 = vadd.xlane.f32.xlu0 %v749
      %v751 = vpop.xlane.xlu0 %750
      %v752 = vshra.s32 %v630, 4
      %v753 = vshra.s32 %v645, 4
      %v754 = vshra.s32 %v660, 4
      %v755 = vshra.s32 %v675, 4
      %v756 = vsub.f32 %v257, %v718
      %v757 = vsub.f32 %v258, %v721
      %v758 = vsub.f32 %v259, %v724
      %v759 = vsub.f32 %v260, %v727
      %v760 = vsub.f32 %v261, %v730
      %v761 = vsub.f32 %v262, %v733
      %v762 = vsub.f32 %v263, %v736
      %v763 = vsub.f32 %v264, %v739
      %v764 = vsub.f32 %v265, %v742
      %v765 = vsub.f32 %v266, %v745
      %v766 = vsub.f32 %v267, %v748
      %v767 = vsub.f32 %v268, %v751
      %v768 = vmul.f32 %v756, %v756
      %v769 = vmul.f32 %v757, %v757
      %v770 = vmul.f32 %v758, %v758
      %v771 = vmul.f32 %v759, %v759
      %v772 = vmul.f32 %v760, %v760
      %v773 = vmul.f32 %v761, %v761
      %v774 = vmul.f32 %v762, %v762
      %v775 = vmul.f32 %v763, %v763
      %v776 = vadd.f32 %v768, %v772
      %v777 = vadd.f32 %v769, %v773
      %v778 = vadd.f32 %v770, %v774
      %v779 = vadd.f32 %v771, %v775
      %v780 = vmul.f32 %v764, %v764
      %v781 = vmul.f32 %v765, %v765
      %v782 = vmul.f32 %v766, %v766
      %v783 = vmul.f32 %v767, %v767
      %v784 = vadd.f32 %v776, %v780
      %v785 = vadd.f32 %v777, %v781
      %v786 = vadd.f32 %v778, %v782
      %v787 = vadd.f32 %v779, %v783
      %vm788 = vcmp.eq.s32.totalorder %v680, 0
      %vm789 = vcmp.eq.s32.totalorder %v681, 0
      %vm790 = vcmp.eq.s32.totalorder %v682, 0
      %vm791 = vcmp.eq.s32.totalorder %v683, 0
      %vm792 = vcmp.lt.f32.partialorder %v784, %v692
      %vm793 = vcmp.lt.f32.partialorder %v785, %v693
      %vm794 = vcmp.lt.f32.partialorder %v786, %v694
      %vm795 = vcmp.lt.f32.partialorder %v787, %v695
      %vm796 = vmand %vm788, %vm792
      %vm797 = vmand %vm789, %vm793
      %vm798 = vmand %vm790, %vm794
      %vm799 = vmand %vm791, %vm795
      %v800 = vsel %vm796, %v784, %v692
      %v801 = vsel %vm797, %v785, %v693
      %v802 = vsel %vm798, %v786, %v694
      %v803 = vsel %vm799, %v787, %v695
      %v804 = vadd.s32 %v271, %v752
      %v805 = vadd.s32 %v271, %v753
      %v806 = vadd.s32 %v271, %v754
      %v807 = vadd.s32 %v271, %v755
      %v808 = vsel %vm796, %v804, %v592
      %v809 = vsel %vm797, %v805, %v593
      %v810 = vsel %vm798, %v806, %v594
      %v811 = vsel %vm799, %v807, %v595
      %v812 = vsel %vm379, %v800, inf
      %813 = vmin.xlane.f32.xlu0 %v812
      %v814 = vpop.xlane.xlu0 %813
      %v815 = vsel %vm379, %v801, inf
      %816 = vmin.xlane.f32.xlu0 %v815
      %v817 = vpop.xlane.xlu0 %816
      %v818 = vsel %vm379, %v802, inf
      %819 = vmin.xlane.f32.xlu0 %v818
      %v820 = vpop.xlane.xlu0 %819
      %v821 = vsel %vm379, %v803, inf
      %822 = vmin.xlane.f32.xlu0 %v821
      %v823 = vpop.xlane.xlu0 %822
      %vm824 = vcmp.eq.f32.partialorder %v800, %v814
      %vm825 = vcmp.eq.f32.partialorder %v801, %v817
      %vm826 = vcmp.eq.f32.partialorder %v802, %v820
      %vm827 = vcmp.eq.f32.partialorder %v803, %v823
      %v828 = vsel %vm824, %v808, 1073741823
      %v829 = vsel %vm825, %v809, 1073741823
      %v830 = vsel %vm826, %v810, 1073741823
      %v831 = vsel %vm827, %v811, 1073741823
      %v832 = vsel %vm379, %v828, 2147483647
      %v833 = vand.u32 %v832, 65535
      %v834 = vshra.s32 %v832, 16
      %v835 = vcvt.s32.f32 %v833
      %v836 = vcvt.s32.f32 %v834
      %837 = vmin.xlane.f32.xlu0 %v836
      %v838 = vpop.xlane.xlu0 %837
      %vm839 = vcmp.eq.f32.partialorder %v836, %v838
      %v840 = vsel %vm839, %v835, inf
      %841 = vmin.xlane.f32.xlu0 %v840
      %v842 = vpop.xlane.xlu0 %841
      %v843 = vcvt.f32.s32 %v842
      %v844 = vcvt.f32.s32 %v838
      %v845 = vshll.u32 %v844, 16
      %v846 = vadd.s32 %v845, %v843
      %v847 = vsel %vm379, %v829, 2147483647
      %v848 = vand.u32 %v847, 65535
      %v849 = vshra.s32 %v847, 16
      %v850 = vcvt.s32.f32 %v848
      %v851 = vcvt.s32.f32 %v849
      %852 = vmin.xlane.f32.xlu0 %v851
      %v853 = vpop.xlane.xlu0 %852
      %vm854 = vcmp.eq.f32.partialorder %v851, %v853
      %v855 = vsel %vm854, %v850, inf
      %856 = vmin.xlane.f32.xlu0 %v855
      %v857 = vpop.xlane.xlu0 %856
      %v858 = vcvt.f32.s32 %v857
      %v859 = vcvt.f32.s32 %v853
      %v860 = vshll.u32 %v859, 16
      %v861 = vadd.s32 %v860, %v858
      %v862 = vsel %vm379, %v830, 2147483647
      %v863 = vand.u32 %v862, 65535
      %v864 = vshra.s32 %v862, 16
      %v865 = vcvt.s32.f32 %v863
      %v866 = vcvt.s32.f32 %v864
      %867 = vmin.xlane.f32.xlu0 %v866
      %v868 = vpop.xlane.xlu0 %867
      %vm869 = vcmp.eq.f32.partialorder %v866, %v868
      %v870 = vsel %vm869, %v865, inf
      %871 = vmin.xlane.f32.xlu0 %v870
      %v872 = vpop.xlane.xlu0 %871
      %v873 = vcvt.f32.s32 %v872
      %v874 = vcvt.f32.s32 %v868
      %v875 = vshll.u32 %v874, 16
      %v876 = vadd.s32 %v875, %v873
      %v877 = vsel %vm379, %v831, 2147483647
      %v878 = vand.u32 %v877, 65535
      %v879 = vshra.s32 %v877, 16
      %v880 = vcvt.s32.f32 %v878
      %v881 = vcvt.s32.f32 %v879
      %882 = vmin.xlane.f32.xlu0 %v881
      %v883 = vpop.xlane.xlu0 %882
      %vm884 = vcmp.eq.f32.partialorder %v881, %v883
      %v885 = vsel %vm884, %v880, inf
      %886 = vmin.xlane.f32.xlu0 %v885
      %v887 = vpop.xlane.xlu0 %886
      %v888 = vcvt.f32.s32 %v887
      %v889 = vcvt.f32.s32 %v883
      %v890 = vshll.u32 %v889, 16
      %v891 = vadd.s32 %v890, %v888
      %vm892 = vcmp.eq.s32.totalorder %v808, %v846
      %vm893 = vcmp.eq.s32.totalorder %v809, %v861
      %vm894 = vcmp.eq.s32.totalorder %v810, %v876
      %vm895 = vcmp.eq.s32.totalorder %v811, %v891
      %v896 = vsel %vm892, 1, %v680
      %v897 = vsel %vm893, 1, %v681
      %v898 = vsel %vm894, 1, %v682
      %v899 = vsel %vm895, 1, %v683
      %v900 = vsel %vm892, %v800, %v684
      %v901 = vsel %vm893, %v801, %v685
      %v902 = vsel %vm894, %v802, %v686
      %v903 = vsel %vm895, %v803, %v687
      %v904 = vsel %vm892, %v808, %v688
      %v905 = vsel %vm893, %v809, %v689
      %v906 = vsel %vm894, %v810, %v690
      %v907 = vsel %vm895, %v811, %v691
      %v908 = vsel %vm892, 1e+30, %v800
      %v909 = vsel %vm893, 1e+30, %v801
      %v910 = vsel %vm894, 1e+30, %v802
      %v911 = vsel %vm895, 1e+30, %v803
      %v912 = vsel %vm892, 1, 0
      %v913 = vsel %vm893, 1, 0
      %v914 = vsel %vm894, 1, 0
      %v915 = vsel %vm895, 1, 0
      %vm916 = vcmp.eq.s32.totalorder %v912, 1
      %vm917 = vcmp.eq.s32.totalorder %v913, 1
      %vm918 = vcmp.eq.s32.totalorder %v914, 1
      %vm919 = vcmp.eq.s32.totalorder %v915, 1
      %v920 = vsel %vm916, %v257, 0.0
      %v921 = vsel %vm917, %v258, 0.0
      %v922 = vsel %vm918, %v259, 0.0
      %v923 = vsel %vm919, %v260, 0.0
      %v924 = vsel %vm916, %v261, 0.0
      %v925 = vsel %vm917, %v262, 0.0
      %v926 = vsel %vm918, %v263, 0.0
      %v927 = vsel %vm919, %v264, 0.0
      %v928 = vsel %vm916, %v265, 0.0
      %v929 = vsel %vm917, %v266, 0.0
      %v930 = vsel %vm918, %v267, 0.0
      %v931 = vsel %vm919, %v268, 0.0
      %v932 = vsel %vm379, %v920, 0.0
      %933 = vadd.xlane.f32.xlu0 %v932
      %v934 = vpop.xlane.xlu0 %933
      %v935 = vsel %vm379, %v921, 0.0
      %936 = vadd.xlane.f32.xlu0 %v935
      %v937 = vpop.xlane.xlu0 %936
      %v938 = vsel %vm379, %v922, 0.0
      %939 = vadd.xlane.f32.xlu0 %v938
      %v940 = vpop.xlane.xlu0 %939
      %v941 = vsel %vm379, %v923, 0.0
      %942 = vadd.xlane.f32.xlu0 %v941
      %v943 = vpop.xlane.xlu0 %942
      %v944 = vsel %vm379, %v924, 0.0
      %945 = vadd.xlane.f32.xlu0 %v944
      %v946 = vpop.xlane.xlu0 %945
      %v947 = vsel %vm379, %v925, 0.0
      %948 = vadd.xlane.f32.xlu0 %v947
      %v949 = vpop.xlane.xlu0 %948
      %v950 = vsel %vm379, %v926, 0.0
      %951 = vadd.xlane.f32.xlu0 %v950
      %v952 = vpop.xlane.xlu0 %951
      %v953 = vsel %vm379, %v927, 0.0
      %954 = vadd.xlane.f32.xlu0 %v953
      %v955 = vpop.xlane.xlu0 %954
      %v956 = vsel %vm379, %v928, 0.0
      %957 = vadd.xlane.f32.xlu0 %v956
      %v958 = vpop.xlane.xlu0 %957
      %v959 = vsel %vm379, %v929, 0.0
      %960 = vadd.xlane.f32.xlu0 %v959
      %v961 = vpop.xlane.xlu0 %960
      %v962 = vsel %vm379, %v930, 0.0
      %963 = vadd.xlane.f32.xlu0 %v962
      %v964 = vpop.xlane.xlu0 %963
      %v965 = vsel %vm379, %v931, 0.0
      %966 = vadd.xlane.f32.xlu0 %v965
      %v967 = vpop.xlane.xlu0 %966
      %v968 = vshra.s32 %v846, 4
      %v969 = vshra.s32 %v861, 4
      %v970 = vshra.s32 %v876, 4
      %v971 = vshra.s32 %v891, 4
      %v972 = vsub.f32 %v257, %v934
      %v973 = vsub.f32 %v258, %v937
      %v974 = vsub.f32 %v259, %v940
      %v975 = vsub.f32 %v260, %v943
      %v976 = vsub.f32 %v261, %v946
      %v977 = vsub.f32 %v262, %v949
      %v978 = vsub.f32 %v263, %v952
      %v979 = vsub.f32 %v264, %v955
      %v980 = vsub.f32 %v265, %v958
      %v981 = vsub.f32 %v266, %v961
      %v982 = vsub.f32 %v267, %v964
      %v983 = vsub.f32 %v268, %v967
      %v984 = vmul.f32 %v972, %v972
      %v985 = vmul.f32 %v973, %v973
      %v986 = vmul.f32 %v974, %v974
      %v987 = vmul.f32 %v975, %v975
      %v988 = vmul.f32 %v976, %v976
      %v989 = vmul.f32 %v977, %v977
      %v990 = vmul.f32 %v978, %v978
      %v991 = vmul.f32 %v979, %v979
      %v992 = vadd.f32 %v984, %v988
      %v993 = vadd.f32 %v985, %v989
      %v994 = vadd.f32 %v986, %v990
      %v995 = vadd.f32 %v987, %v991
      %v996 = vmul.f32 %v980, %v980
      %v997 = vmul.f32 %v981, %v981
      %v998 = vmul.f32 %v982, %v982
      %v999 = vmul.f32 %v983, %v983
      %v1000 = vadd.f32 %v992, %v996
      %v1001 = vadd.f32 %v993, %v997
      %v1002 = vadd.f32 %v994, %v998
      %v1003 = vadd.f32 %v995, %v999
      %vm1004 = vcmp.eq.s32.totalorder %v896, 0
      %vm1005 = vcmp.eq.s32.totalorder %v897, 0
      %vm1006 = vcmp.eq.s32.totalorder %v898, 0
      %vm1007 = vcmp.eq.s32.totalorder %v899, 0
      %vm1008 = vcmp.lt.f32.partialorder %v1000, %v908
      %vm1009 = vcmp.lt.f32.partialorder %v1001, %v909
      %vm1010 = vcmp.lt.f32.partialorder %v1002, %v910
      %vm1011 = vcmp.lt.f32.partialorder %v1003, %v911
      %vm1012 = vmand %vm1004, %vm1008
      %vm1013 = vmand %vm1005, %vm1009
      %vm1014 = vmand %vm1006, %vm1010
      %vm1015 = vmand %vm1007, %vm1011
      %v1016 = vsel %vm1012, %v1000, %v908
      %v1017 = vsel %vm1013, %v1001, %v909
      %v1018 = vsel %vm1014, %v1002, %v910
      %v1019 = vsel %vm1015, %v1003, %v911
      %v1020 = vadd.s32 %v271, %v968
      %v1021 = vadd.s32 %v271, %v969
      %v1022 = vadd.s32 %v271, %v970
      %v1023 = vadd.s32 %v271, %v971
      %v1024 = vsel %vm1012, %v1020, %v808
      %v1025 = vsel %vm1013, %v1021, %v809
      %v1026 = vsel %vm1014, %v1022, %v810
      %v1027 = vsel %vm1015, %v1023, %v811
      %v1028 = vsel %vm379, %v1016, inf
      %1029 = vmin.xlane.f32.xlu0 %v1028
      %v1030 = vpop.xlane.xlu0 %1029
      %v1031 = vsel %vm379, %v1017, inf
      %1032 = vmin.xlane.f32.xlu0 %v1031
      %v1033 = vpop.xlane.xlu0 %1032
      %v1034 = vsel %vm379, %v1018, inf
      %1035 = vmin.xlane.f32.xlu0 %v1034
      %v1036 = vpop.xlane.xlu0 %1035
      %v1037 = vsel %vm379, %v1019, inf
      %1038 = vmin.xlane.f32.xlu0 %v1037
      %v1039 = vpop.xlane.xlu0 %1038
      %vm1040 = vcmp.eq.f32.partialorder %v1016, %v1030
      %vm1041 = vcmp.eq.f32.partialorder %v1017, %v1033
      %vm1042 = vcmp.eq.f32.partialorder %v1018, %v1036
      %vm1043 = vcmp.eq.f32.partialorder %v1019, %v1039
      %v1044 = vsel %vm1040, %v1024, 1073741823
      %v1045 = vsel %vm1041, %v1025, 1073741823
      %v1046 = vsel %vm1042, %v1026, 1073741823
      %v1047 = vsel %vm1043, %v1027, 1073741823
      %v1048 = vsel %vm379, %v1044, 2147483647
      %v1049 = vand.u32 %v1048, 65535
      %v1050 = vshra.s32 %v1048, 16
      %v1051 = vcvt.s32.f32 %v1049
      %v1052 = vcvt.s32.f32 %v1050
      %1053 = vmin.xlane.f32.xlu0 %v1052
      %v1054 = vpop.xlane.xlu0 %1053
      %vm1055 = vcmp.eq.f32.partialorder %v1052, %v1054
      %v1056 = vsel %vm1055, %v1051, inf
      %1057 = vmin.xlane.f32.xlu0 %v1056
      %v1058 = vpop.xlane.xlu0 %1057
      %v1059 = vcvt.f32.s32 %v1058
      %v1060 = vcvt.f32.s32 %v1054
      %v1061 = vshll.u32 %v1060, 16
      %v1062 = vadd.s32 %v1061, %v1059
      %v1063 = vsel %vm379, %v1045, 2147483647
      %v1064 = vand.u32 %v1063, 65535
      %v1065 = vshra.s32 %v1063, 16
      %v1066 = vcvt.s32.f32 %v1064
      %v1067 = vcvt.s32.f32 %v1065
      %1068 = vmin.xlane.f32.xlu0 %v1067
      %v1069 = vpop.xlane.xlu0 %1068
      %vm1070 = vcmp.eq.f32.partialorder %v1067, %v1069
      %v1071 = vsel %vm1070, %v1066, inf
      %1072 = vmin.xlane.f32.xlu0 %v1071
      %v1073 = vpop.xlane.xlu0 %1072
      %v1074 = vcvt.f32.s32 %v1073
      %v1075 = vcvt.f32.s32 %v1069
      %v1076 = vshll.u32 %v1075, 16
      %v1077 = vadd.s32 %v1076, %v1074
      %v1078 = vsel %vm379, %v1046, 2147483647
      %v1079 = vand.u32 %v1078, 65535
      %v1080 = vshra.s32 %v1078, 16
      %v1081 = vcvt.s32.f32 %v1079
      %v1082 = vcvt.s32.f32 %v1080
      %1083 = vmin.xlane.f32.xlu0 %v1082
      %v1084 = vpop.xlane.xlu0 %1083
      %vm1085 = vcmp.eq.f32.partialorder %v1082, %v1084
      %v1086 = vsel %vm1085, %v1081, inf
      %1087 = vmin.xlane.f32.xlu0 %v1086
      %v1088 = vpop.xlane.xlu0 %1087
      %v1089 = vcvt.f32.s32 %v1088
      %v1090 = vcvt.f32.s32 %v1084
      %v1091 = vshll.u32 %v1090, 16
      %v1092 = vadd.s32 %v1091, %v1089
      %v1093 = vsel %vm379, %v1047, 2147483647
      %v1094 = vand.u32 %v1093, 65535
      %v1095 = vshra.s32 %v1093, 16
      %v1096 = vcvt.s32.f32 %v1094
      %v1097 = vcvt.s32.f32 %v1095
      %1098 = vmin.xlane.f32.xlu0 %v1097
      %v1099 = vpop.xlane.xlu0 %1098
      %vm1100 = vcmp.eq.f32.partialorder %v1097, %v1099
      %v1101 = vsel %vm1100, %v1096, inf
      %1102 = vmin.xlane.f32.xlu0 %v1101
      %v1103 = vpop.xlane.xlu0 %1102
      %v1104 = vcvt.f32.s32 %v1103
      %v1105 = vcvt.f32.s32 %v1099
      %v1106 = vshll.u32 %v1105, 16
      %v1107 = vadd.s32 %v1106, %v1104
      %vm1108 = vcmp.eq.s32.totalorder %v1024, %v1062
      %vm1109 = vcmp.eq.s32.totalorder %v1025, %v1077
      %vm1110 = vcmp.eq.s32.totalorder %v1026, %v1092
      %vm1111 = vcmp.eq.s32.totalorder %v1027, %v1107
      %v1112 = vsel %vm1108, 1, %v896
      %v1113 = vsel %vm1109, 1, %v897
      %v1114 = vsel %vm1110, 1, %v898
      %v1115 = vsel %vm1111, 1, %v899
      %v1116 = vsel %vm1108, %v1016, %v900
      %v1117 = vsel %vm1109, %v1017, %v901
      %v1118 = vsel %vm1110, %v1018, %v902
      %v1119 = vsel %vm1111, %v1019, %v903
      %v1120 = vsel %vm1108, %v1024, %v904
      %v1121 = vsel %vm1109, %v1025, %v905
      %v1122 = vsel %vm1110, %v1026, %v906
      %v1123 = vsel %vm1111, %v1027, %v907
      %v1124 = vsel %vm1108, 1e+30, %v1016
      %v1125 = vsel %vm1109, 1e+30, %v1017
      %v1126 = vsel %vm1110, 1e+30, %v1018
      %v1127 = vsel %vm1111, 1e+30, %v1019
      %v1128 = vsel %vm1108, 1, 0
      %v1129 = vsel %vm1109, 1, 0
      %v1130 = vsel %vm1110, 1, 0
      %v1131 = vsel %vm1111, 1, 0
      %vm1132 = vcmp.eq.s32.totalorder %v1128, 1
      %vm1133 = vcmp.eq.s32.totalorder %v1129, 1
      %vm1134 = vcmp.eq.s32.totalorder %v1130, 1
      %vm1135 = vcmp.eq.s32.totalorder %v1131, 1
      %v1136 = vsel %vm1132, %v257, 0.0
      %v1137 = vsel %vm1133, %v258, 0.0
      %v1138 = vsel %vm1134, %v259, 0.0
      %v1139 = vsel %vm1135, %v260, 0.0
      %v1140 = vsel %vm1132, %v261, 0.0
      %v1141 = vsel %vm1133, %v262, 0.0
      %v1142 = vsel %vm1134, %v263, 0.0
      %v1143 = vsel %vm1135, %v264, 0.0
      %v1144 = vsel %vm1132, %v265, 0.0
      %v1145 = vsel %vm1133, %v266, 0.0
      %v1146 = vsel %vm1134, %v267, 0.0
      %v1147 = vsel %vm1135, %v268, 0.0
      %v1148 = vsel %vm379, %v1136, 0.0
      %1149 = vadd.xlane.f32.xlu0 %v1148
      %v1150 = vpop.xlane.xlu0 %1149
      %v1151 = vsel %vm379, %v1137, 0.0
      %1152 = vadd.xlane.f32.xlu0 %v1151
      %v1153 = vpop.xlane.xlu0 %1152
      %v1154 = vsel %vm379, %v1138, 0.0
      %1155 = vadd.xlane.f32.xlu0 %v1154
      %v1156 = vpop.xlane.xlu0 %1155
      %v1157 = vsel %vm379, %v1139, 0.0
      %1158 = vadd.xlane.f32.xlu0 %v1157
      %v1159 = vpop.xlane.xlu0 %1158
      %v1160 = vsel %vm379, %v1140, 0.0
      %1161 = vadd.xlane.f32.xlu0 %v1160
      %v1162 = vpop.xlane.xlu0 %1161
      %v1163 = vsel %vm379, %v1141, 0.0
      %1164 = vadd.xlane.f32.xlu0 %v1163
      %v1165 = vpop.xlane.xlu0 %1164
      %v1166 = vsel %vm379, %v1142, 0.0
      %1167 = vadd.xlane.f32.xlu0 %v1166
      %v1168 = vpop.xlane.xlu0 %1167
      %v1169 = vsel %vm379, %v1143, 0.0
      %1170 = vadd.xlane.f32.xlu0 %v1169
      %v1171 = vpop.xlane.xlu0 %1170
      %v1172 = vsel %vm379, %v1144, 0.0
      %1173 = vadd.xlane.f32.xlu0 %v1172
      %v1174 = vpop.xlane.xlu0 %1173
      %v1175 = vsel %vm379, %v1145, 0.0
      %1176 = vadd.xlane.f32.xlu0 %v1175
      %v1177 = vpop.xlane.xlu0 %1176
      %v1178 = vsel %vm379, %v1146, 0.0
      %1179 = vadd.xlane.f32.xlu0 %v1178
      %v1180 = vpop.xlane.xlu0 %1179
      %v1181 = vsel %vm379, %v1147, 0.0
      %1182 = vadd.xlane.f32.xlu0 %v1181
      %v1183 = vpop.xlane.xlu0 %1182
      %v1184 = vshra.s32 %v1062, 4
      %v1185 = vshra.s32 %v1077, 4
      %v1186 = vshra.s32 %v1092, 4
      %v1187 = vshra.s32 %v1107, 4
      %v1188 = vsub.f32 %v257, %v1150
      %v1189 = vsub.f32 %v258, %v1153
      %v1190 = vsub.f32 %v259, %v1156
      %v1191 = vsub.f32 %v260, %v1159
      %v1192 = vsub.f32 %v261, %v1162
      %v1193 = vsub.f32 %v262, %v1165
      %v1194 = vsub.f32 %v263, %v1168
      %v1195 = vsub.f32 %v264, %v1171
      %v1196 = vsub.f32 %v265, %v1174
      %v1197 = vsub.f32 %v266, %v1177
      %v1198 = vsub.f32 %v267, %v1180
      %v1199 = vsub.f32 %v268, %v1183
      %v1200 = vmul.f32 %v1188, %v1188
      %v1201 = vmul.f32 %v1189, %v1189
      %v1202 = vmul.f32 %v1190, %v1190
      %v1203 = vmul.f32 %v1191, %v1191
      %v1204 = vmul.f32 %v1192, %v1192
      %v1205 = vmul.f32 %v1193, %v1193
      %v1206 = vmul.f32 %v1194, %v1194
      %v1207 = vmul.f32 %v1195, %v1195
      %v1208 = vadd.f32 %v1200, %v1204
      %v1209 = vadd.f32 %v1201, %v1205
      %v1210 = vadd.f32 %v1202, %v1206
      %v1211 = vadd.f32 %v1203, %v1207
      %v1212 = vmul.f32 %v1196, %v1196
      %v1213 = vmul.f32 %v1197, %v1197
      %v1214 = vmul.f32 %v1198, %v1198
      %v1215 = vmul.f32 %v1199, %v1199
      %v1216 = vadd.f32 %v1208, %v1212
      %v1217 = vadd.f32 %v1209, %v1213
      %v1218 = vadd.f32 %v1210, %v1214
      %v1219 = vadd.f32 %v1211, %v1215
      %vm1220 = vcmp.eq.s32.totalorder %v1112, 0
      %vm1221 = vcmp.eq.s32.totalorder %v1113, 0
      %vm1222 = vcmp.eq.s32.totalorder %v1114, 0
      %vm1223 = vcmp.eq.s32.totalorder %v1115, 0
      %vm1224 = vcmp.lt.f32.partialorder %v1216, %v1124
      %vm1225 = vcmp.lt.f32.partialorder %v1217, %v1125
      %vm1226 = vcmp.lt.f32.partialorder %v1218, %v1126
      %vm1227 = vcmp.lt.f32.partialorder %v1219, %v1127
      %vm1228 = vmand %vm1220, %vm1224
      %vm1229 = vmand %vm1221, %vm1225
      %vm1230 = vmand %vm1222, %vm1226
      %vm1231 = vmand %vm1223, %vm1227
      %v1232 = vsel %vm1228, %v1216, %v1124
      %v1233 = vsel %vm1229, %v1217, %v1125
      %v1234 = vsel %vm1230, %v1218, %v1126
      %v1235 = vsel %vm1231, %v1219, %v1127
      %v1236 = vadd.s32 %v271, %v1184
      %v1237 = vadd.s32 %v271, %v1185
      %v1238 = vadd.s32 %v271, %v1186
      %v1239 = vadd.s32 %v271, %v1187
      %v1240 = vsel %vm1228, %v1236, %v1024
      %v1241 = vsel %vm1229, %v1237, %v1025
      %v1242 = vsel %vm1230, %v1238, %v1026
      %v1243 = vsel %vm1231, %v1239, %v1027
      %v1244 = vsel %vm379, %v1232, inf
      %1245 = vmin.xlane.f32.xlu0 %v1244
      %v1246 = vpop.xlane.xlu0 %1245
      %v1247 = vsel %vm379, %v1233, inf
      %1248 = vmin.xlane.f32.xlu0 %v1247
      %v1249 = vpop.xlane.xlu0 %1248
      %v1250 = vsel %vm379, %v1234, inf
      %1251 = vmin.xlane.f32.xlu0 %v1250
      %v1252 = vpop.xlane.xlu0 %1251
      %v1253 = vsel %vm379, %v1235, inf
      %1254 = vmin.xlane.f32.xlu0 %v1253
      %v1255 = vpop.xlane.xlu0 %1254
      %vm1256 = vcmp.eq.f32.partialorder %v1232, %v1246
      %vm1257 = vcmp.eq.f32.partialorder %v1233, %v1249
      %vm1258 = vcmp.eq.f32.partialorder %v1234, %v1252
      %vm1259 = vcmp.eq.f32.partialorder %v1235, %v1255
      %v1260 = vsel %vm1256, %v1240, 1073741823
      %v1261 = vsel %vm1257, %v1241, 1073741823
      %v1262 = vsel %vm1258, %v1242, 1073741823
      %v1263 = vsel %vm1259, %v1243, 1073741823
      %v1264 = vsel %vm379, %v1260, 2147483647
      %v1265 = vand.u32 %v1264, 65535
      %v1266 = vshra.s32 %v1264, 16
      %v1267 = vcvt.s32.f32 %v1265
      %v1268 = vcvt.s32.f32 %v1266
      %1269 = vmin.xlane.f32.xlu0 %v1268
      %v1270 = vpop.xlane.xlu0 %1269
      %vm1271 = vcmp.eq.f32.partialorder %v1268, %v1270
      %v1272 = vsel %vm1271, %v1267, inf
      %1273 = vmin.xlane.f32.xlu0 %v1272
      %v1274 = vpop.xlane.xlu0 %1273
      %v1275 = vcvt.f32.s32 %v1274
      %v1276 = vcvt.f32.s32 %v1270
      %v1277 = vshll.u32 %v1276, 16
      %v1278 = vadd.s32 %v1277, %v1275
      %v1279 = vsel %vm379, %v1261, 2147483647
      %v1280 = vand.u32 %v1279, 65535
      %v1281 = vshra.s32 %v1279, 16
      %v1282 = vcvt.s32.f32 %v1280
      %v1283 = vcvt.s32.f32 %v1281
      %1284 = vmin.xlane.f32.xlu0 %v1283
      %v1285 = vpop.xlane.xlu0 %1284
      %vm1286 = vcmp.eq.f32.partialorder %v1283, %v1285
      %v1287 = vsel %vm1286, %v1282, inf
      %1288 = vmin.xlane.f32.xlu0 %v1287
      %v1289 = vpop.xlane.xlu0 %1288
      %v1290 = vcvt.f32.s32 %v1289
      %v1291 = vcvt.f32.s32 %v1285
      %v1292 = vshll.u32 %v1291, 16
      %v1293 = vadd.s32 %v1292, %v1290
      %v1294 = vsel %vm379, %v1262, 2147483647
      %v1295 = vand.u32 %v1294, 65535
      %v1296 = vshra.s32 %v1294, 16
      %v1297 = vcvt.s32.f32 %v1295
      %v1298 = vcvt.s32.f32 %v1296
      %1299 = vmin.xlane.f32.xlu0 %v1298
      %v1300 = vpop.xlane.xlu0 %1299
      %vm1301 = vcmp.eq.f32.partialorder %v1298, %v1300
      %v1302 = vsel %vm1301, %v1297, inf
      %1303 = vmin.xlane.f32.xlu0 %v1302
      %v1304 = vpop.xlane.xlu0 %1303
      %v1305 = vcvt.f32.s32 %v1304
      %v1306 = vcvt.f32.s32 %v1300
      %v1307 = vshll.u32 %v1306, 16
      %v1308 = vadd.s32 %v1307, %v1305
      %v1309 = vsel %vm379, %v1263, 2147483647
      %v1310 = vand.u32 %v1309, 65535
      %v1311 = vshra.s32 %v1309, 16
      %v1312 = vcvt.s32.f32 %v1310
      %v1313 = vcvt.s32.f32 %v1311
      %1314 = vmin.xlane.f32.xlu0 %v1313
      %v1315 = vpop.xlane.xlu0 %1314
      %vm1316 = vcmp.eq.f32.partialorder %v1313, %v1315
      %v1317 = vsel %vm1316, %v1312, inf
      %1318 = vmin.xlane.f32.xlu0 %v1317
      %v1319 = vpop.xlane.xlu0 %1318
      %v1320 = vcvt.f32.s32 %v1319
      %v1321 = vcvt.f32.s32 %v1315
      %v1322 = vshll.u32 %v1321, 16
      %v1323 = vadd.s32 %v1322, %v1320
      %vm1324 = vcmp.eq.s32.totalorder %v1240, %v1278
      %vm1325 = vcmp.eq.s32.totalorder %v1241, %v1293
      %vm1326 = vcmp.eq.s32.totalorder %v1242, %v1308
      %vm1327 = vcmp.eq.s32.totalorder %v1243, %v1323
      %v1328 = vsel %vm1324, 1, %v1112
      %v1329 = vsel %vm1325, 1, %v1113
      %v1330 = vsel %vm1326, 1, %v1114
      %v1331 = vsel %vm1327, 1, %v1115
      %v1332 = vsel %vm1324, %v1232, %v1116
      %v1333 = vsel %vm1325, %v1233, %v1117
      %v1334 = vsel %vm1326, %v1234, %v1118
      %v1335 = vsel %vm1327, %v1235, %v1119
      %v1336 = vsel %vm1324, %v1240, %v1120
      %v1337 = vsel %vm1325, %v1241, %v1121
      %v1338 = vsel %vm1326, %v1242, %v1122
      %v1339 = vsel %vm1327, %v1243, %v1123
      %v1340 = vsel %vm1324, 1e+30, %v1232
      %v1341 = vsel %vm1325, 1e+30, %v1233
      %v1342 = vsel %vm1326, 1e+30, %v1234
      %v1343 = vsel %vm1327, 1e+30, %v1235
      %v1344 = vsel %vm1324, 1, 0
      %v1345 = vsel %vm1325, 1, 0
      %v1346 = vsel %vm1326, 1, 0
      %v1347 = vsel %vm1327, 1, 0
      %vm1348 = vcmp.eq.s32.totalorder %v1344, 1
      %vm1349 = vcmp.eq.s32.totalorder %v1345, 1
      %vm1350 = vcmp.eq.s32.totalorder %v1346, 1
      %vm1351 = vcmp.eq.s32.totalorder %v1347, 1
      %v1352 = vsel %vm1348, %v257, 0.0
      %v1353 = vsel %vm1349, %v258, 0.0
      %v1354 = vsel %vm1350, %v259, 0.0
      %v1355 = vsel %vm1351, %v260, 0.0
      %v1356 = vsel %vm1348, %v261, 0.0
      %v1357 = vsel %vm1349, %v262, 0.0
      %v1358 = vsel %vm1350, %v263, 0.0
      %v1359 = vsel %vm1351, %v264, 0.0
      %v1360 = vsel %vm1348, %v265, 0.0
      %v1361 = vsel %vm1349, %v266, 0.0
      %v1362 = vsel %vm1350, %v267, 0.0
      %v1363 = vsel %vm1351, %v268, 0.0
      %v1364 = vsel %vm379, %v1352, 0.0
      %1365 = vadd.xlane.f32.xlu0 %v1364
      %v1366 = vpop.xlane.xlu0 %1365
      %v1367 = vsel %vm379, %v1353, 0.0
      %1368 = vadd.xlane.f32.xlu0 %v1367
      %v1369 = vpop.xlane.xlu0 %1368
      %v1370 = vsel %vm379, %v1354, 0.0
      %1371 = vadd.xlane.f32.xlu0 %v1370
      %v1372 = vpop.xlane.xlu0 %1371
      %v1373 = vsel %vm379, %v1355, 0.0
      %1374 = vadd.xlane.f32.xlu0 %v1373
      %v1375 = vpop.xlane.xlu0 %1374
      %v1376 = vsel %vm379, %v1356, 0.0
      %1377 = vadd.xlane.f32.xlu0 %v1376
      %v1378 = vpop.xlane.xlu0 %1377
      %v1379 = vsel %vm379, %v1357, 0.0
      %1380 = vadd.xlane.f32.xlu0 %v1379
      %v1381 = vpop.xlane.xlu0 %1380
      %v1382 = vsel %vm379, %v1358, 0.0
      %1383 = vadd.xlane.f32.xlu0 %v1382
      %v1384 = vpop.xlane.xlu0 %1383
      %v1385 = vsel %vm379, %v1359, 0.0
      %1386 = vadd.xlane.f32.xlu0 %v1385
      %v1387 = vpop.xlane.xlu0 %1386
      %v1388 = vsel %vm379, %v1360, 0.0
      %1389 = vadd.xlane.f32.xlu0 %v1388
      %v1390 = vpop.xlane.xlu0 %1389
      %v1391 = vsel %vm379, %v1361, 0.0
      %1392 = vadd.xlane.f32.xlu0 %v1391
      %v1393 = vpop.xlane.xlu0 %1392
      %v1394 = vsel %vm379, %v1362, 0.0
      %1395 = vadd.xlane.f32.xlu0 %v1394
      %v1396 = vpop.xlane.xlu0 %1395
      %v1397 = vsel %vm379, %v1363, 0.0
      %1398 = vadd.xlane.f32.xlu0 %v1397
      %v1399 = vpop.xlane.xlu0 %1398
      %v1400 = vshra.s32 %v1278, 4
      %v1401 = vshra.s32 %v1293, 4
      %v1402 = vshra.s32 %v1308, 4
      %v1403 = vshra.s32 %v1323, 4
      %v1404 = vsub.f32 %v257, %v1366
      %v1405 = vsub.f32 %v258, %v1369
      %v1406 = vsub.f32 %v259, %v1372
      %v1407 = vsub.f32 %v260, %v1375
      %v1408 = vsub.f32 %v261, %v1378
      %v1409 = vsub.f32 %v262, %v1381
      %v1410 = vsub.f32 %v263, %v1384
      %v1411 = vsub.f32 %v264, %v1387
      %v1412 = vsub.f32 %v265, %v1390
      %v1413 = vsub.f32 %v266, %v1393
      %v1414 = vsub.f32 %v267, %v1396
      %v1415 = vsub.f32 %v268, %v1399
      %v1416 = vmul.f32 %v1404, %v1404
      %v1417 = vmul.f32 %v1405, %v1405
      %v1418 = vmul.f32 %v1406, %v1406
      %v1419 = vmul.f32 %v1407, %v1407
      %v1420 = vmul.f32 %v1408, %v1408
      %v1421 = vmul.f32 %v1409, %v1409
      %v1422 = vmul.f32 %v1410, %v1410
      %v1423 = vmul.f32 %v1411, %v1411
      %v1424 = vadd.f32 %v1416, %v1420
      %v1425 = vadd.f32 %v1417, %v1421
      %v1426 = vadd.f32 %v1418, %v1422
      %v1427 = vadd.f32 %v1419, %v1423
      %v1428 = vmul.f32 %v1412, %v1412
      %v1429 = vmul.f32 %v1413, %v1413
      %v1430 = vmul.f32 %v1414, %v1414
      %v1431 = vmul.f32 %v1415, %v1415
      %v1432 = vadd.f32 %v1424, %v1428
      %v1433 = vadd.f32 %v1425, %v1429
      %v1434 = vadd.f32 %v1426, %v1430
      %v1435 = vadd.f32 %v1427, %v1431
      %vm1436 = vcmp.eq.s32.totalorder %v1328, 0
      %vm1437 = vcmp.eq.s32.totalorder %v1329, 0
      %vm1438 = vcmp.eq.s32.totalorder %v1330, 0
      %vm1439 = vcmp.eq.s32.totalorder %v1331, 0
      %vm1440 = vcmp.lt.f32.partialorder %v1432, %v1340
      %vm1441 = vcmp.lt.f32.partialorder %v1433, %v1341
      %vm1442 = vcmp.lt.f32.partialorder %v1434, %v1342
      %vm1443 = vcmp.lt.f32.partialorder %v1435, %v1343
      %vm1444 = vmand %vm1436, %vm1440
      %vm1445 = vmand %vm1437, %vm1441
      %vm1446 = vmand %vm1438, %vm1442
      %vm1447 = vmand %vm1439, %vm1443
      %v1448 = vsel %vm1444, %v1432, %v1340
      %v1449 = vsel %vm1445, %v1433, %v1341
      %v1450 = vsel %vm1446, %v1434, %v1342
      %v1451 = vsel %vm1447, %v1435, %v1343
      %v1452 = vadd.s32 %v271, %v1400
      %v1453 = vadd.s32 %v271, %v1401
      %v1454 = vadd.s32 %v271, %v1402
      %v1455 = vadd.s32 %v271, %v1403
      %v1456 = vsel %vm1444, %v1452, %v1240
      %v1457 = vsel %vm1445, %v1453, %v1241
      %v1458 = vsel %vm1446, %v1454, %v1242
      %v1459 = vsel %vm1447, %v1455, %v1243
      %v1460 = vsel %vm379, %v1448, inf
      %1461 = vmin.xlane.f32.xlu0 %v1460
      %v1462 = vpop.xlane.xlu0 %1461
      %v1463 = vsel %vm379, %v1449, inf
      %1464 = vmin.xlane.f32.xlu0 %v1463
      %v1465 = vpop.xlane.xlu0 %1464
      %v1466 = vsel %vm379, %v1450, inf
      %1467 = vmin.xlane.f32.xlu0 %v1466
      %v1468 = vpop.xlane.xlu0 %1467
      %v1469 = vsel %vm379, %v1451, inf
      %1470 = vmin.xlane.f32.xlu0 %v1469
      %v1471 = vpop.xlane.xlu0 %1470
      %vm1472 = vcmp.eq.f32.partialorder %v1448, %v1462
      %vm1473 = vcmp.eq.f32.partialorder %v1449, %v1465
      %vm1474 = vcmp.eq.f32.partialorder %v1450, %v1468
      %vm1475 = vcmp.eq.f32.partialorder %v1451, %v1471
      %v1476 = vsel %vm1472, %v1456, 1073741823
      %v1477 = vsel %vm1473, %v1457, 1073741823
      %v1478 = vsel %vm1474, %v1458, 1073741823
      %v1479 = vsel %vm1475, %v1459, 1073741823
      %v1480 = vsel %vm379, %v1476, 2147483647
      %v1481 = vand.u32 %v1480, 65535
      %v1482 = vshra.s32 %v1480, 16
      %v1483 = vcvt.s32.f32 %v1481
      %v1484 = vcvt.s32.f32 %v1482
      %1485 = vmin.xlane.f32.xlu0 %v1484
      %v1486 = vpop.xlane.xlu0 %1485
      %vm1487 = vcmp.eq.f32.partialorder %v1484, %v1486
      %v1488 = vsel %vm1487, %v1483, inf
      %1489 = vmin.xlane.f32.xlu0 %v1488
      %v1490 = vpop.xlane.xlu0 %1489
      %v1491 = vcvt.f32.s32 %v1490
      %v1492 = vcvt.f32.s32 %v1486
      %v1493 = vshll.u32 %v1492, 16
      %v1494 = vadd.s32 %v1493, %v1491
      %v1495 = vsel %vm379, %v1477, 2147483647
      %v1496 = vand.u32 %v1495, 65535
      %v1497 = vshra.s32 %v1495, 16
      %v1498 = vcvt.s32.f32 %v1496
      %v1499 = vcvt.s32.f32 %v1497
      %1500 = vmin.xlane.f32.xlu0 %v1499
      %v1501 = vpop.xlane.xlu0 %1500
      %vm1502 = vcmp.eq.f32.partialorder %v1499, %v1501
      %v1503 = vsel %vm1502, %v1498, inf
      %1504 = vmin.xlane.f32.xlu0 %v1503
      %v1505 = vpop.xlane.xlu0 %1504
      %v1506 = vcvt.f32.s32 %v1505
      %v1507 = vcvt.f32.s32 %v1501
      %v1508 = vshll.u32 %v1507, 16
      %v1509 = vadd.s32 %v1508, %v1506
      %v1510 = vsel %vm379, %v1478, 2147483647
      %v1511 = vand.u32 %v1510, 65535
      %v1512 = vshra.s32 %v1510, 16
      %v1513 = vcvt.s32.f32 %v1511
      %v1514 = vcvt.s32.f32 %v1512
      %1515 = vmin.xlane.f32.xlu0 %v1514
      %v1516 = vpop.xlane.xlu0 %1515
      %vm1517 = vcmp.eq.f32.partialorder %v1514, %v1516
      %v1518 = vsel %vm1517, %v1513, inf
      %1519 = vmin.xlane.f32.xlu0 %v1518
      %v1520 = vpop.xlane.xlu0 %1519
      %v1521 = vcvt.f32.s32 %v1520
      %v1522 = vcvt.f32.s32 %v1516
      %v1523 = vshll.u32 %v1522, 16
      %v1524 = vadd.s32 %v1523, %v1521
      %v1525 = vsel %vm379, %v1479, 2147483647
      %v1526 = vand.u32 %v1525, 65535
      %v1527 = vshra.s32 %v1525, 16
      %v1528 = vcvt.s32.f32 %v1526
      %v1529 = vcvt.s32.f32 %v1527
      %1530 = vmin.xlane.f32.xlu0 %v1529
      %v1531 = vpop.xlane.xlu0 %1530
      %vm1532 = vcmp.eq.f32.partialorder %v1529, %v1531
      %v1533 = vsel %vm1532, %v1528, inf
      %1534 = vmin.xlane.f32.xlu0 %v1533
      %v1535 = vpop.xlane.xlu0 %1534
      %v1536 = vcvt.f32.s32 %v1535
      %v1537 = vcvt.f32.s32 %v1531
      %v1538 = vshll.u32 %v1537, 16
      %v1539 = vadd.s32 %v1538, %v1536
      %vm1540 = vcmp.eq.s32.totalorder %v1456, %v1494
      %vm1541 = vcmp.eq.s32.totalorder %v1457, %v1509
      %vm1542 = vcmp.eq.s32.totalorder %v1458, %v1524
      %vm1543 = vcmp.eq.s32.totalorder %v1459, %v1539
      %v1544 = vsel %vm1540, 1, %v1328
      %v1545 = vsel %vm1541, 1, %v1329
      %v1546 = vsel %vm1542, 1, %v1330
      %v1547 = vsel %vm1543, 1, %v1331
      %v1548 = vsel %vm1540, %v1448, %v1332
      %v1549 = vsel %vm1541, %v1449, %v1333
      %v1550 = vsel %vm1542, %v1450, %v1334
      %v1551 = vsel %vm1543, %v1451, %v1335
      %v1552 = vsel %vm1540, %v1456, %v1336
      %v1553 = vsel %vm1541, %v1457, %v1337
      %v1554 = vsel %vm1542, %v1458, %v1338
      %v1555 = vsel %vm1543, %v1459, %v1339
      %v1556 = vsel %vm1540, 1e+30, %v1448
      %v1557 = vsel %vm1541, 1e+30, %v1449
      %v1558 = vsel %vm1542, 1e+30, %v1450
      %v1559 = vsel %vm1543, 1e+30, %v1451
      %v1560 = vsel %vm1540, 1, 0
      %v1561 = vsel %vm1541, 1, 0
      %v1562 = vsel %vm1542, 1, 0
      %v1563 = vsel %vm1543, 1, 0
      %vm1564 = vcmp.eq.s32.totalorder %v1560, 1
      %vm1565 = vcmp.eq.s32.totalorder %v1561, 1
      %vm1566 = vcmp.eq.s32.totalorder %v1562, 1
      %vm1567 = vcmp.eq.s32.totalorder %v1563, 1
      %v1568 = vsel %vm1564, %v257, 0.0
      %v1569 = vsel %vm1565, %v258, 0.0
      %v1570 = vsel %vm1566, %v259, 0.0
      %v1571 = vsel %vm1567, %v260, 0.0
      %v1572 = vsel %vm1564, %v261, 0.0
      %v1573 = vsel %vm1565, %v262, 0.0
      %v1574 = vsel %vm1566, %v263, 0.0
      %v1575 = vsel %vm1567, %v264, 0.0
      %v1576 = vsel %vm1564, %v265, 0.0
      %v1577 = vsel %vm1565, %v266, 0.0
      %v1578 = vsel %vm1566, %v267, 0.0
      %v1579 = vsel %vm1567, %v268, 0.0
      %v1580 = vsel %vm379, %v1568, 0.0
      %1581 = vadd.xlane.f32.xlu0 %v1580
      %v1582 = vpop.xlane.xlu0 %1581
      %v1583 = vsel %vm379, %v1569, 0.0
      %1584 = vadd.xlane.f32.xlu0 %v1583
      %v1585 = vpop.xlane.xlu0 %1584
      %v1586 = vsel %vm379, %v1570, 0.0
      %1587 = vadd.xlane.f32.xlu0 %v1586
      %v1588 = vpop.xlane.xlu0 %1587
      %v1589 = vsel %vm379, %v1571, 0.0
      %1590 = vadd.xlane.f32.xlu0 %v1589
      %v1591 = vpop.xlane.xlu0 %1590
      %v1592 = vsel %vm379, %v1572, 0.0
      %1593 = vadd.xlane.f32.xlu0 %v1592
      %v1594 = vpop.xlane.xlu0 %1593
      %v1595 = vsel %vm379, %v1573, 0.0
      %1596 = vadd.xlane.f32.xlu0 %v1595
      %v1597 = vpop.xlane.xlu0 %1596
      %v1598 = vsel %vm379, %v1574, 0.0
      %1599 = vadd.xlane.f32.xlu0 %v1598
      %v1600 = vpop.xlane.xlu0 %1599
      %v1601 = vsel %vm379, %v1575, 0.0
      %1602 = vadd.xlane.f32.xlu0 %v1601
      %v1603 = vpop.xlane.xlu0 %1602
      %v1604 = vsel %vm379, %v1576, 0.0
      %1605 = vadd.xlane.f32.xlu0 %v1604
      %v1606 = vpop.xlane.xlu0 %1605
      %v1607 = vsel %vm379, %v1577, 0.0
      %1608 = vadd.xlane.f32.xlu0 %v1607
      %v1609 = vpop.xlane.xlu0 %1608
      %v1610 = vsel %vm379, %v1578, 0.0
      %1611 = vadd.xlane.f32.xlu0 %v1610
      %v1612 = vpop.xlane.xlu0 %1611
      %v1613 = vsel %vm379, %v1579, 0.0
      %1614 = vadd.xlane.f32.xlu0 %v1613
      %v1615 = vpop.xlane.xlu0 %1614
      %v1616 = vshra.s32 %v1494, 4
      %v1617 = vshra.s32 %v1509, 4
      %v1618 = vshra.s32 %v1524, 4
      %v1619 = vshra.s32 %v1539, 4
      %v1620 = vsub.f32 %v257, %v1582
      %v1621 = vsub.f32 %v258, %v1585
      %v1622 = vsub.f32 %v259, %v1588
      %v1623 = vsub.f32 %v260, %v1591
      %v1624 = vsub.f32 %v261, %v1594
      %v1625 = vsub.f32 %v262, %v1597
      %v1626 = vsub.f32 %v263, %v1600
      %v1627 = vsub.f32 %v264, %v1603
      %v1628 = vsub.f32 %v265, %v1606
      %v1629 = vsub.f32 %v266, %v1609
      %v1630 = vsub.f32 %v267, %v1612
      %v1631 = vsub.f32 %v268, %v1615
      %v1632 = vmul.f32 %v1620, %v1620
      %v1633 = vmul.f32 %v1621, %v1621
      %v1634 = vmul.f32 %v1622, %v1622
      %v1635 = vmul.f32 %v1623, %v1623
      %v1636 = vmul.f32 %v1624, %v1624
      %v1637 = vmul.f32 %v1625, %v1625
      %v1638 = vmul.f32 %v1626, %v1626
      %v1639 = vmul.f32 %v1627, %v1627
      %v1640 = vadd.f32 %v1632, %v1636
      %v1641 = vadd.f32 %v1633, %v1637
      %v1642 = vadd.f32 %v1634, %v1638
      %v1643 = vadd.f32 %v1635, %v1639
      %v1644 = vmul.f32 %v1628, %v1628
      %v1645 = vmul.f32 %v1629, %v1629
      %v1646 = vmul.f32 %v1630, %v1630
      %v1647 = vmul.f32 %v1631, %v1631
      %v1648 = vadd.f32 %v1640, %v1644
      %v1649 = vadd.f32 %v1641, %v1645
      %v1650 = vadd.f32 %v1642, %v1646
      %v1651 = vadd.f32 %v1643, %v1647
      %vm1652 = vcmp.eq.s32.totalorder %v1544, 0
      %vm1653 = vcmp.eq.s32.totalorder %v1545, 0
      %vm1654 = vcmp.eq.s32.totalorder %v1546, 0
      %vm1655 = vcmp.eq.s32.totalorder %v1547, 0
      %vm1656 = vcmp.lt.f32.partialorder %v1648, %v1556
      %vm1657 = vcmp.lt.f32.partialorder %v1649, %v1557
      %vm1658 = vcmp.lt.f32.partialorder %v1650, %v1558
      %vm1659 = vcmp.lt.f32.partialorder %v1651, %v1559
      %vm1660 = vmand %vm1652, %vm1656
      %vm1661 = vmand %vm1653, %vm1657
      %vm1662 = vmand %vm1654, %vm1658
      %vm1663 = vmand %vm1655, %vm1659
      %v1664 = vsel %vm1660, %v1648, %v1556
      %v1665 = vsel %vm1661, %v1649, %v1557
      %v1666 = vsel %vm1662, %v1650, %v1558
      %v1667 = vsel %vm1663, %v1651, %v1559
      %v1668 = vadd.s32 %v271, %v1616
      %v1669 = vadd.s32 %v271, %v1617
      %v1670 = vadd.s32 %v271, %v1618
      %v1671 = vadd.s32 %v271, %v1619
      %v1672 = vsel %vm1660, %v1668, %v1456
      %v1673 = vsel %vm1661, %v1669, %v1457
      %v1674 = vsel %vm1662, %v1670, %v1458
      %v1675 = vsel %vm1663, %v1671, %v1459
      %v1676 = vsel %vm379, %v1664, inf
      %1677 = vmin.xlane.f32.xlu0 %v1676
      %v1678 = vpop.xlane.xlu0 %1677
      %v1679 = vsel %vm379, %v1665, inf
      %1680 = vmin.xlane.f32.xlu0 %v1679
      %v1681 = vpop.xlane.xlu0 %1680
      %v1682 = vsel %vm379, %v1666, inf
      %1683 = vmin.xlane.f32.xlu0 %v1682
      %v1684 = vpop.xlane.xlu0 %1683
      %v1685 = vsel %vm379, %v1667, inf
      %1686 = vmin.xlane.f32.xlu0 %v1685
      %v1687 = vpop.xlane.xlu0 %1686
      %vm1688 = vcmp.eq.f32.partialorder %v1664, %v1678
      %vm1689 = vcmp.eq.f32.partialorder %v1665, %v1681
      %vm1690 = vcmp.eq.f32.partialorder %v1666, %v1684
      %vm1691 = vcmp.eq.f32.partialorder %v1667, %v1687
      %v1692 = vsel %vm1688, %v1672, 1073741823
      %v1693 = vsel %vm1689, %v1673, 1073741823
      %v1694 = vsel %vm1690, %v1674, 1073741823
      %v1695 = vsel %vm1691, %v1675, 1073741823
      %v1696 = vsel %vm379, %v1692, 2147483647
      %v1697 = vand.u32 %v1696, 65535
      %v1698 = vshra.s32 %v1696, 16
      %v1699 = vcvt.s32.f32 %v1697
      %v1700 = vcvt.s32.f32 %v1698
      %1701 = vmin.xlane.f32.xlu0 %v1700
      %v1702 = vpop.xlane.xlu0 %1701
      %vm1703 = vcmp.eq.f32.partialorder %v1700, %v1702
      %v1704 = vsel %vm1703, %v1699, inf
      %1705 = vmin.xlane.f32.xlu0 %v1704
      %v1706 = vpop.xlane.xlu0 %1705
      %v1707 = vcvt.f32.s32 %v1706
      %v1708 = vcvt.f32.s32 %v1702
      %v1709 = vshll.u32 %v1708, 16
      %v1710 = vadd.s32 %v1709, %v1707
      %v1711 = vsel %vm379, %v1693, 2147483647
      %v1712 = vand.u32 %v1711, 65535
      %v1713 = vshra.s32 %v1711, 16
      %v1714 = vcvt.s32.f32 %v1712
      %v1715 = vcvt.s32.f32 %v1713
      %1716 = vmin.xlane.f32.xlu0 %v1715
      %v1717 = vpop.xlane.xlu0 %1716
      %vm1718 = vcmp.eq.f32.partialorder %v1715, %v1717
      %v1719 = vsel %vm1718, %v1714, inf
      %1720 = vmin.xlane.f32.xlu0 %v1719
      %v1721 = vpop.xlane.xlu0 %1720
      %v1722 = vcvt.f32.s32 %v1721
      %v1723 = vcvt.f32.s32 %v1717
      %v1724 = vshll.u32 %v1723, 16
      %v1725 = vadd.s32 %v1724, %v1722
      %v1726 = vsel %vm379, %v1694, 2147483647
      %v1727 = vand.u32 %v1726, 65535
      %v1728 = vshra.s32 %v1726, 16
      %v1729 = vcvt.s32.f32 %v1727
      %v1730 = vcvt.s32.f32 %v1728
      %1731 = vmin.xlane.f32.xlu0 %v1730
      %v1732 = vpop.xlane.xlu0 %1731
      %vm1733 = vcmp.eq.f32.partialorder %v1730, %v1732
      %v1734 = vsel %vm1733, %v1729, inf
      %1735 = vmin.xlane.f32.xlu0 %v1734
      %v1736 = vpop.xlane.xlu0 %1735
      %v1737 = vcvt.f32.s32 %v1736
      %v1738 = vcvt.f32.s32 %v1732
      %v1739 = vshll.u32 %v1738, 16
      %v1740 = vadd.s32 %v1739, %v1737
      %v1741 = vsel %vm379, %v1695, 2147483647
      %v1742 = vand.u32 %v1741, 65535
      %v1743 = vshra.s32 %v1741, 16
      %v1744 = vcvt.s32.f32 %v1742
      %v1745 = vcvt.s32.f32 %v1743
      %1746 = vmin.xlane.f32.xlu0 %v1745
      %v1747 = vpop.xlane.xlu0 %1746
      %vm1748 = vcmp.eq.f32.partialorder %v1745, %v1747
      %v1749 = vsel %vm1748, %v1744, inf
      %1750 = vmin.xlane.f32.xlu0 %v1749
      %v1751 = vpop.xlane.xlu0 %1750
      %v1752 = vcvt.f32.s32 %v1751
      %v1753 = vcvt.f32.s32 %v1747
      %v1754 = vshll.u32 %v1753, 16
      %v1755 = vadd.s32 %v1754, %v1752
      %vm1756 = vcmp.eq.s32.totalorder %v1672, %v1710
      %vm1757 = vcmp.eq.s32.totalorder %v1673, %v1725
      %vm1758 = vcmp.eq.s32.totalorder %v1674, %v1740
      %vm1759 = vcmp.eq.s32.totalorder %v1675, %v1755
      %v1760 = vsel %vm1756, 1, %v1544
      %v1761 = vsel %vm1757, 1, %v1545
      %v1762 = vsel %vm1758, 1, %v1546
      %v1763 = vsel %vm1759, 1, %v1547
      %v1764 = vsel %vm1756, %v1664, %v1548
      %v1765 = vsel %vm1757, %v1665, %v1549
      %v1766 = vsel %vm1758, %v1666, %v1550
      %v1767 = vsel %vm1759, %v1667, %v1551
      %v1768 = vsel %vm1756, %v1672, %v1552
      %v1769 = vsel %vm1757, %v1673, %v1553
      %v1770 = vsel %vm1758, %v1674, %v1554
      %v1771 = vsel %vm1759, %v1675, %v1555
      %v1772 = vsel %vm1756, 1e+30, %v1664
      %v1773 = vsel %vm1757, 1e+30, %v1665
      %v1774 = vsel %vm1758, 1e+30, %v1666
      %v1775 = vsel %vm1759, 1e+30, %v1667
      %v1776 = vsel %vm1756, 1, 0
      %v1777 = vsel %vm1757, 1, 0
      %v1778 = vsel %vm1758, 1, 0
      %v1779 = vsel %vm1759, 1, 0
      %vm1780 = vcmp.eq.s32.totalorder %v1776, 1
      %vm1781 = vcmp.eq.s32.totalorder %v1777, 1
      %vm1782 = vcmp.eq.s32.totalorder %v1778, 1
      %vm1783 = vcmp.eq.s32.totalorder %v1779, 1
      %v1784 = vsel %vm1780, %v257, 0.0
      %v1785 = vsel %vm1781, %v258, 0.0
      %v1786 = vsel %vm1782, %v259, 0.0
      %v1787 = vsel %vm1783, %v260, 0.0
      %v1788 = vsel %vm1780, %v261, 0.0
      %v1789 = vsel %vm1781, %v262, 0.0
      %v1790 = vsel %vm1782, %v263, 0.0
      %v1791 = vsel %vm1783, %v264, 0.0
      %v1792 = vsel %vm1780, %v265, 0.0
      %v1793 = vsel %vm1781, %v266, 0.0
      %v1794 = vsel %vm1782, %v267, 0.0
      %v1795 = vsel %vm1783, %v268, 0.0
      %v1796 = vsel %vm379, %v1784, 0.0
      %1797 = vadd.xlane.f32.xlu0 %v1796
      %v1798 = vpop.xlane.xlu0 %1797
      %v1799 = vsel %vm379, %v1785, 0.0
      %1800 = vadd.xlane.f32.xlu0 %v1799
      %v1801 = vpop.xlane.xlu0 %1800
      %v1802 = vsel %vm379, %v1786, 0.0
      %1803 = vadd.xlane.f32.xlu0 %v1802
      %v1804 = vpop.xlane.xlu0 %1803
      %v1805 = vsel %vm379, %v1787, 0.0
      %1806 = vadd.xlane.f32.xlu0 %v1805
      %v1807 = vpop.xlane.xlu0 %1806
      %v1808 = vsel %vm379, %v1788, 0.0
      %1809 = vadd.xlane.f32.xlu0 %v1808
      %v1810 = vpop.xlane.xlu0 %1809
      %v1811 = vsel %vm379, %v1789, 0.0
      %1812 = vadd.xlane.f32.xlu0 %v1811
      %v1813 = vpop.xlane.xlu0 %1812
      %v1814 = vsel %vm379, %v1790, 0.0
      %1815 = vadd.xlane.f32.xlu0 %v1814
      %v1816 = vpop.xlane.xlu0 %1815
      %v1817 = vsel %vm379, %v1791, 0.0
      %1818 = vadd.xlane.f32.xlu0 %v1817
      %v1819 = vpop.xlane.xlu0 %1818
      %v1820 = vsel %vm379, %v1792, 0.0
      %1821 = vadd.xlane.f32.xlu0 %v1820
      %v1822 = vpop.xlane.xlu0 %1821
      %v1823 = vsel %vm379, %v1793, 0.0
      %1824 = vadd.xlane.f32.xlu0 %v1823
      %v1825 = vpop.xlane.xlu0 %1824
      %v1826 = vsel %vm379, %v1794, 0.0
      %1827 = vadd.xlane.f32.xlu0 %v1826
      %v1828 = vpop.xlane.xlu0 %1827
      %v1829 = vsel %vm379, %v1795, 0.0
      %1830 = vadd.xlane.f32.xlu0 %v1829
      %v1831 = vpop.xlane.xlu0 %1830
      %v1832 = vshra.s32 %v1710, 4
      %v1833 = vshra.s32 %v1725, 4
      %v1834 = vshra.s32 %v1740, 4
      %v1835 = vshra.s32 %v1755, 4
      %v1836 = vsub.f32 %v257, %v1798
      %v1837 = vsub.f32 %v258, %v1801
      %v1838 = vsub.f32 %v259, %v1804
      %v1839 = vsub.f32 %v260, %v1807
      %v1840 = vsub.f32 %v261, %v1810
      %v1841 = vsub.f32 %v262, %v1813
      %v1842 = vsub.f32 %v263, %v1816
      %v1843 = vsub.f32 %v264, %v1819
      %v1844 = vsub.f32 %v265, %v1822
      %v1845 = vsub.f32 %v266, %v1825
      %v1846 = vsub.f32 %v267, %v1828
      %v1847 = vsub.f32 %v268, %v1831
      %v1848 = vmul.f32 %v1836, %v1836
      %v1849 = vmul.f32 %v1837, %v1837
      %v1850 = vmul.f32 %v1838, %v1838
      %v1851 = vmul.f32 %v1839, %v1839
      %v1852 = vmul.f32 %v1840, %v1840
      %v1853 = vmul.f32 %v1841, %v1841
      %v1854 = vmul.f32 %v1842, %v1842
      %v1855 = vmul.f32 %v1843, %v1843
      %v1856 = vadd.f32 %v1848, %v1852
      %v1857 = vadd.f32 %v1849, %v1853
      %v1858 = vadd.f32 %v1850, %v1854
      %v1859 = vadd.f32 %v1851, %v1855
      %v1860 = vmul.f32 %v1844, %v1844
      %v1861 = vmul.f32 %v1845, %v1845
      %v1862 = vmul.f32 %v1846, %v1846
      %v1863 = vmul.f32 %v1847, %v1847
      %v1864 = vadd.f32 %v1856, %v1860
      %v1865 = vadd.f32 %v1857, %v1861
      %v1866 = vadd.f32 %v1858, %v1862
      %v1867 = vadd.f32 %v1859, %v1863
      %vm1868 = vcmp.eq.s32.totalorder %v1760, 0
      %vm1869 = vcmp.eq.s32.totalorder %v1761, 0
      %vm1870 = vcmp.eq.s32.totalorder %v1762, 0
      %vm1871 = vcmp.eq.s32.totalorder %v1763, 0
      %vm1872 = vcmp.lt.f32.partialorder %v1864, %v1772
      %vm1873 = vcmp.lt.f32.partialorder %v1865, %v1773
      %vm1874 = vcmp.lt.f32.partialorder %v1866, %v1774
      %vm1875 = vcmp.lt.f32.partialorder %v1867, %v1775
      %vm1876 = vmand %vm1868, %vm1872
      %vm1877 = vmand %vm1869, %vm1873
      %vm1878 = vmand %vm1870, %vm1874
      %vm1879 = vmand %vm1871, %vm1875
      %v1880 = vsel %vm1876, %v1864, %v1772
      %v1881 = vsel %vm1877, %v1865, %v1773
      %v1882 = vsel %vm1878, %v1866, %v1774
      %v1883 = vsel %vm1879, %v1867, %v1775
      %v1884 = vadd.s32 %v271, %v1832
      %v1885 = vadd.s32 %v271, %v1833
      %v1886 = vadd.s32 %v271, %v1834
      %v1887 = vadd.s32 %v271, %v1835
      %v1888 = vsel %vm1876, %v1884, %v1672
      %v1889 = vsel %vm1877, %v1885, %v1673
      %v1890 = vsel %vm1878, %v1886, %v1674
      %v1891 = vsel %vm1879, %v1887, %v1675
      %v1892 = vsel %vm379, %v1880, inf
      %1893 = vmin.xlane.f32.xlu0 %v1892
      %v1894 = vpop.xlane.xlu0 %1893
      %v1895 = vsel %vm379, %v1881, inf
      %1896 = vmin.xlane.f32.xlu0 %v1895
      %v1897 = vpop.xlane.xlu0 %1896
      %v1898 = vsel %vm379, %v1882, inf
      %1899 = vmin.xlane.f32.xlu0 %v1898
      %v1900 = vpop.xlane.xlu0 %1899
      %v1901 = vsel %vm379, %v1883, inf
      %1902 = vmin.xlane.f32.xlu0 %v1901
      %v1903 = vpop.xlane.xlu0 %1902
      %vm1904 = vcmp.eq.f32.partialorder %v1880, %v1894
      %vm1905 = vcmp.eq.f32.partialorder %v1881, %v1897
      %vm1906 = vcmp.eq.f32.partialorder %v1882, %v1900
      %vm1907 = vcmp.eq.f32.partialorder %v1883, %v1903
      %v1908 = vsel %vm1904, %v1888, 1073741823
      %v1909 = vsel %vm1905, %v1889, 1073741823
      %v1910 = vsel %vm1906, %v1890, 1073741823
      %v1911 = vsel %vm1907, %v1891, 1073741823
      %v1912 = vsel %vm379, %v1908, 2147483647
      %v1913 = vand.u32 %v1912, 65535
      %v1914 = vshra.s32 %v1912, 16
      %v1915 = vcvt.s32.f32 %v1913
      %v1916 = vcvt.s32.f32 %v1914
      %1917 = vmin.xlane.f32.xlu0 %v1916
      %v1918 = vpop.xlane.xlu0 %1917
      %vm1919 = vcmp.eq.f32.partialorder %v1916, %v1918
      %v1920 = vsel %vm1919, %v1915, inf
      %1921 = vmin.xlane.f32.xlu0 %v1920
      %v1922 = vpop.xlane.xlu0 %1921
      %v1923 = vcvt.f32.s32 %v1922
      %v1924 = vcvt.f32.s32 %v1918
      %v1925 = vshll.u32 %v1924, 16
      %v1926 = vadd.s32 %v1925, %v1923
      %v1927 = vsel %vm379, %v1909, 2147483647
      %v1928 = vand.u32 %v1927, 65535
      %v1929 = vshra.s32 %v1927, 16
      %v1930 = vcvt.s32.f32 %v1928
      %v1931 = vcvt.s32.f32 %v1929
      %1932 = vmin.xlane.f32.xlu0 %v1931
      %v1933 = vpop.xlane.xlu0 %1932
      %vm1934 = vcmp.eq.f32.partialorder %v1931, %v1933
      %v1935 = vsel %vm1934, %v1930, inf
      %1936 = vmin.xlane.f32.xlu0 %v1935
      %v1937 = vpop.xlane.xlu0 %1936
      %v1938 = vcvt.f32.s32 %v1937
      %v1939 = vcvt.f32.s32 %v1933
      %v1940 = vshll.u32 %v1939, 16
      %v1941 = vadd.s32 %v1940, %v1938
      %v1942 = vsel %vm379, %v1910, 2147483647
      %v1943 = vand.u32 %v1942, 65535
      %v1944 = vshra.s32 %v1942, 16
      %v1945 = vcvt.s32.f32 %v1943
      %v1946 = vcvt.s32.f32 %v1944
      %1947 = vmin.xlane.f32.xlu0 %v1946
      %v1948 = vpop.xlane.xlu0 %1947
      %vm1949 = vcmp.eq.f32.partialorder %v1946, %v1948
      %v1950 = vsel %vm1949, %v1945, inf
      %1951 = vmin.xlane.f32.xlu0 %v1950
      %v1952 = vpop.xlane.xlu0 %1951
      %v1953 = vcvt.f32.s32 %v1952
      %v1954 = vcvt.f32.s32 %v1948
      %v1955 = vshll.u32 %v1954, 16
      %v1956 = vadd.s32 %v1955, %v1953
      %v1957 = vsel %vm379, %v1911, 2147483647
      %v1958 = vand.u32 %v1957, 65535
      %v1959 = vshra.s32 %v1957, 16
      %v1960 = vcvt.s32.f32 %v1958
      %v1961 = vcvt.s32.f32 %v1959
      %1962 = vmin.xlane.f32.xlu0 %v1961
      %v1963 = vpop.xlane.xlu0 %1962
      %vm1964 = vcmp.eq.f32.partialorder %v1961, %v1963
      %v1965 = vsel %vm1964, %v1960, inf
      %1966 = vmin.xlane.f32.xlu0 %v1965
      %v1967 = vpop.xlane.xlu0 %1966
      %v1968 = vcvt.f32.s32 %v1967
      %v1969 = vcvt.f32.s32 %v1963
      %v1970 = vshll.u32 %v1969, 16
      %v1971 = vadd.s32 %v1970, %v1968
      %vm1972 = vcmp.eq.s32.totalorder %v1888, %v1926
      %vm1973 = vcmp.eq.s32.totalorder %v1889, %v1941
      %vm1974 = vcmp.eq.s32.totalorder %v1890, %v1956
      %vm1975 = vcmp.eq.s32.totalorder %v1891, %v1971
      %v1976 = vsel %vm1972, 1, %v1760
      %v1977 = vsel %vm1973, 1, %v1761
      %v1978 = vsel %vm1974, 1, %v1762
      %v1979 = vsel %vm1975, 1, %v1763
      %v1980 = vsel %vm1972, %v1880, %v1764
      %v1981 = vsel %vm1973, %v1881, %v1765
      %v1982 = vsel %vm1974, %v1882, %v1766
      %v1983 = vsel %vm1975, %v1883, %v1767
      %v1984 = vsel %vm1972, %v1888, %v1768
      %v1985 = vsel %vm1973, %v1889, %v1769
      %v1986 = vsel %vm1974, %v1890, %v1770
      %v1987 = vsel %vm1975, %v1891, %v1771
      %v1988 = vsel %vm1972, 1e+30, %v1880
      %v1989 = vsel %vm1973, 1e+30, %v1881
      %v1990 = vsel %vm1974, 1e+30, %v1882
      %v1991 = vsel %vm1975, 1e+30, %v1883
      %v1992 = vsel %vm1972, 1, 0
      %v1993 = vsel %vm1973, 1, 0
      %v1994 = vsel %vm1974, 1, 0
      %v1995 = vsel %vm1975, 1, 0
      %vm1996 = vcmp.eq.s32.totalorder %v1992, 1
      %vm1997 = vcmp.eq.s32.totalorder %v1993, 1
      %vm1998 = vcmp.eq.s32.totalorder %v1994, 1
      %vm1999 = vcmp.eq.s32.totalorder %v1995, 1
      %v2000 = vsel %vm1996, %v257, 0.0
      %v2001 = vsel %vm1997, %v258, 0.0
      %v2002 = vsel %vm1998, %v259, 0.0
      %v2003 = vsel %vm1999, %v260, 0.0
      %v2004 = vsel %vm1996, %v261, 0.0
      %v2005 = vsel %vm1997, %v262, 0.0
      %v2006 = vsel %vm1998, %v263, 0.0
      %v2007 = vsel %vm1999, %v264, 0.0
      %v2008 = vsel %vm1996, %v265, 0.0
      %v2009 = vsel %vm1997, %v266, 0.0
      %v2010 = vsel %vm1998, %v267, 0.0
      %v2011 = vsel %vm1999, %v268, 0.0
      %v2012 = vsel %vm379, %v2000, 0.0
      %2013 = vadd.xlane.f32.xlu0 %v2012
      %v2014 = vpop.xlane.xlu0 %2013
      %v2015 = vsel %vm379, %v2001, 0.0
      %2016 = vadd.xlane.f32.xlu0 %v2015
      %v2017 = vpop.xlane.xlu0 %2016
      %v2018 = vsel %vm379, %v2002, 0.0
      %2019 = vadd.xlane.f32.xlu0 %v2018
      %v2020 = vpop.xlane.xlu0 %2019
      %v2021 = vsel %vm379, %v2003, 0.0
      %2022 = vadd.xlane.f32.xlu0 %v2021
      %v2023 = vpop.xlane.xlu0 %2022
      %v2024 = vsel %vm379, %v2004, 0.0
      %2025 = vadd.xlane.f32.xlu0 %v2024
      %v2026 = vpop.xlane.xlu0 %2025
      %v2027 = vsel %vm379, %v2005, 0.0
      %2028 = vadd.xlane.f32.xlu0 %v2027
      %v2029 = vpop.xlane.xlu0 %2028
      %v2030 = vsel %vm379, %v2006, 0.0
      %2031 = vadd.xlane.f32.xlu0 %v2030
      %v2032 = vpop.xlane.xlu0 %2031
      %v2033 = vsel %vm379, %v2007, 0.0
      %2034 = vadd.xlane.f32.xlu0 %v2033
      %v2035 = vpop.xlane.xlu0 %2034
      %v2036 = vsel %vm379, %v2008, 0.0
      %2037 = vadd.xlane.f32.xlu0 %v2036
      %v2038 = vpop.xlane.xlu0 %2037
      %v2039 = vsel %vm379, %v2009, 0.0
      %2040 = vadd.xlane.f32.xlu0 %v2039
      %v2041 = vpop.xlane.xlu0 %2040
      %v2042 = vsel %vm379, %v2010, 0.0
      %2043 = vadd.xlane.f32.xlu0 %v2042
      %v2044 = vpop.xlane.xlu0 %2043
      %v2045 = vsel %vm379, %v2011, 0.0
      %2046 = vadd.xlane.f32.xlu0 %v2045
      %v2047 = vpop.xlane.xlu0 %2046
      %v2048 = vshra.s32 %v1926, 4
      %v2049 = vshra.s32 %v1941, 4
      %v2050 = vshra.s32 %v1956, 4
      %v2051 = vshra.s32 %v1971, 4
      %v2052 = vsub.f32 %v257, %v2014
      %v2053 = vsub.f32 %v258, %v2017
      %v2054 = vsub.f32 %v259, %v2020
      %v2055 = vsub.f32 %v260, %v2023
      %v2056 = vsub.f32 %v261, %v2026
      %v2057 = vsub.f32 %v262, %v2029
      %v2058 = vsub.f32 %v263, %v2032
      %v2059 = vsub.f32 %v264, %v2035
      %v2060 = vsub.f32 %v265, %v2038
      %v2061 = vsub.f32 %v266, %v2041
      %v2062 = vsub.f32 %v267, %v2044
      %v2063 = vsub.f32 %v268, %v2047
      %v2064 = vmul.f32 %v2052, %v2052
      %v2065 = vmul.f32 %v2053, %v2053
      %v2066 = vmul.f32 %v2054, %v2054
      %v2067 = vmul.f32 %v2055, %v2055
      %v2068 = vmul.f32 %v2056, %v2056
      %v2069 = vmul.f32 %v2057, %v2057
      %v2070 = vmul.f32 %v2058, %v2058
      %v2071 = vmul.f32 %v2059, %v2059
      %v2072 = vadd.f32 %v2064, %v2068
      %v2073 = vadd.f32 %v2065, %v2069
      %v2074 = vadd.f32 %v2066, %v2070
      %v2075 = vadd.f32 %v2067, %v2071
      %v2076 = vmul.f32 %v2060, %v2060
      %v2077 = vmul.f32 %v2061, %v2061
      %v2078 = vmul.f32 %v2062, %v2062
      %v2079 = vmul.f32 %v2063, %v2063
      %v2080 = vadd.f32 %v2072, %v2076
      %v2081 = vadd.f32 %v2073, %v2077
      %v2082 = vadd.f32 %v2074, %v2078
      %v2083 = vadd.f32 %v2075, %v2079
      %vm2084 = vcmp.eq.s32.totalorder %v1976, 0
      %vm2085 = vcmp.eq.s32.totalorder %v1977, 0
      %vm2086 = vcmp.eq.s32.totalorder %v1978, 0
      %vm2087 = vcmp.eq.s32.totalorder %v1979, 0
      %vm2088 = vcmp.lt.f32.partialorder %v2080, %v1988
      %vm2089 = vcmp.lt.f32.partialorder %v2081, %v1989
      %vm2090 = vcmp.lt.f32.partialorder %v2082, %v1990
      %vm2091 = vcmp.lt.f32.partialorder %v2083, %v1991
      %vm2092 = vmand %vm2084, %vm2088
      %vm2093 = vmand %vm2085, %vm2089
      %vm2094 = vmand %vm2086, %vm2090
      %vm2095 = vmand %vm2087, %vm2091
      %v2096 = vsel %vm2092, %v2080, %v1988
      %v2097 = vsel %vm2093, %v2081, %v1989
      %v2098 = vsel %vm2094, %v2082, %v1990
      %v2099 = vsel %vm2095, %v2083, %v1991
      %v2100 = vadd.s32 %v271, %v2048
      %v2101 = vadd.s32 %v271, %v2049
      %v2102 = vadd.s32 %v271, %v2050
      %v2103 = vadd.s32 %v271, %v2051
      %v2104 = vsel %vm2092, %v2100, %v1888
      %v2105 = vsel %vm2093, %v2101, %v1889
      %v2106 = vsel %vm2094, %v2102, %v1890
      %v2107 = vsel %vm2095, %v2103, %v1891
      %v2108 = vsel %vm379, %v2096, inf
      %2109 = vmin.xlane.f32.xlu0 %v2108
      %v2110 = vpop.xlane.xlu0 %2109
      %v2111 = vsel %vm379, %v2097, inf
      %2112 = vmin.xlane.f32.xlu0 %v2111
      %v2113 = vpop.xlane.xlu0 %2112
      %v2114 = vsel %vm379, %v2098, inf
      %2115 = vmin.xlane.f32.xlu0 %v2114
      %v2116 = vpop.xlane.xlu0 %2115
      %v2117 = vsel %vm379, %v2099, inf
      %2118 = vmin.xlane.f32.xlu0 %v2117
      %v2119 = vpop.xlane.xlu0 %2118
      %vm2120 = vcmp.eq.f32.partialorder %v2096, %v2110
      %vm2121 = vcmp.eq.f32.partialorder %v2097, %v2113
      %vm2122 = vcmp.eq.f32.partialorder %v2098, %v2116
      %vm2123 = vcmp.eq.f32.partialorder %v2099, %v2119
      %v2124 = vsel %vm2120, %v2104, 1073741823
      %v2125 = vsel %vm2121, %v2105, 1073741823
      %v2126 = vsel %vm2122, %v2106, 1073741823
      %v2127 = vsel %vm2123, %v2107, 1073741823
      %v2128 = vsel %vm379, %v2124, 2147483647
      %v2129 = vand.u32 %v2128, 65535
      %v2130 = vshra.s32 %v2128, 16
      %v2131 = vcvt.s32.f32 %v2129
      %v2132 = vcvt.s32.f32 %v2130
      %2133 = vmin.xlane.f32.xlu0 %v2132
      %v2134 = vpop.xlane.xlu0 %2133
      %vm2135 = vcmp.eq.f32.partialorder %v2132, %v2134
      %v2136 = vsel %vm2135, %v2131, inf
      %2137 = vmin.xlane.f32.xlu0 %v2136
      %v2138 = vpop.xlane.xlu0 %2137
      %v2139 = vcvt.f32.s32 %v2138
      %v2140 = vcvt.f32.s32 %v2134
      %v2141 = vshll.u32 %v2140, 16
      %v2142 = vadd.s32 %v2141, %v2139
      %v2143 = vsel %vm379, %v2125, 2147483647
      %v2144 = vand.u32 %v2143, 65535
      %v2145 = vshra.s32 %v2143, 16
      %v2146 = vcvt.s32.f32 %v2144
      %v2147 = vcvt.s32.f32 %v2145
      %2148 = vmin.xlane.f32.xlu0 %v2147
      %v2149 = vpop.xlane.xlu0 %2148
      %vm2150 = vcmp.eq.f32.partialorder %v2147, %v2149
      %v2151 = vsel %vm2150, %v2146, inf
      %2152 = vmin.xlane.f32.xlu0 %v2151
      %v2153 = vpop.xlane.xlu0 %2152
      %v2154 = vcvt.f32.s32 %v2153
      %v2155 = vcvt.f32.s32 %v2149
      %v2156 = vshll.u32 %v2155, 16
      %v2157 = vadd.s32 %v2156, %v2154
      %v2158 = vsel %vm379, %v2126, 2147483647
      %v2159 = vand.u32 %v2158, 65535
      %v2160 = vshra.s32 %v2158, 16
      %v2161 = vcvt.s32.f32 %v2159
      %v2162 = vcvt.s32.f32 %v2160
      %2163 = vmin.xlane.f32.xlu0 %v2162
      %v2164 = vpop.xlane.xlu0 %2163
      %vm2165 = vcmp.eq.f32.partialorder %v2162, %v2164
      %v2166 = vsel %vm2165, %v2161, inf
      %2167 = vmin.xlane.f32.xlu0 %v2166
      %v2168 = vpop.xlane.xlu0 %2167
      %v2169 = vcvt.f32.s32 %v2168
      %v2170 = vcvt.f32.s32 %v2164
      %v2171 = vshll.u32 %v2170, 16
      %v2172 = vadd.s32 %v2171, %v2169
      %v2173 = vsel %vm379, %v2127, 2147483647
      %v2174 = vand.u32 %v2173, 65535
      %v2175 = vshra.s32 %v2173, 16
      %v2176 = vcvt.s32.f32 %v2174
      %v2177 = vcvt.s32.f32 %v2175
      %2178 = vmin.xlane.f32.xlu0 %v2177
      %v2179 = vpop.xlane.xlu0 %2178
      %vm2180 = vcmp.eq.f32.partialorder %v2177, %v2179
      %v2181 = vsel %vm2180, %v2176, inf
      %2182 = vmin.xlane.f32.xlu0 %v2181
      %v2183 = vpop.xlane.xlu0 %2182
      %v2184 = vcvt.f32.s32 %v2183
      %v2185 = vcvt.f32.s32 %v2179
      %v2186 = vshll.u32 %v2185, 16
      %v2187 = vadd.s32 %v2186, %v2184
      %vm2188 = vcmp.eq.s32.totalorder %v2104, %v2142
      %vm2189 = vcmp.eq.s32.totalorder %v2105, %v2157
      %vm2190 = vcmp.eq.s32.totalorder %v2106, %v2172
      %vm2191 = vcmp.eq.s32.totalorder %v2107, %v2187
      %v2192 = vsel %vm2188, 1, %v1976
      %v2193 = vsel %vm2189, 1, %v1977
      %v2194 = vsel %vm2190, 1, %v1978
      %v2195 = vsel %vm2191, 1, %v1979
      %v2196 = vsel %vm2188, %v2096, %v1980
      %v2197 = vsel %vm2189, %v2097, %v1981
      %v2198 = vsel %vm2190, %v2098, %v1982
      %v2199 = vsel %vm2191, %v2099, %v1983
      %v2200 = vsel %vm2188, %v2104, %v1984
      %v2201 = vsel %vm2189, %v2105, %v1985
      %v2202 = vsel %vm2190, %v2106, %v1986
      %v2203 = vsel %vm2191, %v2107, %v1987
      %v2204 = vsel %vm2188, 1e+30, %v2096
      %v2205 = vsel %vm2189, 1e+30, %v2097
      %v2206 = vsel %vm2190, 1e+30, %v2098
      %v2207 = vsel %vm2191, 1e+30, %v2099
      %v2208 = vsel %vm2188, 1, 0
      %v2209 = vsel %vm2189, 1, 0
      %v2210 = vsel %vm2190, 1, 0
      %v2211 = vsel %vm2191, 1, 0
      %vm2212 = vcmp.eq.s32.totalorder %v2208, 1
      %vm2213 = vcmp.eq.s32.totalorder %v2209, 1
      %vm2214 = vcmp.eq.s32.totalorder %v2210, 1
      %vm2215 = vcmp.eq.s32.totalorder %v2211, 1
      %v2216 = vsel %vm2212, %v257, 0.0
      %v2217 = vsel %vm2213, %v258, 0.0
      %v2218 = vsel %vm2214, %v259, 0.0
      %v2219 = vsel %vm2215, %v260, 0.0
      %v2220 = vsel %vm2212, %v261, 0.0
      %v2221 = vsel %vm2213, %v262, 0.0
      %v2222 = vsel %vm2214, %v263, 0.0
      %v2223 = vsel %vm2215, %v264, 0.0
      %v2224 = vsel %vm2212, %v265, 0.0
      %v2225 = vsel %vm2213, %v266, 0.0
      %v2226 = vsel %vm2214, %v267, 0.0
      %v2227 = vsel %vm2215, %v268, 0.0
      %v2228 = vsel %vm379, %v2216, 0.0
      %2229 = vadd.xlane.f32.xlu0 %v2228
      %v2230 = vpop.xlane.xlu0 %2229
      %v2231 = vsel %vm379, %v2217, 0.0
      %2232 = vadd.xlane.f32.xlu0 %v2231
      %v2233 = vpop.xlane.xlu0 %2232
      %v2234 = vsel %vm379, %v2218, 0.0
      %2235 = vadd.xlane.f32.xlu0 %v2234
      %v2236 = vpop.xlane.xlu0 %2235
      %v2237 = vsel %vm379, %v2219, 0.0
      %2238 = vadd.xlane.f32.xlu0 %v2237
      %v2239 = vpop.xlane.xlu0 %2238
      %v2240 = vsel %vm379, %v2220, 0.0
      %2241 = vadd.xlane.f32.xlu0 %v2240
      %v2242 = vpop.xlane.xlu0 %2241
      %v2243 = vsel %vm379, %v2221, 0.0
      %2244 = vadd.xlane.f32.xlu0 %v2243
      %v2245 = vpop.xlane.xlu0 %2244
      %v2246 = vsel %vm379, %v2222, 0.0
      %2247 = vadd.xlane.f32.xlu0 %v2246
      %v2248 = vpop.xlane.xlu0 %2247
      %v2249 = vsel %vm379, %v2223, 0.0
      %2250 = vadd.xlane.f32.xlu0 %v2249
      %v2251 = vpop.xlane.xlu0 %2250
      %v2252 = vsel %vm379, %v2224, 0.0
      %2253 = vadd.xlane.f32.xlu0 %v2252
      %v2254 = vpop.xlane.xlu0 %2253
      %v2255 = vsel %vm379, %v2225, 0.0
      %2256 = vadd.xlane.f32.xlu0 %v2255
      %v2257 = vpop.xlane.xlu0 %2256
      %v2258 = vsel %vm379, %v2226, 0.0
      %2259 = vadd.xlane.f32.xlu0 %v2258
      %v2260 = vpop.xlane.xlu0 %2259
      %v2261 = vsel %vm379, %v2227, 0.0
      %2262 = vadd.xlane.f32.xlu0 %v2261
      %v2263 = vpop.xlane.xlu0 %2262
      %v2264 = vshra.s32 %v2142, 4
      %v2265 = vshra.s32 %v2157, 4
      %v2266 = vshra.s32 %v2172, 4
      %v2267 = vshra.s32 %v2187, 4
      %v2268 = vsub.f32 %v257, %v2230
      %v2269 = vsub.f32 %v258, %v2233
      %v2270 = vsub.f32 %v259, %v2236
      %v2271 = vsub.f32 %v260, %v2239
      %v2272 = vsub.f32 %v261, %v2242
      %v2273 = vsub.f32 %v262, %v2245
      %v2274 = vsub.f32 %v263, %v2248
      %v2275 = vsub.f32 %v264, %v2251
      %v2276 = vsub.f32 %v265, %v2254
      %v2277 = vsub.f32 %v266, %v2257
      %v2278 = vsub.f32 %v267, %v2260
      %v2279 = vsub.f32 %v268, %v2263
      %v2280 = vmul.f32 %v2268, %v2268
      %v2281 = vmul.f32 %v2269, %v2269
      %v2282 = vmul.f32 %v2270, %v2270
      %v2283 = vmul.f32 %v2271, %v2271
      %v2284 = vmul.f32 %v2272, %v2272
      %v2285 = vmul.f32 %v2273, %v2273
      %v2286 = vmul.f32 %v2274, %v2274
      %v2287 = vmul.f32 %v2275, %v2275
      %v2288 = vadd.f32 %v2280, %v2284
      %v2289 = vadd.f32 %v2281, %v2285
      %v2290 = vadd.f32 %v2282, %v2286
      %v2291 = vadd.f32 %v2283, %v2287
      %v2292 = vmul.f32 %v2276, %v2276
      %v2293 = vmul.f32 %v2277, %v2277
      %v2294 = vmul.f32 %v2278, %v2278
      %v2295 = vmul.f32 %v2279, %v2279
      %v2296 = vadd.f32 %v2288, %v2292
      %v2297 = vadd.f32 %v2289, %v2293
      %v2298 = vadd.f32 %v2290, %v2294
      %v2299 = vadd.f32 %v2291, %v2295
      %vm2300 = vcmp.eq.s32.totalorder %v2192, 0
      %vm2301 = vcmp.eq.s32.totalorder %v2193, 0
      %vm2302 = vcmp.eq.s32.totalorder %v2194, 0
      %vm2303 = vcmp.eq.s32.totalorder %v2195, 0
      %vm2304 = vcmp.lt.f32.partialorder %v2296, %v2204
      %vm2305 = vcmp.lt.f32.partialorder %v2297, %v2205
      %vm2306 = vcmp.lt.f32.partialorder %v2298, %v2206
      %vm2307 = vcmp.lt.f32.partialorder %v2299, %v2207
      %vm2308 = vmand %vm2300, %vm2304
      %vm2309 = vmand %vm2301, %vm2305
      %vm2310 = vmand %vm2302, %vm2306
      %vm2311 = vmand %vm2303, %vm2307
      %v2312 = vsel %vm2308, %v2296, %v2204
      %v2313 = vsel %vm2309, %v2297, %v2205
      %v2314 = vsel %vm2310, %v2298, %v2206
      %v2315 = vsel %vm2311, %v2299, %v2207
      %v2316 = vadd.s32 %v271, %v2264
      %v2317 = vadd.s32 %v271, %v2265
      %v2318 = vadd.s32 %v271, %v2266
      %v2319 = vadd.s32 %v271, %v2267
      %v2320 = vsel %vm2308, %v2316, %v2104
      %v2321 = vsel %vm2309, %v2317, %v2105
      %v2322 = vsel %vm2310, %v2318, %v2106
      %v2323 = vsel %vm2311, %v2319, %v2107
      %v2324 = vsel %vm379, %v2312, inf
      %2325 = vmin.xlane.f32.xlu0 %v2324
      %v2326 = vpop.xlane.xlu0 %2325
      %v2327 = vsel %vm379, %v2313, inf
      %2328 = vmin.xlane.f32.xlu0 %v2327
      %v2329 = vpop.xlane.xlu0 %2328
      %v2330 = vsel %vm379, %v2314, inf
      %2331 = vmin.xlane.f32.xlu0 %v2330
      %v2332 = vpop.xlane.xlu0 %2331
      %v2333 = vsel %vm379, %v2315, inf
      %2334 = vmin.xlane.f32.xlu0 %v2333
      %v2335 = vpop.xlane.xlu0 %2334
      %vm2336 = vcmp.eq.f32.partialorder %v2312, %v2326
      %vm2337 = vcmp.eq.f32.partialorder %v2313, %v2329
      %vm2338 = vcmp.eq.f32.partialorder %v2314, %v2332
      %vm2339 = vcmp.eq.f32.partialorder %v2315, %v2335
      %v2340 = vsel %vm2336, %v2320, 1073741823
      %v2341 = vsel %vm2337, %v2321, 1073741823
      %v2342 = vsel %vm2338, %v2322, 1073741823
      %v2343 = vsel %vm2339, %v2323, 1073741823
      %v2344 = vsel %vm379, %v2340, 2147483647
      %v2345 = vand.u32 %v2344, 65535
      %v2346 = vshra.s32 %v2344, 16
      %v2347 = vcvt.s32.f32 %v2345
      %v2348 = vcvt.s32.f32 %v2346
      %2349 = vmin.xlane.f32.xlu0 %v2348
      %v2350 = vpop.xlane.xlu0 %2349
      %vm2351 = vcmp.eq.f32.partialorder %v2348, %v2350
      %v2352 = vsel %vm2351, %v2347, inf
      %2353 = vmin.xlane.f32.xlu0 %v2352
      %v2354 = vpop.xlane.xlu0 %2353
      %v2355 = vcvt.f32.s32 %v2354
      %v2356 = vcvt.f32.s32 %v2350
      %v2357 = vshll.u32 %v2356, 16
      %v2358 = vadd.s32 %v2357, %v2355
      %v2359 = vsel %vm379, %v2341, 2147483647
      %v2360 = vand.u32 %v2359, 65535
      %v2361 = vshra.s32 %v2359, 16
      %v2362 = vcvt.s32.f32 %v2360
      %v2363 = vcvt.s32.f32 %v2361
      %2364 = vmin.xlane.f32.xlu0 %v2363
      %v2365 = vpop.xlane.xlu0 %2364
      %vm2366 = vcmp.eq.f32.partialorder %v2363, %v2365
      %v2367 = vsel %vm2366, %v2362, inf
      %2368 = vmin.xlane.f32.xlu0 %v2367
      %v2369 = vpop.xlane.xlu0 %2368
      %v2370 = vcvt.f32.s32 %v2369
      %v2371 = vcvt.f32.s32 %v2365
      %v2372 = vshll.u32 %v2371, 16
      %v2373 = vadd.s32 %v2372, %v2370
      %v2374 = vsel %vm379, %v2342, 2147483647
      %v2375 = vand.u32 %v2374, 65535
      %v2376 = vshra.s32 %v2374, 16
      %v2377 = vcvt.s32.f32 %v2375
      %v2378 = vcvt.s32.f32 %v2376
      %2379 = vmin.xlane.f32.xlu0 %v2378
      %v2380 = vpop.xlane.xlu0 %2379
      %vm2381 = vcmp.eq.f32.partialorder %v2378, %v2380
      %v2382 = vsel %vm2381, %v2377, inf
      %2383 = vmin.xlane.f32.xlu0 %v2382
      %v2384 = vpop.xlane.xlu0 %2383
      %v2385 = vcvt.f32.s32 %v2384
      %v2386 = vcvt.f32.s32 %v2380
      %v2387 = vshll.u32 %v2386, 16
      %v2388 = vadd.s32 %v2387, %v2385
      %v2389 = vsel %vm379, %v2343, 2147483647
      %v2390 = vand.u32 %v2389, 65535
      %v2391 = vshra.s32 %v2389, 16
      %v2392 = vcvt.s32.f32 %v2390
      %v2393 = vcvt.s32.f32 %v2391
      %2394 = vmin.xlane.f32.xlu0 %v2393
      %v2395 = vpop.xlane.xlu0 %2394
      %vm2396 = vcmp.eq.f32.partialorder %v2393, %v2395
      %v2397 = vsel %vm2396, %v2392, inf
      %2398 = vmin.xlane.f32.xlu0 %v2397
      %v2399 = vpop.xlane.xlu0 %2398
      %v2400 = vcvt.f32.s32 %v2399
      %v2401 = vcvt.f32.s32 %v2395
      %v2402 = vshll.u32 %v2401, 16
      %v2403 = vadd.s32 %v2402, %v2400
      %vm2404 = vcmp.eq.s32.totalorder %v2320, %v2358
      %vm2405 = vcmp.eq.s32.totalorder %v2321, %v2373
      %vm2406 = vcmp.eq.s32.totalorder %v2322, %v2388
      %vm2407 = vcmp.eq.s32.totalorder %v2323, %v2403
      %v2408 = vsel %vm2404, 1, %v2192
      %v2409 = vsel %vm2405, 1, %v2193
      %v2410 = vsel %vm2406, 1, %v2194
      %v2411 = vsel %vm2407, 1, %v2195
      %v2412 = vsel %vm2404, %v2312, %v2196
      %v2413 = vsel %vm2405, %v2313, %v2197
      %v2414 = vsel %vm2406, %v2314, %v2198
      %v2415 = vsel %vm2407, %v2315, %v2199
      %v2416 = vsel %vm2404, %v2320, %v2200
      %v2417 = vsel %vm2405, %v2321, %v2201
      %v2418 = vsel %vm2406, %v2322, %v2202
      %v2419 = vsel %vm2407, %v2323, %v2203
      %v2420 = vsel %vm2404, 1e+30, %v2312
      %v2421 = vsel %vm2405, 1e+30, %v2313
      %v2422 = vsel %vm2406, 1e+30, %v2314
      %v2423 = vsel %vm2407, 1e+30, %v2315
      %v2424 = vsel %vm2404, 1, 0
      %v2425 = vsel %vm2405, 1, 0
      %v2426 = vsel %vm2406, 1, 0
      %v2427 = vsel %vm2407, 1, 0
      %vm2428 = vcmp.eq.s32.totalorder %v2424, 1
      %vm2429 = vcmp.eq.s32.totalorder %v2425, 1
      %vm2430 = vcmp.eq.s32.totalorder %v2426, 1
      %vm2431 = vcmp.eq.s32.totalorder %v2427, 1
      %v2432 = vsel %vm2428, %v257, 0.0
      %v2433 = vsel %vm2429, %v258, 0.0
      %v2434 = vsel %vm2430, %v259, 0.0
      %v2435 = vsel %vm2431, %v260, 0.0
      %v2436 = vsel %vm2428, %v261, 0.0
      %v2437 = vsel %vm2429, %v262, 0.0
      %v2438 = vsel %vm2430, %v263, 0.0
      %v2439 = vsel %vm2431, %v264, 0.0
      %v2440 = vsel %vm2428, %v265, 0.0
      %v2441 = vsel %vm2429, %v266, 0.0
      %v2442 = vsel %vm2430, %v267, 0.0
      %v2443 = vsel %vm2431, %v268, 0.0
      %v2444 = vsel %vm379, %v2432, 0.0
      %2445 = vadd.xlane.f32.xlu0 %v2444
      %v2446 = vpop.xlane.xlu0 %2445
      %v2447 = vsel %vm379, %v2433, 0.0
      %2448 = vadd.xlane.f32.xlu0 %v2447
      %v2449 = vpop.xlane.xlu0 %2448
      %v2450 = vsel %vm379, %v2434, 0.0
      %2451 = vadd.xlane.f32.xlu0 %v2450
      %v2452 = vpop.xlane.xlu0 %2451
      %v2453 = vsel %vm379, %v2435, 0.0
      %2454 = vadd.xlane.f32.xlu0 %v2453
      %v2455 = vpop.xlane.xlu0 %2454
      %v2456 = vsel %vm379, %v2436, 0.0
      %2457 = vadd.xlane.f32.xlu0 %v2456
      %v2458 = vpop.xlane.xlu0 %2457
      %v2459 = vsel %vm379, %v2437, 0.0
      %2460 = vadd.xlane.f32.xlu0 %v2459
      %v2461 = vpop.xlane.xlu0 %2460
      %v2462 = vsel %vm379, %v2438, 0.0
      %2463 = vadd.xlane.f32.xlu0 %v2462
      %v2464 = vpop.xlane.xlu0 %2463
      %v2465 = vsel %vm379, %v2439, 0.0
      %2466 = vadd.xlane.f32.xlu0 %v2465
      %v2467 = vpop.xlane.xlu0 %2466
      %v2468 = vsel %vm379, %v2440, 0.0
      %2469 = vadd.xlane.f32.xlu0 %v2468
      %v2470 = vpop.xlane.xlu0 %2469
      %v2471 = vsel %vm379, %v2441, 0.0
      %2472 = vadd.xlane.f32.xlu0 %v2471
      %v2473 = vpop.xlane.xlu0 %2472
      %v2474 = vsel %vm379, %v2442, 0.0
      %2475 = vadd.xlane.f32.xlu0 %v2474
      %v2476 = vpop.xlane.xlu0 %2475
      %v2477 = vsel %vm379, %v2443, 0.0
      %2478 = vadd.xlane.f32.xlu0 %v2477
      %v2479 = vpop.xlane.xlu0 %2478
      %v2480 = vshra.s32 %v2358, 4
      %v2481 = vshra.s32 %v2373, 4
      %v2482 = vshra.s32 %v2388, 4
      %v2483 = vshra.s32 %v2403, 4
      %v2484 = vsub.f32 %v257, %v2446
      %v2485 = vsub.f32 %v258, %v2449
      %v2486 = vsub.f32 %v259, %v2452
      %v2487 = vsub.f32 %v260, %v2455
      %v2488 = vsub.f32 %v261, %v2458
      %v2489 = vsub.f32 %v262, %v2461
      %v2490 = vsub.f32 %v263, %v2464
      %v2491 = vsub.f32 %v264, %v2467
      %v2492 = vsub.f32 %v265, %v2470
      %v2493 = vsub.f32 %v266, %v2473
      %v2494 = vsub.f32 %v267, %v2476
      %v2495 = vsub.f32 %v268, %v2479
      %v2496 = vmul.f32 %v2484, %v2484
      %v2497 = vmul.f32 %v2485, %v2485
      %v2498 = vmul.f32 %v2486, %v2486
      %v2499 = vmul.f32 %v2487, %v2487
      %v2500 = vmul.f32 %v2488, %v2488
      %v2501 = vmul.f32 %v2489, %v2489
      %v2502 = vmul.f32 %v2490, %v2490
      %v2503 = vmul.f32 %v2491, %v2491
      %v2504 = vadd.f32 %v2496, %v2500
      %v2505 = vadd.f32 %v2497, %v2501
      %v2506 = vadd.f32 %v2498, %v2502
      %v2507 = vadd.f32 %v2499, %v2503
      %v2508 = vmul.f32 %v2492, %v2492
      %v2509 = vmul.f32 %v2493, %v2493
      %v2510 = vmul.f32 %v2494, %v2494
      %v2511 = vmul.f32 %v2495, %v2495
      %v2512 = vadd.f32 %v2504, %v2508
      %v2513 = vadd.f32 %v2505, %v2509
      %v2514 = vadd.f32 %v2506, %v2510
      %v2515 = vadd.f32 %v2507, %v2511
      %vm2516 = vcmp.eq.s32.totalorder %v2408, 0
      %vm2517 = vcmp.eq.s32.totalorder %v2409, 0
      %vm2518 = vcmp.eq.s32.totalorder %v2410, 0
      %vm2519 = vcmp.eq.s32.totalorder %v2411, 0
      %vm2520 = vcmp.lt.f32.partialorder %v2512, %v2420
      %vm2521 = vcmp.lt.f32.partialorder %v2513, %v2421
      %vm2522 = vcmp.lt.f32.partialorder %v2514, %v2422
      %vm2523 = vcmp.lt.f32.partialorder %v2515, %v2423
      %vm2524 = vmand %vm2516, %vm2520
      %vm2525 = vmand %vm2517, %vm2521
      %vm2526 = vmand %vm2518, %vm2522
      %vm2527 = vmand %vm2519, %vm2523
      %v2528 = vsel %vm2524, %v2512, %v2420
      %v2529 = vsel %vm2525, %v2513, %v2421
      %v2530 = vsel %vm2526, %v2514, %v2422
      %v2531 = vsel %vm2527, %v2515, %v2423
      %v2532 = vadd.s32 %v271, %v2480
      %v2533 = vadd.s32 %v271, %v2481
      %v2534 = vadd.s32 %v271, %v2482
      %v2535 = vadd.s32 %v271, %v2483
      %v2536 = vsel %vm2524, %v2532, %v2320
      %v2537 = vsel %vm2525, %v2533, %v2321
      %v2538 = vsel %vm2526, %v2534, %v2322
      %v2539 = vsel %vm2527, %v2535, %v2323
      %v2540 = vsel %vm379, %v2528, inf
      %2541 = vmin.xlane.f32.xlu0 %v2540
      %v2542 = vpop.xlane.xlu0 %2541
      %v2543 = vsel %vm379, %v2529, inf
      %2544 = vmin.xlane.f32.xlu0 %v2543
      %v2545 = vpop.xlane.xlu0 %2544
      %v2546 = vsel %vm379, %v2530, inf
      %2547 = vmin.xlane.f32.xlu0 %v2546
      %v2548 = vpop.xlane.xlu0 %2547
      %v2549 = vsel %vm379, %v2531, inf
      %2550 = vmin.xlane.f32.xlu0 %v2549
      %v2551 = vpop.xlane.xlu0 %2550
      %vm2552 = vcmp.eq.f32.partialorder %v2528, %v2542
      %vm2553 = vcmp.eq.f32.partialorder %v2529, %v2545
      %vm2554 = vcmp.eq.f32.partialorder %v2530, %v2548
      %vm2555 = vcmp.eq.f32.partialorder %v2531, %v2551
      %v2556 = vsel %vm2552, %v2536, 1073741823
      %v2557 = vsel %vm2553, %v2537, 1073741823
      %v2558 = vsel %vm2554, %v2538, 1073741823
      %v2559 = vsel %vm2555, %v2539, 1073741823
      %v2560 = vsel %vm379, %v2556, 2147483647
      %v2561 = vand.u32 %v2560, 65535
      %v2562 = vshra.s32 %v2560, 16
      %v2563 = vcvt.s32.f32 %v2561
      %v2564 = vcvt.s32.f32 %v2562
      %2565 = vmin.xlane.f32.xlu0 %v2564
      %v2566 = vpop.xlane.xlu0 %2565
      %vm2567 = vcmp.eq.f32.partialorder %v2564, %v2566
      %v2568 = vsel %vm2567, %v2563, inf
      %2569 = vmin.xlane.f32.xlu0 %v2568
      %v2570 = vpop.xlane.xlu0 %2569
      %v2571 = vcvt.f32.s32 %v2570
      %v2572 = vcvt.f32.s32 %v2566
      %v2573 = vshll.u32 %v2572, 16
      %v2574 = vadd.s32 %v2573, %v2571
      %v2575 = vsel %vm379, %v2557, 2147483647
      %v2576 = vand.u32 %v2575, 65535
      %v2577 = vshra.s32 %v2575, 16
      %v2578 = vcvt.s32.f32 %v2576
      %v2579 = vcvt.s32.f32 %v2577
      %2580 = vmin.xlane.f32.xlu0 %v2579
      %v2581 = vpop.xlane.xlu0 %2580
      %vm2582 = vcmp.eq.f32.partialorder %v2579, %v2581
      %v2583 = vsel %vm2582, %v2578, inf
      %2584 = vmin.xlane.f32.xlu0 %v2583
      %v2585 = vpop.xlane.xlu0 %2584
      %v2586 = vcvt.f32.s32 %v2585
      %v2587 = vcvt.f32.s32 %v2581
      %v2588 = vshll.u32 %v2587, 16
      %v2589 = vadd.s32 %v2588, %v2586
      %v2590 = vsel %vm379, %v2558, 2147483647
      %v2591 = vand.u32 %v2590, 65535
      %v2592 = vshra.s32 %v2590, 16
      %v2593 = vcvt.s32.f32 %v2591
      %v2594 = vcvt.s32.f32 %v2592
      %2595 = vmin.xlane.f32.xlu0 %v2594
      %v2596 = vpop.xlane.xlu0 %2595
      %vm2597 = vcmp.eq.f32.partialorder %v2594, %v2596
      %v2598 = vsel %vm2597, %v2593, inf
      %2599 = vmin.xlane.f32.xlu0 %v2598
      %v2600 = vpop.xlane.xlu0 %2599
      %v2601 = vcvt.f32.s32 %v2600
      %v2602 = vcvt.f32.s32 %v2596
      %v2603 = vshll.u32 %v2602, 16
      %v2604 = vadd.s32 %v2603, %v2601
      %v2605 = vsel %vm379, %v2559, 2147483647
      %v2606 = vand.u32 %v2605, 65535
      %v2607 = vshra.s32 %v2605, 16
      %v2608 = vcvt.s32.f32 %v2606
      %v2609 = vcvt.s32.f32 %v2607
      %2610 = vmin.xlane.f32.xlu0 %v2609
      %v2611 = vpop.xlane.xlu0 %2610
      %vm2612 = vcmp.eq.f32.partialorder %v2609, %v2611
      %v2613 = vsel %vm2612, %v2608, inf
      %2614 = vmin.xlane.f32.xlu0 %v2613
      %v2615 = vpop.xlane.xlu0 %2614
      %v2616 = vcvt.f32.s32 %v2615
      %v2617 = vcvt.f32.s32 %v2611
      %v2618 = vshll.u32 %v2617, 16
      %v2619 = vadd.s32 %v2618, %v2616
      %vm2620 = vcmp.eq.s32.totalorder %v2536, %v2574
      %vm2621 = vcmp.eq.s32.totalorder %v2537, %v2589
      %vm2622 = vcmp.eq.s32.totalorder %v2538, %v2604
      %vm2623 = vcmp.eq.s32.totalorder %v2539, %v2619
      %v2624 = vsel %vm2620, 1, %v2408
      %v2625 = vsel %vm2621, 1, %v2409
      %v2626 = vsel %vm2622, 1, %v2410
      %v2627 = vsel %vm2623, 1, %v2411
      %v2628 = vsel %vm2620, %v2528, %v2412
      %v2629 = vsel %vm2621, %v2529, %v2413
      %v2630 = vsel %vm2622, %v2530, %v2414
      %v2631 = vsel %vm2623, %v2531, %v2415
      %v2632 = vsel %vm2620, %v2536, %v2416
      %v2633 = vsel %vm2621, %v2537, %v2417
      %v2634 = vsel %vm2622, %v2538, %v2418
      %v2635 = vsel %vm2623, %v2539, %v2419
      %v2636 = vsel %vm2620, 1e+30, %v2528
      %v2637 = vsel %vm2621, 1e+30, %v2529
      %v2638 = vsel %vm2622, 1e+30, %v2530
      %v2639 = vsel %vm2623, 1e+30, %v2531
      %v2640 = vsel %vm2620, 1, 0
      %v2641 = vsel %vm2621, 1, 0
      %v2642 = vsel %vm2622, 1, 0
      %v2643 = vsel %vm2623, 1, 0
      %vm2644 = vcmp.eq.s32.totalorder %v2640, 1
      %vm2645 = vcmp.eq.s32.totalorder %v2641, 1
      %vm2646 = vcmp.eq.s32.totalorder %v2642, 1
      %vm2647 = vcmp.eq.s32.totalorder %v2643, 1
      %v2648 = vsel %vm2644, %v257, 0.0
      %v2649 = vsel %vm2645, %v258, 0.0
      %v2650 = vsel %vm2646, %v259, 0.0
      %v2651 = vsel %vm2647, %v260, 0.0
      %v2652 = vsel %vm2644, %v261, 0.0
      %v2653 = vsel %vm2645, %v262, 0.0
      %v2654 = vsel %vm2646, %v263, 0.0
      %v2655 = vsel %vm2647, %v264, 0.0
      %v2656 = vsel %vm2644, %v265, 0.0
      %v2657 = vsel %vm2645, %v266, 0.0
      %v2658 = vsel %vm2646, %v267, 0.0
      %v2659 = vsel %vm2647, %v268, 0.0
      %v2660 = vsel %vm379, %v2648, 0.0
      %2661 = vadd.xlane.f32.xlu0 %v2660
      %v2662 = vpop.xlane.xlu0 %2661
      %v2663 = vsel %vm379, %v2649, 0.0
      %2664 = vadd.xlane.f32.xlu0 %v2663
      %v2665 = vpop.xlane.xlu0 %2664
      %v2666 = vsel %vm379, %v2650, 0.0
      %2667 = vadd.xlane.f32.xlu0 %v2666
      %v2668 = vpop.xlane.xlu0 %2667
      %v2669 = vsel %vm379, %v2651, 0.0
      %2670 = vadd.xlane.f32.xlu0 %v2669
      %v2671 = vpop.xlane.xlu0 %2670
      %v2672 = vsel %vm379, %v2652, 0.0
      %2673 = vadd.xlane.f32.xlu0 %v2672
      %v2674 = vpop.xlane.xlu0 %2673
      %v2675 = vsel %vm379, %v2653, 0.0
      %2676 = vadd.xlane.f32.xlu0 %v2675
      %v2677 = vpop.xlane.xlu0 %2676
      %v2678 = vsel %vm379, %v2654, 0.0
      %2679 = vadd.xlane.f32.xlu0 %v2678
      %v2680 = vpop.xlane.xlu0 %2679
      %v2681 = vsel %vm379, %v2655, 0.0
      %2682 = vadd.xlane.f32.xlu0 %v2681
      %v2683 = vpop.xlane.xlu0 %2682
      %v2684 = vsel %vm379, %v2656, 0.0
      %2685 = vadd.xlane.f32.xlu0 %v2684
      %v2686 = vpop.xlane.xlu0 %2685
      %v2687 = vsel %vm379, %v2657, 0.0
      %2688 = vadd.xlane.f32.xlu0 %v2687
      %v2689 = vpop.xlane.xlu0 %2688
      %v2690 = vsel %vm379, %v2658, 0.0
      %2691 = vadd.xlane.f32.xlu0 %v2690
      %v2692 = vpop.xlane.xlu0 %2691
      %v2693 = vsel %vm379, %v2659, 0.0
      %2694 = vadd.xlane.f32.xlu0 %v2693
      %v2695 = vpop.xlane.xlu0 %2694
      %v2696 = vshra.s32 %v2574, 4
      %v2697 = vshra.s32 %v2589, 4
      %v2698 = vshra.s32 %v2604, 4
      %v2699 = vshra.s32 %v2619, 4
      %v2700 = vsub.f32 %v257, %v2662
      %v2701 = vsub.f32 %v258, %v2665
      %v2702 = vsub.f32 %v259, %v2668
      %v2703 = vsub.f32 %v260, %v2671
      %v2704 = vsub.f32 %v261, %v2674
      %v2705 = vsub.f32 %v262, %v2677
      %v2706 = vsub.f32 %v263, %v2680
      %v2707 = vsub.f32 %v264, %v2683
      %v2708 = vsub.f32 %v265, %v2686
      %v2709 = vsub.f32 %v266, %v2689
      %v2710 = vsub.f32 %v267, %v2692
      %v2711 = vsub.f32 %v268, %v2695
      %v2712 = vmul.f32 %v2700, %v2700
      %v2713 = vmul.f32 %v2701, %v2701
      %v2714 = vmul.f32 %v2702, %v2702
      %v2715 = vmul.f32 %v2703, %v2703
      %v2716 = vmul.f32 %v2704, %v2704
      %v2717 = vmul.f32 %v2705, %v2705
      %v2718 = vmul.f32 %v2706, %v2706
      %v2719 = vmul.f32 %v2707, %v2707
      %v2720 = vadd.f32 %v2712, %v2716
      %v2721 = vadd.f32 %v2713, %v2717
      %v2722 = vadd.f32 %v2714, %v2718
      %v2723 = vadd.f32 %v2715, %v2719
      %v2724 = vmul.f32 %v2708, %v2708
      %v2725 = vmul.f32 %v2709, %v2709
      %v2726 = vmul.f32 %v2710, %v2710
      %v2727 = vmul.f32 %v2711, %v2711
      %v2728 = vadd.f32 %v2720, %v2724
      %v2729 = vadd.f32 %v2721, %v2725
      %v2730 = vadd.f32 %v2722, %v2726
      %v2731 = vadd.f32 %v2723, %v2727
      %vm2732 = vcmp.eq.s32.totalorder %v2624, 0
      %vm2733 = vcmp.eq.s32.totalorder %v2625, 0
      %vm2734 = vcmp.eq.s32.totalorder %v2626, 0
      %vm2735 = vcmp.eq.s32.totalorder %v2627, 0
      %vm2736 = vcmp.lt.f32.partialorder %v2728, %v2636
      %vm2737 = vcmp.lt.f32.partialorder %v2729, %v2637
      %vm2738 = vcmp.lt.f32.partialorder %v2730, %v2638
      %vm2739 = vcmp.lt.f32.partialorder %v2731, %v2639
      %vm2740 = vmand %vm2732, %vm2736
      %vm2741 = vmand %vm2733, %vm2737
      %vm2742 = vmand %vm2734, %vm2738
      %vm2743 = vmand %vm2735, %vm2739
      %v2744 = vsel %vm2740, %v2728, %v2636
      %v2745 = vsel %vm2741, %v2729, %v2637
      %v2746 = vsel %vm2742, %v2730, %v2638
      %v2747 = vsel %vm2743, %v2731, %v2639
      %v2748 = vadd.s32 %v271, %v2696
      %v2749 = vadd.s32 %v271, %v2697
      %v2750 = vadd.s32 %v271, %v2698
      %v2751 = vadd.s32 %v271, %v2699
      %v2752 = vsel %vm2740, %v2748, %v2536
      %v2753 = vsel %vm2741, %v2749, %v2537
      %v2754 = vsel %vm2742, %v2750, %v2538
      %v2755 = vsel %vm2743, %v2751, %v2539
      %v2756 = vsel %vm379, %v2744, inf
      %2757 = vmin.xlane.f32.xlu0 %v2756
      %v2758 = vpop.xlane.xlu0 %2757
      %v2759 = vsel %vm379, %v2745, inf
      %2760 = vmin.xlane.f32.xlu0 %v2759
      %v2761 = vpop.xlane.xlu0 %2760
      %v2762 = vsel %vm379, %v2746, inf
      %2763 = vmin.xlane.f32.xlu0 %v2762
      %v2764 = vpop.xlane.xlu0 %2763
      %v2765 = vsel %vm379, %v2747, inf
      %2766 = vmin.xlane.f32.xlu0 %v2765
      %v2767 = vpop.xlane.xlu0 %2766
      %vm2768 = vcmp.eq.f32.partialorder %v2744, %v2758
      %vm2769 = vcmp.eq.f32.partialorder %v2745, %v2761
      %vm2770 = vcmp.eq.f32.partialorder %v2746, %v2764
      %vm2771 = vcmp.eq.f32.partialorder %v2747, %v2767
      %v2772 = vsel %vm2768, %v2752, 1073741823
      %v2773 = vsel %vm2769, %v2753, 1073741823
      %v2774 = vsel %vm2770, %v2754, 1073741823
      %v2775 = vsel %vm2771, %v2755, 1073741823
      %v2776 = vsel %vm379, %v2772, 2147483647
      %v2777 = vand.u32 %v2776, 65535
      %v2778 = vshra.s32 %v2776, 16
      %v2779 = vcvt.s32.f32 %v2777
      %v2780 = vcvt.s32.f32 %v2778
      %2781 = vmin.xlane.f32.xlu0 %v2780
      %v2782 = vpop.xlane.xlu0 %2781
      %vm2783 = vcmp.eq.f32.partialorder %v2780, %v2782
      %v2784 = vsel %vm2783, %v2779, inf
      %2785 = vmin.xlane.f32.xlu0 %v2784
      %v2786 = vpop.xlane.xlu0 %2785
      %v2787 = vcvt.f32.s32 %v2786
      %v2788 = vcvt.f32.s32 %v2782
      %v2789 = vshll.u32 %v2788, 16
      %v2790 = vadd.s32 %v2789, %v2787
      %v2791 = vsel %vm379, %v2773, 2147483647
      %v2792 = vand.u32 %v2791, 65535
      %v2793 = vshra.s32 %v2791, 16
      %v2794 = vcvt.s32.f32 %v2792
      %v2795 = vcvt.s32.f32 %v2793
      %2796 = vmin.xlane.f32.xlu0 %v2795
      %v2797 = vpop.xlane.xlu0 %2796
      %vm2798 = vcmp.eq.f32.partialorder %v2795, %v2797
      %v2799 = vsel %vm2798, %v2794, inf
      %2800 = vmin.xlane.f32.xlu0 %v2799
      %v2801 = vpop.xlane.xlu0 %2800
      %v2802 = vcvt.f32.s32 %v2801
      %v2803 = vcvt.f32.s32 %v2797
      %v2804 = vshll.u32 %v2803, 16
      %v2805 = vadd.s32 %v2804, %v2802
      %v2806 = vsel %vm379, %v2774, 2147483647
      %v2807 = vand.u32 %v2806, 65535
      %v2808 = vshra.s32 %v2806, 16
      %v2809 = vcvt.s32.f32 %v2807
      %v2810 = vcvt.s32.f32 %v2808
      %2811 = vmin.xlane.f32.xlu0 %v2810
      %v2812 = vpop.xlane.xlu0 %2811
      %vm2813 = vcmp.eq.f32.partialorder %v2810, %v2812
      %v2814 = vsel %vm2813, %v2809, inf
      %2815 = vmin.xlane.f32.xlu0 %v2814
      %v2816 = vpop.xlane.xlu0 %2815
      %v2817 = vcvt.f32.s32 %v2816
      %v2818 = vcvt.f32.s32 %v2812
      %v2819 = vshll.u32 %v2818, 16
      %v2820 = vadd.s32 %v2819, %v2817
      %v2821 = vsel %vm379, %v2775, 2147483647
      %v2822 = vand.u32 %v2821, 65535
      %v2823 = vshra.s32 %v2821, 16
      %v2824 = vcvt.s32.f32 %v2822
      %v2825 = vcvt.s32.f32 %v2823
      %2826 = vmin.xlane.f32.xlu0 %v2825
      %v2827 = vpop.xlane.xlu0 %2826
      %vm2828 = vcmp.eq.f32.partialorder %v2825, %v2827
      %v2829 = vsel %vm2828, %v2824, inf
      %2830 = vmin.xlane.f32.xlu0 %v2829
      %v2831 = vpop.xlane.xlu0 %2830
      %v2832 = vcvt.f32.s32 %v2831
      %v2833 = vcvt.f32.s32 %v2827
      %v2834 = vshll.u32 %v2833, 16
      %v2835 = vadd.s32 %v2834, %v2832
      %vm2836 = vcmp.eq.s32.totalorder %v2752, %v2790
      %vm2837 = vcmp.eq.s32.totalorder %v2753, %v2805
      %vm2838 = vcmp.eq.s32.totalorder %v2754, %v2820
      %vm2839 = vcmp.eq.s32.totalorder %v2755, %v2835
      %v2840 = vsel %vm2836, 1, %v2624
      %v2841 = vsel %vm2837, 1, %v2625
      %v2842 = vsel %vm2838, 1, %v2626
      %v2843 = vsel %vm2839, 1, %v2627
      %v2844 = vsel %vm2836, %v2744, %v2628
      %v2845 = vsel %vm2837, %v2745, %v2629
      %v2846 = vsel %vm2838, %v2746, %v2630
      %v2847 = vsel %vm2839, %v2747, %v2631
      %v2848 = vsel %vm2836, %v2752, %v2632
      %v2849 = vsel %vm2837, %v2753, %v2633
      %v2850 = vsel %vm2838, %v2754, %v2634
      %v2851 = vsel %vm2839, %v2755, %v2635
      %v2852 = vsel %vm2836, 1e+30, %v2744
      %v2853 = vsel %vm2837, 1e+30, %v2745
      %v2854 = vsel %vm2838, 1e+30, %v2746
      %v2855 = vsel %vm2839, 1e+30, %v2747
      %v2856 = vsel %vm2836, 1, 0
      %v2857 = vsel %vm2837, 1, 0
      %v2858 = vsel %vm2838, 1, 0
      %v2859 = vsel %vm2839, 1, 0
      %vm2860 = vcmp.eq.s32.totalorder %v2856, 1
      %vm2861 = vcmp.eq.s32.totalorder %v2857, 1
      %vm2862 = vcmp.eq.s32.totalorder %v2858, 1
      %vm2863 = vcmp.eq.s32.totalorder %v2859, 1
      %v2864 = vsel %vm2860, %v257, 0.0
      %v2865 = vsel %vm2861, %v258, 0.0
      %v2866 = vsel %vm2862, %v259, 0.0
      %v2867 = vsel %vm2863, %v260, 0.0
      %v2868 = vsel %vm2860, %v261, 0.0
      %v2869 = vsel %vm2861, %v262, 0.0
      %v2870 = vsel %vm2862, %v263, 0.0
      %v2871 = vsel %vm2863, %v264, 0.0
      %v2872 = vsel %vm2860, %v265, 0.0
      %v2873 = vsel %vm2861, %v266, 0.0
      %v2874 = vsel %vm2862, %v267, 0.0
      %v2875 = vsel %vm2863, %v268, 0.0
      %v2876 = vsel %vm379, %v2864, 0.0
      %2877 = vadd.xlane.f32.xlu0 %v2876
      %v2878 = vpop.xlane.xlu0 %2877
      %v2879 = vsel %vm379, %v2865, 0.0
      %2880 = vadd.xlane.f32.xlu0 %v2879
      %v2881 = vpop.xlane.xlu0 %2880
      %v2882 = vsel %vm379, %v2866, 0.0
      %2883 = vadd.xlane.f32.xlu0 %v2882
      %v2884 = vpop.xlane.xlu0 %2883
      %v2885 = vsel %vm379, %v2867, 0.0
      %2886 = vadd.xlane.f32.xlu0 %v2885
      %v2887 = vpop.xlane.xlu0 %2886
      %v2888 = vsel %vm379, %v2868, 0.0
      %2889 = vadd.xlane.f32.xlu0 %v2888
      %v2890 = vpop.xlane.xlu0 %2889
      %v2891 = vsel %vm379, %v2869, 0.0
      %2892 = vadd.xlane.f32.xlu0 %v2891
      %v2893 = vpop.xlane.xlu0 %2892
      %v2894 = vsel %vm379, %v2870, 0.0
      %2895 = vadd.xlane.f32.xlu0 %v2894
      %v2896 = vpop.xlane.xlu0 %2895
      %v2897 = vsel %vm379, %v2871, 0.0
      %2898 = vadd.xlane.f32.xlu0 %v2897
      %v2899 = vpop.xlane.xlu0 %2898
      %v2900 = vsel %vm379, %v2872, 0.0
      %2901 = vadd.xlane.f32.xlu0 %v2900
      %v2902 = vpop.xlane.xlu0 %2901
      %v2903 = vsel %vm379, %v2873, 0.0
      %2904 = vadd.xlane.f32.xlu0 %v2903
      %v2905 = vpop.xlane.xlu0 %2904
      %v2906 = vsel %vm379, %v2874, 0.0
      %2907 = vadd.xlane.f32.xlu0 %v2906
      %v2908 = vpop.xlane.xlu0 %2907
      %v2909 = vsel %vm379, %v2875, 0.0
      %2910 = vadd.xlane.f32.xlu0 %v2909
      %v2911 = vpop.xlane.xlu0 %2910
      %v2912 = vshra.s32 %v2790, 4
      %v2913 = vshra.s32 %v2805, 4
      %v2914 = vshra.s32 %v2820, 4
      %v2915 = vshra.s32 %v2835, 4
      %v2916 = vsub.f32 %v257, %v2878
      %v2917 = vsub.f32 %v258, %v2881
      %v2918 = vsub.f32 %v259, %v2884
      %v2919 = vsub.f32 %v260, %v2887
      %v2920 = vsub.f32 %v261, %v2890
      %v2921 = vsub.f32 %v262, %v2893
      %v2922 = vsub.f32 %v263, %v2896
      %v2923 = vsub.f32 %v264, %v2899
      %v2924 = vsub.f32 %v265, %v2902
      %v2925 = vsub.f32 %v266, %v2905
      %v2926 = vsub.f32 %v267, %v2908
      %v2927 = vsub.f32 %v268, %v2911
      %v2928 = vmul.f32 %v2916, %v2916
      %v2929 = vmul.f32 %v2917, %v2917
      %v2930 = vmul.f32 %v2918, %v2918
      %v2931 = vmul.f32 %v2919, %v2919
      %v2932 = vmul.f32 %v2920, %v2920
      %v2933 = vmul.f32 %v2921, %v2921
      %v2934 = vmul.f32 %v2922, %v2922
      %v2935 = vmul.f32 %v2923, %v2923
      %v2936 = vadd.f32 %v2928, %v2932
      %v2937 = vadd.f32 %v2929, %v2933
      %v2938 = vadd.f32 %v2930, %v2934
      %v2939 = vadd.f32 %v2931, %v2935
      %v2940 = vmul.f32 %v2924, %v2924
      %v2941 = vmul.f32 %v2925, %v2925
      %v2942 = vmul.f32 %v2926, %v2926
      %v2943 = vmul.f32 %v2927, %v2927
      %v2944 = vadd.f32 %v2936, %v2940
      %v2945 = vadd.f32 %v2937, %v2941
      %v2946 = vadd.f32 %v2938, %v2942
      %v2947 = vadd.f32 %v2939, %v2943
      %vm2948 = vcmp.eq.s32.totalorder %v2840, 0
      %vm2949 = vcmp.eq.s32.totalorder %v2841, 0
      %vm2950 = vcmp.eq.s32.totalorder %v2842, 0
      %vm2951 = vcmp.eq.s32.totalorder %v2843, 0
      %vm2952 = vcmp.lt.f32.partialorder %v2944, %v2852
      %vm2953 = vcmp.lt.f32.partialorder %v2945, %v2853
      %vm2954 = vcmp.lt.f32.partialorder %v2946, %v2854
      %vm2955 = vcmp.lt.f32.partialorder %v2947, %v2855
      %vm2956 = vmand %vm2948, %vm2952
      %vm2957 = vmand %vm2949, %vm2953
      %vm2958 = vmand %vm2950, %vm2954
      %vm2959 = vmand %vm2951, %vm2955
      %v2960 = vsel %vm2956, %v2944, %v2852
      %v2961 = vsel %vm2957, %v2945, %v2853
      %v2962 = vsel %vm2958, %v2946, %v2854
      %v2963 = vsel %vm2959, %v2947, %v2855
      %v2964 = vadd.s32 %v271, %v2912
      %v2965 = vadd.s32 %v271, %v2913
      %v2966 = vadd.s32 %v271, %v2914
      %v2967 = vadd.s32 %v271, %v2915
      %v2968 = vsel %vm2956, %v2964, %v2752
      %v2969 = vsel %vm2957, %v2965, %v2753
      %v2970 = vsel %vm2958, %v2966, %v2754
      %v2971 = vsel %vm2959, %v2967, %v2755
      %v2972 = vsel %vm379, %v2960, inf
      %2973 = vmin.xlane.f32.xlu0 %v2972
      %v2974 = vpop.xlane.xlu0 %2973
      %v2975 = vsel %vm379, %v2961, inf
      %2976 = vmin.xlane.f32.xlu0 %v2975
      %v2977 = vpop.xlane.xlu0 %2976
      %v2978 = vsel %vm379, %v2962, inf
      %2979 = vmin.xlane.f32.xlu0 %v2978
      %v2980 = vpop.xlane.xlu0 %2979
      %v2981 = vsel %vm379, %v2963, inf
      %2982 = vmin.xlane.f32.xlu0 %v2981
      %v2983 = vpop.xlane.xlu0 %2982
      %vm2984 = vcmp.eq.f32.partialorder %v2960, %v2974
      %vm2985 = vcmp.eq.f32.partialorder %v2961, %v2977
      %vm2986 = vcmp.eq.f32.partialorder %v2962, %v2980
      %vm2987 = vcmp.eq.f32.partialorder %v2963, %v2983
      %v2988 = vsel %vm2984, %v2968, 1073741823
      %v2989 = vsel %vm2985, %v2969, 1073741823
      %v2990 = vsel %vm2986, %v2970, 1073741823
      %v2991 = vsel %vm2987, %v2971, 1073741823
      %v2992 = vsel %vm379, %v2988, 2147483647
      %v2993 = vand.u32 %v2992, 65535
      %v2994 = vshra.s32 %v2992, 16
      %v2995 = vcvt.s32.f32 %v2993
      %v2996 = vcvt.s32.f32 %v2994
      %2997 = vmin.xlane.f32.xlu0 %v2996
      %v2998 = vpop.xlane.xlu0 %2997
      %vm2999 = vcmp.eq.f32.partialorder %v2996, %v2998
      %v3000 = vsel %vm2999, %v2995, inf
      %3001 = vmin.xlane.f32.xlu0 %v3000
      %v3002 = vpop.xlane.xlu0 %3001
      %v3003 = vcvt.f32.s32 %v3002
      %v3004 = vcvt.f32.s32 %v2998
      %v3005 = vshll.u32 %v3004, 16
      %v3006 = vadd.s32 %v3005, %v3003
      %v3007 = vsel %vm379, %v2989, 2147483647
      %v3008 = vand.u32 %v3007, 65535
      %v3009 = vshra.s32 %v3007, 16
      %v3010 = vcvt.s32.f32 %v3008
      %v3011 = vcvt.s32.f32 %v3009
      %3012 = vmin.xlane.f32.xlu0 %v3011
      %v3013 = vpop.xlane.xlu0 %3012
      %vm3014 = vcmp.eq.f32.partialorder %v3011, %v3013
      %v3015 = vsel %vm3014, %v3010, inf
      %3016 = vmin.xlane.f32.xlu0 %v3015
      %v3017 = vpop.xlane.xlu0 %3016
      %v3018 = vcvt.f32.s32 %v3017
      %v3019 = vcvt.f32.s32 %v3013
      %v3020 = vshll.u32 %v3019, 16
      %v3021 = vadd.s32 %v3020, %v3018
      %v3022 = vsel %vm379, %v2990, 2147483647
      %v3023 = vand.u32 %v3022, 65535
      %v3024 = vshra.s32 %v3022, 16
      %v3025 = vcvt.s32.f32 %v3023
      %v3026 = vcvt.s32.f32 %v3024
      %3027 = vmin.xlane.f32.xlu0 %v3026
      %v3028 = vpop.xlane.xlu0 %3027
      %vm3029 = vcmp.eq.f32.partialorder %v3026, %v3028
      %v3030 = vsel %vm3029, %v3025, inf
      %3031 = vmin.xlane.f32.xlu0 %v3030
      %v3032 = vpop.xlane.xlu0 %3031
      %v3033 = vcvt.f32.s32 %v3032
      %v3034 = vcvt.f32.s32 %v3028
      %v3035 = vshll.u32 %v3034, 16
      %v3036 = vadd.s32 %v3035, %v3033
      %v3037 = vsel %vm379, %v2991, 2147483647
      %v3038 = vand.u32 %v3037, 65535
      %v3039 = vshra.s32 %v3037, 16
      %v3040 = vcvt.s32.f32 %v3038
      %v3041 = vcvt.s32.f32 %v3039
      %3042 = vmin.xlane.f32.xlu0 %v3041
      %v3043 = vpop.xlane.xlu0 %3042
      %vm3044 = vcmp.eq.f32.partialorder %v3041, %v3043
      %v3045 = vsel %vm3044, %v3040, inf
      %3046 = vmin.xlane.f32.xlu0 %v3045
      %v3047 = vpop.xlane.xlu0 %3046
      %v3048 = vcvt.f32.s32 %v3047
      %v3049 = vcvt.f32.s32 %v3043
      %v3050 = vshll.u32 %v3049, 16
      %v3051 = vadd.s32 %v3050, %v3048
      %vm3052 = vcmp.eq.s32.totalorder %v2968, %v3006
      %vm3053 = vcmp.eq.s32.totalorder %v2969, %v3021
      %vm3054 = vcmp.eq.s32.totalorder %v2970, %v3036
      %vm3055 = vcmp.eq.s32.totalorder %v2971, %v3051
      %v3056 = vsel %vm3052, 1, %v2840
      %v3057 = vsel %vm3053, 1, %v2841
      %v3058 = vsel %vm3054, 1, %v2842
      %v3059 = vsel %vm3055, 1, %v2843
      %v3060 = vsel %vm3052, %v2960, %v2844
      %v3061 = vsel %vm3053, %v2961, %v2845
      %v3062 = vsel %vm3054, %v2962, %v2846
      %v3063 = vsel %vm3055, %v2963, %v2847
      %v3064 = vsel %vm3052, %v2968, %v2848
      %v3065 = vsel %vm3053, %v2969, %v2849
      %v3066 = vsel %vm3054, %v2970, %v2850
      %v3067 = vsel %vm3055, %v2971, %v2851
      %v3068 = vsel %vm3052, 1e+30, %v2960
      %v3069 = vsel %vm3053, 1e+30, %v2961
      %v3070 = vsel %vm3054, 1e+30, %v2962
      %v3071 = vsel %vm3055, 1e+30, %v2963
      %v3072 = vsel %vm3052, 1, 0
      %v3073 = vsel %vm3053, 1, 0
      %v3074 = vsel %vm3054, 1, 0
      %v3075 = vsel %vm3055, 1, 0
      %vm3076 = vcmp.eq.s32.totalorder %v3072, 1
      %vm3077 = vcmp.eq.s32.totalorder %v3073, 1
      %vm3078 = vcmp.eq.s32.totalorder %v3074, 1
      %vm3079 = vcmp.eq.s32.totalorder %v3075, 1
      %v3080 = vsel %vm3076, %v257, 0.0
      %v3081 = vsel %vm3077, %v258, 0.0
      %v3082 = vsel %vm3078, %v259, 0.0
      %v3083 = vsel %vm3079, %v260, 0.0
      %v3084 = vsel %vm3076, %v261, 0.0
      %v3085 = vsel %vm3077, %v262, 0.0
      %v3086 = vsel %vm3078, %v263, 0.0
      %v3087 = vsel %vm3079, %v264, 0.0
      %v3088 = vsel %vm3076, %v265, 0.0
      %v3089 = vsel %vm3077, %v266, 0.0
      %v3090 = vsel %vm3078, %v267, 0.0
      %v3091 = vsel %vm3079, %v268, 0.0
      %v3092 = vsel %vm379, %v3080, 0.0
      %3093 = vadd.xlane.f32.xlu0 %v3092
      %v3094 = vpop.xlane.xlu0 %3093
      %v3095 = vsel %vm379, %v3081, 0.0
      %3096 = vadd.xlane.f32.xlu0 %v3095
      %v3097 = vpop.xlane.xlu0 %3096
      %v3098 = vsel %vm379, %v3082, 0.0
      %3099 = vadd.xlane.f32.xlu0 %v3098
      %v3100 = vpop.xlane.xlu0 %3099
      %v3101 = vsel %vm379, %v3083, 0.0
      %3102 = vadd.xlane.f32.xlu0 %v3101
      %v3103 = vpop.xlane.xlu0 %3102
      %v3104 = vsel %vm379, %v3084, 0.0
      %3105 = vadd.xlane.f32.xlu0 %v3104
      %v3106 = vpop.xlane.xlu0 %3105
      %v3107 = vsel %vm379, %v3085, 0.0
      %3108 = vadd.xlane.f32.xlu0 %v3107
      %v3109 = vpop.xlane.xlu0 %3108
      %v3110 = vsel %vm379, %v3086, 0.0
      %3111 = vadd.xlane.f32.xlu0 %v3110
      %v3112 = vpop.xlane.xlu0 %3111
      %v3113 = vsel %vm379, %v3087, 0.0
      %3114 = vadd.xlane.f32.xlu0 %v3113
      %v3115 = vpop.xlane.xlu0 %3114
      %v3116 = vsel %vm379, %v3088, 0.0
      %3117 = vadd.xlane.f32.xlu0 %v3116
      %v3118 = vpop.xlane.xlu0 %3117
      %v3119 = vsel %vm379, %v3089, 0.0
      %3120 = vadd.xlane.f32.xlu0 %v3119
      %v3121 = vpop.xlane.xlu0 %3120
      %v3122 = vsel %vm379, %v3090, 0.0
      %3123 = vadd.xlane.f32.xlu0 %v3122
      %v3124 = vpop.xlane.xlu0 %3123
      %v3125 = vsel %vm379, %v3091, 0.0
      %3126 = vadd.xlane.f32.xlu0 %v3125
      %v3127 = vpop.xlane.xlu0 %3126
      %v3128 = vshra.s32 %v3006, 4
      %v3129 = vshra.s32 %v3021, 4
      %v3130 = vshra.s32 %v3036, 4
      %v3131 = vshra.s32 %v3051, 4
      %v3132 = vsub.f32 %v257, %v3094
      %v3133 = vsub.f32 %v258, %v3097
      %v3134 = vsub.f32 %v259, %v3100
      %v3135 = vsub.f32 %v260, %v3103
      %v3136 = vsub.f32 %v261, %v3106
      %v3137 = vsub.f32 %v262, %v3109
      %v3138 = vsub.f32 %v263, %v3112
      %v3139 = vsub.f32 %v264, %v3115
      %v3140 = vsub.f32 %v265, %v3118
      %v3141 = vsub.f32 %v266, %v3121
      %v3142 = vsub.f32 %v267, %v3124
      %v3143 = vsub.f32 %v268, %v3127
      %v3144 = vmul.f32 %v3132, %v3132
      %v3145 = vmul.f32 %v3133, %v3133
      %v3146 = vmul.f32 %v3134, %v3134
      %v3147 = vmul.f32 %v3135, %v3135
      %v3148 = vmul.f32 %v3136, %v3136
      %v3149 = vmul.f32 %v3137, %v3137
      %v3150 = vmul.f32 %v3138, %v3138
      %v3151 = vmul.f32 %v3139, %v3139
      %v3152 = vadd.f32 %v3144, %v3148
      %v3153 = vadd.f32 %v3145, %v3149
      %v3154 = vadd.f32 %v3146, %v3150
      %v3155 = vadd.f32 %v3147, %v3151
      %v3156 = vmul.f32 %v3140, %v3140
      %v3157 = vmul.f32 %v3141, %v3141
      %v3158 = vmul.f32 %v3142, %v3142
      %v3159 = vmul.f32 %v3143, %v3143
      %v3160 = vadd.f32 %v3152, %v3156
      %v3161 = vadd.f32 %v3153, %v3157
      %v3162 = vadd.f32 %v3154, %v3158
      %v3163 = vadd.f32 %v3155, %v3159
      %vm3164 = vcmp.eq.s32.totalorder %v3056, 0
      %vm3165 = vcmp.eq.s32.totalorder %v3057, 0
      %vm3166 = vcmp.eq.s32.totalorder %v3058, 0
      %vm3167 = vcmp.eq.s32.totalorder %v3059, 0
      %vm3168 = vcmp.lt.f32.partialorder %v3160, %v3068
      %vm3169 = vcmp.lt.f32.partialorder %v3161, %v3069
      %vm3170 = vcmp.lt.f32.partialorder %v3162, %v3070
      %vm3171 = vcmp.lt.f32.partialorder %v3163, %v3071
      %vm3172 = vmand %vm3164, %vm3168
      %vm3173 = vmand %vm3165, %vm3169
      %vm3174 = vmand %vm3166, %vm3170
      %vm3175 = vmand %vm3167, %vm3171
      %v3176 = vsel %vm3172, %v3160, %v3068
      %v3177 = vsel %vm3173, %v3161, %v3069
      %v3178 = vsel %vm3174, %v3162, %v3070
      %v3179 = vsel %vm3175, %v3163, %v3071
      %v3180 = vadd.s32 %v271, %v3128
      %v3181 = vadd.s32 %v271, %v3129
      %v3182 = vadd.s32 %v271, %v3130
      %v3183 = vadd.s32 %v271, %v3131
      %v3184 = vsel %vm3172, %v3180, %v2968
      %v3185 = vsel %vm3173, %v3181, %v2969
      %v3186 = vsel %vm3174, %v3182, %v2970
      %v3187 = vsel %vm3175, %v3183, %v2971
      %v3188 = vsel %vm379, %v3176, inf
      %3189 = vmin.xlane.f32.xlu0 %v3188
      %v3190 = vpop.xlane.xlu0 %3189
      %v3191 = vsel %vm379, %v3177, inf
      %3192 = vmin.xlane.f32.xlu0 %v3191
      %v3193 = vpop.xlane.xlu0 %3192
      %v3194 = vsel %vm379, %v3178, inf
      %3195 = vmin.xlane.f32.xlu0 %v3194
      %v3196 = vpop.xlane.xlu0 %3195
      %v3197 = vsel %vm379, %v3179, inf
      %3198 = vmin.xlane.f32.xlu0 %v3197
      %v3199 = vpop.xlane.xlu0 %3198
      %vm3200 = vcmp.eq.f32.partialorder %v3176, %v3190
      %vm3201 = vcmp.eq.f32.partialorder %v3177, %v3193
      %vm3202 = vcmp.eq.f32.partialorder %v3178, %v3196
      %vm3203 = vcmp.eq.f32.partialorder %v3179, %v3199
      %v3204 = vsel %vm3200, %v3184, 1073741823
      %v3205 = vsel %vm3201, %v3185, 1073741823
      %v3206 = vsel %vm3202, %v3186, 1073741823
      %v3207 = vsel %vm3203, %v3187, 1073741823
      %v3208 = vsel %vm379, %v3204, 2147483647
      %v3209 = vand.u32 %v3208, 65535
      %v3210 = vshra.s32 %v3208, 16
      %v3211 = vcvt.s32.f32 %v3209
      %v3212 = vcvt.s32.f32 %v3210
      %3213 = vmin.xlane.f32.xlu0 %v3212
      %v3214 = vpop.xlane.xlu0 %3213
      %vm3215 = vcmp.eq.f32.partialorder %v3212, %v3214
      %v3216 = vsel %vm3215, %v3211, inf
      %3217 = vmin.xlane.f32.xlu0 %v3216
      %v3218 = vpop.xlane.xlu0 %3217
      %v3219 = vcvt.f32.s32 %v3218
      %v3220 = vcvt.f32.s32 %v3214
      %v3221 = vshll.u32 %v3220, 16
      %v3222 = vadd.s32 %v3221, %v3219
      %v3223 = vsel %vm379, %v3205, 2147483647
      %v3224 = vand.u32 %v3223, 65535
      %v3225 = vshra.s32 %v3223, 16
      %v3226 = vcvt.s32.f32 %v3224
      %v3227 = vcvt.s32.f32 %v3225
      %3228 = vmin.xlane.f32.xlu0 %v3227
      %v3229 = vpop.xlane.xlu0 %3228
      %vm3230 = vcmp.eq.f32.partialorder %v3227, %v3229
      %v3231 = vsel %vm3230, %v3226, inf
      %3232 = vmin.xlane.f32.xlu0 %v3231
      %v3233 = vpop.xlane.xlu0 %3232
      %v3234 = vcvt.f32.s32 %v3233
      %v3235 = vcvt.f32.s32 %v3229
      %v3236 = vshll.u32 %v3235, 16
      %v3237 = vadd.s32 %v3236, %v3234
      %v3238 = vsel %vm379, %v3206, 2147483647
      %v3239 = vand.u32 %v3238, 65535
      %v3240 = vshra.s32 %v3238, 16
      %v3241 = vcvt.s32.f32 %v3239
      %v3242 = vcvt.s32.f32 %v3240
      %3243 = vmin.xlane.f32.xlu0 %v3242
      %v3244 = vpop.xlane.xlu0 %3243
      %vm3245 = vcmp.eq.f32.partialorder %v3242, %v3244
      %v3246 = vsel %vm3245, %v3241, inf
      %3247 = vmin.xlane.f32.xlu0 %v3246
      %v3248 = vpop.xlane.xlu0 %3247
      %v3249 = vcvt.f32.s32 %v3248
      %v3250 = vcvt.f32.s32 %v3244
      %v3251 = vshll.u32 %v3250, 16
      %v3252 = vadd.s32 %v3251, %v3249
      %v3253 = vsel %vm379, %v3207, 2147483647
      %v3254 = vand.u32 %v3253, 65535
      %v3255 = vshra.s32 %v3253, 16
      %v3256 = vcvt.s32.f32 %v3254
      %v3257 = vcvt.s32.f32 %v3255
      %3258 = vmin.xlane.f32.xlu0 %v3257
      %v3259 = vpop.xlane.xlu0 %3258
      %vm3260 = vcmp.eq.f32.partialorder %v3257, %v3259
      %v3261 = vsel %vm3260, %v3256, inf
      %3262 = vmin.xlane.f32.xlu0 %v3261
      %v3263 = vpop.xlane.xlu0 %3262
      %v3264 = vcvt.f32.s32 %v3263
      %v3265 = vcvt.f32.s32 %v3259
      %v3266 = vshll.u32 %v3265, 16
      %v3267 = vadd.s32 %v3266, %v3264
      %vm3268 = vcmp.eq.s32.totalorder %v3184, %v3222
      %vm3269 = vcmp.eq.s32.totalorder %v3185, %v3237
      %vm3270 = vcmp.eq.s32.totalorder %v3186, %v3252
      %vm3271 = vcmp.eq.s32.totalorder %v3187, %v3267
      %v3272 = vsel %vm3268, 1, %v3056
      %v3273 = vsel %vm3269, 1, %v3057
      %v3274 = vsel %vm3270, 1, %v3058
      %v3275 = vsel %vm3271, 1, %v3059
      %v3276 = vsel %vm3268, %v3176, %v3060
      %v3277 = vsel %vm3269, %v3177, %v3061
      %v3278 = vsel %vm3270, %v3178, %v3062
      %v3279 = vsel %vm3271, %v3179, %v3063
      %v3280 = vsel %vm3268, %v3184, %v3064
      %v3281 = vsel %vm3269, %v3185, %v3065
      %v3282 = vsel %vm3270, %v3186, %v3066
      %v3283 = vsel %vm3271, %v3187, %v3067
      %v3284 = vsel %vm3268, 1e+30, %v3176
      %v3285 = vsel %vm3269, 1e+30, %v3177
      %v3286 = vsel %vm3270, 1e+30, %v3178
      %v3287 = vsel %vm3271, 1e+30, %v3179
      %v3288 = vsel %vm3268, 1, 0
      %v3289 = vsel %vm3269, 1, 0
      %v3290 = vsel %vm3270, 1, 0
      %v3291 = vsel %vm3271, 1, 0
      %vm3292 = vcmp.eq.s32.totalorder %v3288, 1
      %vm3293 = vcmp.eq.s32.totalorder %v3289, 1
      %vm3294 = vcmp.eq.s32.totalorder %v3290, 1
      %vm3295 = vcmp.eq.s32.totalorder %v3291, 1
      %v3296 = vsel %vm3292, %v257, 0.0
      %v3297 = vsel %vm3293, %v258, 0.0
      %v3298 = vsel %vm3294, %v259, 0.0
      %v3299 = vsel %vm3295, %v260, 0.0
      %v3300 = vsel %vm3292, %v261, 0.0
      %v3301 = vsel %vm3293, %v262, 0.0
      %v3302 = vsel %vm3294, %v263, 0.0
      %v3303 = vsel %vm3295, %v264, 0.0
      %v3304 = vsel %vm3292, %v265, 0.0
      %v3305 = vsel %vm3293, %v266, 0.0
      %v3306 = vsel %vm3294, %v267, 0.0
      %v3307 = vsel %vm3295, %v268, 0.0
      %v3308 = vsel %vm379, %v3296, 0.0
      %3309 = vadd.xlane.f32.xlu0 %v3308
      %v3310 = vpop.xlane.xlu0 %3309
      %v3311 = vsel %vm379, %v3297, 0.0
      %3312 = vadd.xlane.f32.xlu0 %v3311
      %v3313 = vpop.xlane.xlu0 %3312
      %v3314 = vsel %vm379, %v3298, 0.0
      %3315 = vadd.xlane.f32.xlu0 %v3314
      %v3316 = vpop.xlane.xlu0 %3315
      %v3317 = vsel %vm379, %v3299, 0.0
      %3318 = vadd.xlane.f32.xlu0 %v3317
      %v3319 = vpop.xlane.xlu0 %3318
      %v3320 = vsel %vm379, %v3300, 0.0
      %3321 = vadd.xlane.f32.xlu0 %v3320
      %v3322 = vpop.xlane.xlu0 %3321
      %v3323 = vsel %vm379, %v3301, 0.0
      %3324 = vadd.xlane.f32.xlu0 %v3323
      %v3325 = vpop.xlane.xlu0 %3324
      %v3326 = vsel %vm379, %v3302, 0.0
      %3327 = vadd.xlane.f32.xlu0 %v3326
      %v3328 = vpop.xlane.xlu0 %3327
      %v3329 = vsel %vm379, %v3303, 0.0
      %3330 = vadd.xlane.f32.xlu0 %v3329
      %v3331 = vpop.xlane.xlu0 %3330
      %v3332 = vsel %vm379, %v3304, 0.0
      %3333 = vadd.xlane.f32.xlu0 %v3332
      %v3334 = vpop.xlane.xlu0 %3333
      %v3335 = vsel %vm379, %v3305, 0.0
      %3336 = vadd.xlane.f32.xlu0 %v3335
      %v3337 = vpop.xlane.xlu0 %3336
      %v3338 = vsel %vm379, %v3306, 0.0
      %3339 = vadd.xlane.f32.xlu0 %v3338
      %v3340 = vpop.xlane.xlu0 %3339
      %v3341 = vsel %vm379, %v3307, 0.0
      %3342 = vadd.xlane.f32.xlu0 %v3341
      %v3343 = vpop.xlane.xlu0 %3342
      %v3344 = vshra.s32 %v3222, 4
      %v3345 = vshra.s32 %v3237, 4
      %v3346 = vshra.s32 %v3252, 4
      %v3347 = vshra.s32 %v3267, 4
      %v3348 = vsub.f32 %v257, %v3310
      %v3349 = vsub.f32 %v258, %v3313
      %v3350 = vsub.f32 %v259, %v3316
      %v3351 = vsub.f32 %v260, %v3319
      %v3352 = vsub.f32 %v261, %v3322
      %v3353 = vsub.f32 %v262, %v3325
      %v3354 = vsub.f32 %v263, %v3328
      %v3355 = vsub.f32 %v264, %v3331
      %v3356 = vsub.f32 %v265, %v3334
      %v3357 = vsub.f32 %v266, %v3337
      %v3358 = vsub.f32 %v267, %v3340
      %v3359 = vsub.f32 %v268, %v3343
      %v3360 = vmul.f32 %v3348, %v3348
      %v3361 = vmul.f32 %v3349, %v3349
      %v3362 = vmul.f32 %v3350, %v3350
      %v3363 = vmul.f32 %v3351, %v3351
      %v3364 = vmul.f32 %v3352, %v3352
      %v3365 = vmul.f32 %v3353, %v3353
      %v3366 = vmul.f32 %v3354, %v3354
      %v3367 = vmul.f32 %v3355, %v3355
      %v3368 = vadd.f32 %v3360, %v3364
      %v3369 = vadd.f32 %v3361, %v3365
      %v3370 = vadd.f32 %v3362, %v3366
      %v3371 = vadd.f32 %v3363, %v3367
      %v3372 = vmul.f32 %v3356, %v3356
      %v3373 = vmul.f32 %v3357, %v3357
      %v3374 = vmul.f32 %v3358, %v3358
      %v3375 = vmul.f32 %v3359, %v3359
      %v3376 = vadd.f32 %v3368, %v3372
      %v3377 = vadd.f32 %v3369, %v3373
      %v3378 = vadd.f32 %v3370, %v3374
      %v3379 = vadd.f32 %v3371, %v3375
      %vm3380 = vcmp.eq.s32.totalorder %v3272, 0
      %vm3381 = vcmp.eq.s32.totalorder %v3273, 0
      %vm3382 = vcmp.eq.s32.totalorder %v3274, 0
      %vm3383 = vcmp.eq.s32.totalorder %v3275, 0
      %vm3384 = vcmp.lt.f32.partialorder %v3376, %v3284
      %vm3385 = vcmp.lt.f32.partialorder %v3377, %v3285
      %vm3386 = vcmp.lt.f32.partialorder %v3378, %v3286
      %vm3387 = vcmp.lt.f32.partialorder %v3379, %v3287
      %vm3388 = vmand %vm3380, %vm3384
      %vm3389 = vmand %vm3381, %vm3385
      %vm3390 = vmand %vm3382, %vm3386
      %vm3391 = vmand %vm3383, %vm3387
      %v3392 = vsel %vm3388, %v3376, %v3284
      %v3393 = vsel %vm3389, %v3377, %v3285
      %v3394 = vsel %vm3390, %v3378, %v3286
      %v3395 = vsel %vm3391, %v3379, %v3287
      %v3396 = vadd.s32 %v271, %v3344
      %v3397 = vadd.s32 %v271, %v3345
      %v3398 = vadd.s32 %v271, %v3346
      %v3399 = vadd.s32 %v271, %v3347
      %v3400 = vsel %vm3388, %v3396, %v3184
      %v3401 = vsel %vm3389, %v3397, %v3185
      %v3402 = vsel %vm3390, %v3398, %v3186
      %v3403 = vsel %vm3391, %v3399, %v3187
      %v3404 = vsel %vm379, %v3392, inf
      %3405 = vmin.xlane.f32.xlu0 %v3404
      %v3406 = vpop.xlane.xlu0 %3405
      %v3407 = vsel %vm379, %v3393, inf
      %3408 = vmin.xlane.f32.xlu0 %v3407
      %v3409 = vpop.xlane.xlu0 %3408
      %v3410 = vsel %vm379, %v3394, inf
      %3411 = vmin.xlane.f32.xlu0 %v3410
      %v3412 = vpop.xlane.xlu0 %3411
      %v3413 = vsel %vm379, %v3395, inf
      %3414 = vmin.xlane.f32.xlu0 %v3413
      %v3415 = vpop.xlane.xlu0 %3414
      %vm3416 = vcmp.eq.f32.partialorder %v3392, %v3406
      %vm3417 = vcmp.eq.f32.partialorder %v3393, %v3409
      %vm3418 = vcmp.eq.f32.partialorder %v3394, %v3412
      %vm3419 = vcmp.eq.f32.partialorder %v3395, %v3415
      %v3420 = vsel %vm3416, %v3400, 1073741823
      %v3421 = vsel %vm3417, %v3401, 1073741823
      %v3422 = vsel %vm3418, %v3402, 1073741823
      %v3423 = vsel %vm3419, %v3403, 1073741823
      %v3424 = vsel %vm379, %v3420, 2147483647
      %v3425 = vand.u32 %v3424, 65535
      %v3426 = vshra.s32 %v3424, 16
      %v3427 = vcvt.s32.f32 %v3425
      %v3428 = vcvt.s32.f32 %v3426
      %3429 = vmin.xlane.f32.xlu0 %v3428
      %v3430 = vpop.xlane.xlu0 %3429
      %vm3431 = vcmp.eq.f32.partialorder %v3428, %v3430
      %v3432 = vsel %vm3431, %v3427, inf
      %3433 = vmin.xlane.f32.xlu0 %v3432
      %v3434 = vpop.xlane.xlu0 %3433
      %v3435 = vcvt.f32.s32 %v3434
      %v3436 = vcvt.f32.s32 %v3430
      %v3437 = vshll.u32 %v3436, 16
      %v3438 = vadd.s32 %v3437, %v3435
      %v3439 = vsel %vm379, %v3421, 2147483647
      %v3440 = vand.u32 %v3439, 65535
      %v3441 = vshra.s32 %v3439, 16
      %v3442 = vcvt.s32.f32 %v3440
      %v3443 = vcvt.s32.f32 %v3441
      %3444 = vmin.xlane.f32.xlu0 %v3443
      %v3445 = vpop.xlane.xlu0 %3444
      %vm3446 = vcmp.eq.f32.partialorder %v3443, %v3445
      %v3447 = vsel %vm3446, %v3442, inf
      %3448 = vmin.xlane.f32.xlu0 %v3447
      %v3449 = vpop.xlane.xlu0 %3448
      %v3450 = vcvt.f32.s32 %v3449
      %v3451 = vcvt.f32.s32 %v3445
      %v3452 = vshll.u32 %v3451, 16
      %v3453 = vadd.s32 %v3452, %v3450
      %v3454 = vsel %vm379, %v3422, 2147483647
      %v3455 = vand.u32 %v3454, 65535
      %v3456 = vshra.s32 %v3454, 16
      %v3457 = vcvt.s32.f32 %v3455
      %v3458 = vcvt.s32.f32 %v3456
      %3459 = vmin.xlane.f32.xlu0 %v3458
      %v3460 = vpop.xlane.xlu0 %3459
      %vm3461 = vcmp.eq.f32.partialorder %v3458, %v3460
      %v3462 = vsel %vm3461, %v3457, inf
      %3463 = vmin.xlane.f32.xlu0 %v3462
      %v3464 = vpop.xlane.xlu0 %3463
      %v3465 = vcvt.f32.s32 %v3464
      %v3466 = vcvt.f32.s32 %v3460
      %v3467 = vshll.u32 %v3466, 16
      %v3468 = vadd.s32 %v3467, %v3465
      %v3469 = vsel %vm379, %v3423, 2147483647
      %v3470 = vand.u32 %v3469, 65535
      %v3471 = vshra.s32 %v3469, 16
      %v3472 = vcvt.s32.f32 %v3470
      %v3473 = vcvt.s32.f32 %v3471
      %3474 = vmin.xlane.f32.xlu0 %v3473
      %v3475 = vpop.xlane.xlu0 %3474
      %vm3476 = vcmp.eq.f32.partialorder %v3473, %v3475
      %v3477 = vsel %vm3476, %v3472, inf
      %3478 = vmin.xlane.f32.xlu0 %v3477
      %v3479 = vpop.xlane.xlu0 %3478
      %v3480 = vcvt.f32.s32 %v3479
      %v3481 = vcvt.f32.s32 %v3475
      %v3482 = vshll.u32 %v3481, 16
      %v3483 = vadd.s32 %v3482, %v3480
      %vm3484 = vcmp.eq.s32.totalorder %v3400, %v3438
      %vm3485 = vcmp.eq.s32.totalorder %v3401, %v3453
      %vm3486 = vcmp.eq.s32.totalorder %v3402, %v3468
      %vm3487 = vcmp.eq.s32.totalorder %v3403, %v3483
      %v3488 = vsel %vm3484, %v3392, %v3276
      %v3489 = vsel %vm3485, %v3393, %v3277
      %v3490 = vsel %vm3486, %v3394, %v3278
      %v3491 = vsel %vm3487, %v3395, %v3279
      %v3492 = vsel %vm3484, %v3400, %v3280
      %v3493 = vsel %vm3485, %v3401, %v3281
      %v3494 = vsel %vm3486, %v3402, %v3282
      %v3495 = vsel %vm3487, %v3403, %v3283
      %v3496 = vrsqrt.pop %v3488
      %v3497 = vmul.f32 %v3488, %v3496
      %vm3498 = vcmp.eq.f32.partialorder %v3488, inf
      %v3499 = vsel %vm3498, %v3488, %v3497
      %vm3500 = vcmp.eq.f32.partialorder %v3488, 0.0
      %v3501 = vand.u32 %v3488, 2147483648
      %v3502 = vsel %vm3500, %v3501, %v3499
      %v3503 = vrsqrt.pop %v3489
      %v3504 = vmul.f32 %v3489, %v3503
      %vm3505 = vcmp.eq.f32.partialorder %v3489, inf
      %v3506 = vsel %vm3505, %v3489, %v3504
      %vm3507 = vcmp.eq.f32.partialorder %v3489, 0.0
      %v3508 = vand.u32 %v3489, 2147483648
      %v3509 = vsel %vm3507, %v3508, %v3506
      %v3510 = vrsqrt.pop %v3490
      %v3511 = vmul.f32 %v3490, %v3510
      %vm3512 = vcmp.eq.f32.partialorder %v3490, inf
      %v3513 = vsel %vm3512, %v3490, %v3511
      %vm3514 = vcmp.eq.f32.partialorder %v3490, 0.0
      %v3515 = vand.u32 %v3490, 2147483648
      %v3516 = vsel %vm3514, %v3515, %v3513
      %v3517 = vrsqrt.pop %v3491
      %v3518 = vmul.f32 %v3491, %v3517
      %vm3519 = vcmp.eq.f32.partialorder %v3491, inf
      %v3520 = vsel %vm3519, %v3491, %v3518
      %vm3521 = vcmp.eq.f32.partialorder %v3491, 0.0
      %v3522 = vand.u32 %v3491, 2147483648
      %v3523 = vsel %vm3521, %v3522, %v3520
      %v3524 = vsel %vm379, %v3502, 0.0
      %3525 = vadd.xlane.f32.xlu0 %v3524
      %v3526 = vpop.xlane.xlu0 %3525
      %v3527 = vsel %vm379, %v3509, 0.0
      %3528 = vadd.xlane.f32.xlu0 %v3527
      %v3529 = vpop.xlane.xlu0 %3528
      %v3530 = vsel %vm379, %v3516, 0.0
      %3531 = vadd.xlane.f32.xlu0 %v3530
      %v3532 = vpop.xlane.xlu0 %3531
      %v3533 = vsel %vm379, %v3523, 0.0
      %3534 = vadd.xlane.f32.xlu0 %v3533
      %v3535 = vpop.xlane.xlu0 %3534
      %v3536 = vmul.f32 %v3526, 0.06666667
      %v3537 = vmul.f32 %v3529, 0.06666667
      %v3538 = vmul.f32 %v3532, 0.06666667
      %v3539 = vmul.f32 %v3535, 0.06666667
      %v3540 = vmul.f32 %v3536, 1.5
      %v3541 = vmul.f32 %v3537, 1.5
      %v3542 = vmul.f32 %v3538, 1.5
      %v3543 = vmul.f32 %v3539, 1.5
      %vm3544 = vcmp.gt.f32.partialorder %v3502, %v3540
      %vm3545 = vcmp.gt.f32.partialorder %v3509, %v3541
      %vm3546 = vcmp.gt.f32.partialorder %v3516, %v3542
      %vm3547 = vcmp.gt.f32.partialorder %v3523, %v3543
      %v3548 = vsel %vm3544, %v3502, 0.0
      %v3549 = vsel %vm3545, %v3509, 0.0
      %v3550 = vsel %vm3546, %v3516, 0.0
      %v3551 = vsel %vm3547, %v3523, 0.0
      %3552 = vst.msk [vmem:[%s235] sm:$0xff] %vm379, %v3548
      %3553 = vst.msk [vmem:[%s235 + $0x8] sm:$0xff] %vm379, %v3549
      %3554 = vst.msk [vmem:[%s235 + $0x10] sm:$0xff] %vm379, %v3550
      %3555 = vst.msk [vmem:[%s235 + $0x18] sm:$0xff] %vm379, %v3551
      %v3556 = vand.u32 %v3492, 15
      %v3557 = vand.u32 %v3493, 15
      %v3558 = vand.u32 %v3494, 15
      %v3559 = vand.u32 %v3495, 15
      %v3560 = vsel %vm3544, %v3556, 4294967295
      %v3561 = vsel %vm3545, %v3557, 4294967295
      %v3562 = vsel %vm3546, %v3558, 4294967295
      %v3563 = vsel %vm3547, %v3559, 4294967295
      %3564 = vst.msk [vmem:[%s245] sm:$0xff] %vm379, %v3560
      %3565 = vst.msk [vmem:[%s245 + $0x8] sm:$0xff] %vm379, %v3561
      %3566 = vst.msk [vmem:[%s245 + $0x10] sm:$0xff] %vm379, %v3562
      %3567 = vst.msk [vmem:[%s245 + $0x18] sm:$0xff] %vm379, %v3563
      %vm3568 = vcmask 7168
      %3569 = vst.msk [vmem:[%s255] sm:$0xff] %vm3568, %v3536
      %3570 = vst.msk [vmem:[%s255 + $0x8] sm:$0xff] %vm3568, %v3537
      %3571 = vst.msk [vmem:[%s255 + $0x10] sm:$0xff] %vm3568, %v3538
      %3572 = vst.msk [vmem:[%s255 + $0x18] sm:$0xff] %vm3568, %v3539
      %s3573 = smul.u32 4, %s20
      %p3574 = scmp.lt.s32.totalorder %s19, 1
      %s3575 = scalar_select %p3574, %s19, 1
      %p3576 = scmp.lt.s32.totalorder %s3573, 3
      %s3577 = scalar_select %p3576, %s3573, 3
      %s3578 = smul.addr %s3575, 4
      %s3579 = sadd.s32 %s3577, %s3578
      %s3580 = smul.addr %s3579, 8
      %s3581 = scalar_lea.vmem %s1, %s3580
      %s3582 = smul.u32 4, %s20
      %p3583 = scmp.lt.s32.totalorder %s19, 1
      %s3584 = scalar_select %p3583, %s19, 1
      %p3585 = scmp.lt.s32.totalorder %s3582, 3
      %s3586 = scalar_select %p3585, %s3582, 3
      %s3587 = smul.addr %s3584, 4
      %s3588 = sadd.s32 %s3586, %s3587
      %s3589 = smul.addr %s3588, 8
      %s3590 = scalar_lea.vmem %s2, %s3589
      %s3591 = smul.u32 4, %s20
      %p3592 = scmp.lt.s32.totalorder %s19, 1
      %s3593 = scalar_select %p3592, %s19, 1
      %p3594 = scmp.lt.s32.totalorder %s3591, 3
      %s3595 = scalar_select %p3594, %s3591, 3
      %s3596 = smul.addr %s3593, 4
      %s3597 = sadd.s32 %s3595, %s3596
      %s3598 = smul.addr %s3597, 8
      %s3599 = scalar_lea.vmem %s3, %s3598
      // Predicated region
      $region25: #{tpu_custom_call.1} parent=23 // pred_check
        %p3600 = pneg %p75
      $region26: #{tpu_custom_call.1} parent=23 // pred_check_branch
        %3602 = sbr.rel (%p3600) target = $region28
      $region27: #{tpu_custom_call.1} parent=23 // pred_region
        %s3603 = smul.u32 4, %s20
      $region28: #{tpu_custom_call.1} parent=23 // pred_fallthru
        _
      // Predicated region
      $region29: #{tpu_custom_call.1} parent=23 // pred_check
        %p3604 = pneg %p103
      $region30: #{tpu_custom_call.1} parent=23 // pred_check_branch
        %3606 = sbr.rel (%p3604) target = $region32
      $region31: #{tpu_custom_call.1} parent=23 // pred_region
        %s3607 = smul.u32 4, %s20
      $region32: #{tpu_custom_call.1} parent=23 // pred_fallthru
        _
      // Predicated region
      $region33: #{tpu_custom_call.1} parent=23 // pred_check
        %p3608 = pneg %p131
      $region34: #{tpu_custom_call.1} parent=23 // pred_check_branch
        %3610 = sbr.rel (%p3608) target = $region36
      $region35: #{tpu_custom_call.1} parent=23 // pred_region
        %s3611 = smul.u32 4, %s20
      $region36: #{tpu_custom_call.1} parent=23 // pred_fallthru
        _
    $region24: #{tpu_custom_call.1} parent=5 // pred_fallthru
      _
    %p3612 = scmp.le.s32.totalorder 2, %s10
    // Predicated region
    $region37: #{tpu_custom_call.1} parent=5 // pred_check
      %p3613 = pneg %p3612
    $region38: #{tpu_custom_call.1} parent=5 // pred_check_branch
      %3615 = sbr.rel (%p3613) target = $region40
    $region39: #{tpu_custom_call.1} parent=5 // pred_region
      %s3616 = ssub.s32 %s10, 2
      // Predicated region
      $region41: #{tpu_custom_call.1} parent=39 // pred_check
        %p3617 = pneg %p81
      $region42: #{tpu_custom_call.1} parent=39 // pred_check_branch
        %3619 = sbr.rel (%p3617) target = $region44
      $region43: #{tpu_custom_call.1} parent=39 // pred_region
        %s3620 = smul.u32 4, %s22
        %p3621 = scmp.lt.s32.totalorder %s21, 1
        %s3622 = scalar_select %p3621, %s21, 1
        %p3623 = scmp.lt.s32.totalorder %s3620, 3
        %s3624 = scalar_select %p3623, %s3620, 3
        %s3625 = smul.addr %s3622, 4
        %s3626 = sadd.s32 %s3624, %s3625
        %s3627 = smul.addr %s3626, 8
        %s3628 = scalar_lea.vmem %s1, %s3627
      $region44: #{tpu_custom_call.1} parent=39 // pred_fallthru
        _
      // Predicated region
      $region45: #{tpu_custom_call.1} parent=39 // pred_check
        %p3629 = pneg %p109
      $region46: #{tpu_custom_call.1} parent=39 // pred_check_branch
        %3631 = sbr.rel (%p3629) target = $region48
      $region47: #{tpu_custom_call.1} parent=39 // pred_region
        %s3632 = smul.u32 4, %s22
        %p3633 = scmp.lt.s32.totalorder %s21, 1
        %s3634 = scalar_select %p3633, %s21, 1
        %p3635 = scmp.lt.s32.totalorder %s3632, 3
        %s3636 = scalar_select %p3635, %s3632, 3
        %s3637 = smul.addr %s3634, 4
        %s3638 = sadd.s32 %s3636, %s3637
        %s3639 = smul.addr %s3638, 8
        %s3640 = scalar_lea.vmem %s2, %s3639
      $region48: #{tpu_custom_call.1} parent=39 // pred_fallthru
        _
      // Predicated region
      $region49: #{tpu_custom_call.1} parent=39 // pred_check
        %p3641 = pneg %p137
      $region50: #{tpu_custom_call.1} parent=39 // pred_check_branch
        %3643 = sbr.rel (%p3641) target = $region52
      $region51: #{tpu_custom_call.1} parent=39 // pred_region
        %s3644 = smul.u32 4, %s22
        %p3645 = scmp.lt.s32.totalorder %s21, 1
        %s3646 = scalar_select %p3645, %s21, 1
        %p3647 = scmp.lt.s32.totalorder %s3644, 3
        %s3648 = scalar_select %p3647, %s3644, 3
        %s3649 = smul.addr %s3646, 4
        %s3650 = sadd.s32 %s3648, %s3649
        %s3651 = smul.addr %s3650, 8
        %s3652 = scalar_lea.vmem %s3, %s3651
      $region52: #{tpu_custom_call.1} parent=39 // pred_fallthru
        _
    $region40: #{tpu_custom_call.1} parent=5 // pred_fallthru
      _
  $region6: #{tpu_custom_call.1} parent=0 // loop_footer
    %s14 = sadd.s32 1, %s10
  $region7: #{tpu_custom_call.1} parent=0 // loop_footer_branch
    %9 = sbr.rel target = $region3
  $region8: #{tpu_custom_call.1} parent=0 // loop_exit
    _

</llo_original>
